<compile_context>
chip_gen: v6e
topology: v6e:2x2x1
jax: 0.10.0
libtpu: 0.0.40
codegen_flags: <defaults>
</compile_context>

<pallas_src>
import functools

import jax
import jax.numpy as jnp
from jax.experimental import pallas as pl
from jax.experimental.pallas import tpu as pltpu

EPS = 1e-8


# ----------------------------------------------------------------------------
# Kernel A: GroupNorm(1, C) + 1x1 conv1d (no bias), channels-last, per batch.
# ----------------------------------------------------------------------------
def _gn_conv_kernel(x_ref, g_ref, b_ref, w_ref, o_ref):
    x = x_ref[...][0]                                    # (L, Ci)
    mean = jnp.mean(x, axis=(0, 1), keepdims=True)
    var = jnp.mean((x - mean) ** 2, axis=(0, 1), keepdims=True)
    xn = (x - mean) / jnp.sqrt(var + EPS)
    xn = xn * g_ref[...] + b_ref[...]                    # per-channel affine
    y = jnp.dot(xn, w_ref[...], preferred_element_type=jnp.float32)
    o_ref[...] = y[None].astype(o_ref.dtype)


def gn_conv1d(x_cl, gamma, beta, w):
    """x_cl: [B, L, Ci] channels-last;  w: [Ci, Co]  ->  [B, L, Co]."""
    B, L, Ci = x_cl.shape
    Co = w.shape[1]
    return pl.pallas_call(
        _gn_conv_kernel,
        out_shape=jax.ShapeDtypeStruct((B, L, Co), x_cl.dtype),
        grid=(B,),
        in_specs=[
            pl.BlockSpec((1, L, Ci), lambda b: (b, 0, 0)),
            pl.BlockSpec((1, Ci), lambda b: (0, 0)),
            pl.BlockSpec((1, Ci), lambda b: (0, 0)),
            pl.BlockSpec((Ci, Co), lambda b: (0, 0)),
        ],
        out_specs=pl.BlockSpec((1, L, Co), lambda b: (b, 0, 0)),
        compiler_params=pltpu.CompilerParams(dimension_semantics=("parallel",)),
    )(
        x_cl,
        gamma.reshape(1, Ci).astype(x_cl.dtype),
        beta.reshape(1, Ci).astype(x_cl.dtype),
        w.astype(x_cl.dtype),
    )


# ----------------------------------------------------------------------------
# Kernel B: fused latent chain: Linear+ReLU -> Linear+ReLU -> 1x1 conv + PReLU.
# Single grid step; intermediates stay in VMEM.
# ----------------------------------------------------------------------------
def _latent_chain_kernel(a_ref, x_ref, w1_ref, b1_ref, w2_ref, b2_ref,
                         w3_ref, b3_ref, o_ref):
    x = x_ref[...]                                                    # (M, 250)
    h = jnp.dot(x, w1_ref[...], preferred_element_type=jnp.float32) + b1_ref[...]
    h = jnp.maximum(h, 0.0)
    h = jnp.dot(h, w2_ref[...], preferred_element_type=jnp.float32) + b2_ref[...]
    h = jnp.maximum(h, 0.0)
    y = jnp.dot(h, w3_ref[...], preferred_element_type=jnp.float32) + b3_ref[...]
    a = a_ref[0]                                                      # PReLU slope (SMEM scalar)
    y = jnp.where(y >= 0.0, y, a * y)
    o_ref[...] = y.astype(o_ref.dtype)


def latent_chain(x, w1, b1, w2, b2, w3, b3, prelu_a):
    """x: [M, 250] -> [M, 250];  rows are independent (n, b, s) positions."""
    M, Kd = x.shape
    H1, H2, Ko = w1.shape[1], w2.shape[1], w3.shape[1]
    return pl.pallas_call(
        _latent_chain_kernel,
        out_shape=jax.ShapeDtypeStruct((M, Ko), x.dtype),
        grid=(1,),
        in_specs=[
            pl.BlockSpec(memory_space=pltpu.MemorySpace.SMEM),        # prelu slope
            pl.BlockSpec((M, Kd), lambda i: (0, 0)),
            pl.BlockSpec((Kd, H1), lambda i: (0, 0)),
            pl.BlockSpec((1, H1), lambda i: (0, 0)),
            pl.BlockSpec((H1, H2), lambda i: (0, 0)),
            pl.BlockSpec((1, H2), lambda i: (0, 0)),
            pl.BlockSpec((H2, Ko), lambda i: (0, 0)),
            pl.BlockSpec((1, Ko), lambda i: (0, 0)),
        ],
        out_specs=pl.BlockSpec((M, Ko), lambda i: (0, 0)),
        compiler_params=pltpu.CompilerParams(dimension_semantics=("arbitrary",)),
    )(
        prelu_a.reshape(1).astype(x.dtype),
        x,
        w1.astype(x.dtype), b1.astype(x.dtype),
        w2.astype(x.dtype), b2.astype(x.dtype),
        w3.astype(x.dtype), b3.astype(x.dtype),
    )


# ----------------------------------------------------------------------------
# Kernel C: per-speaker 1x1 conv2d (+2*bias) + tanh*sigmoid gate + end conv + ReLU.
# grid=(num_spks,) "parallel"  ->  one TensorCore per speaker on v7x.
# ----------------------------------------------------------------------------
def _spk_head_kernel(x_ref, w2_ref, b2_ref, wo_ref, bo_ref, wg_ref, bg_ref,
                     we_ref, o_ref):
    x = x_ref[...]                                                    # (L, N)
    h = jnp.dot(x, w2_ref[...][0], preferred_element_type=jnp.float32) + b2_ref[...][0]
    t = jnp.tanh(jnp.dot(h, wo_ref[...], preferred_element_type=jnp.float32) + bo_ref[...])
    g = jax.nn.sigmoid(jnp.dot(h, wg_ref[...], preferred_element_type=jnp.float32) + bg_ref[...])
    y = jnp.dot(t * g, we_ref[...], preferred_element_type=jnp.float32)
    o_ref[...] = jnp.maximum(y, 0.0)[None].astype(o_ref.dtype)


def speaker_heads(x_cl, w2_spk, b2_spk, wo, bo, wg, bg, we):
    """x_cl: [L, N];  w2_spk: [spks, N, Co];  b2_spk: [spks, 1, Co]  -> [spks, L, Ci]."""
    L, N = x_cl.shape
    spks, _, Co = w2_spk.shape
    Ci = we.shape[1]
    return pl.pallas_call(
        _spk_head_kernel,
        out_shape=jax.ShapeDtypeStruct((spks, L, Ci), x_cl.dtype),
        grid=(spks,),
        in_specs=[
            pl.BlockSpec((L, N), lambda s: (0, 0)),
            pl.BlockSpec((1, N, Co), lambda s: (s, 0, 0)),
            pl.BlockSpec((1, 1, Co), lambda s: (s, 0, 0)),
            pl.BlockSpec((Co, Co), lambda s: (0, 0)),
            pl.BlockSpec((1, Co), lambda s: (0, 0)),
            pl.BlockSpec((Co, Co), lambda s: (0, 0)),
            pl.BlockSpec((1, Co), lambda s: (0, 0)),
            pl.BlockSpec((Co, Ci), lambda s: (0, 0)),
        ],
        out_specs=pl.BlockSpec((1, L, Ci), lambda s: (s, 0, 0)),
        compiler_params=pltpu.CompilerParams(dimension_semantics=("parallel",)),
    )(
        x_cl,
        w2_spk.astype(x_cl.dtype), b2_spk.astype(x_cl.dtype),
        wo.astype(x_cl.dtype), bo.astype(x_cl.dtype),
        wg.astype(x_cl.dtype), bg.astype(x_cl.dtype),
        we.astype(x_cl.dtype),
    )


# ----------------------------------------------------------------------------
# Full forward (Perceparator_Masking, num_layers=1, norm='ln', K=250)
# ----------------------------------------------------------------------------
def forward(x, p, K, num_spks):
    B, Ci, L = x.shape
    Co = p["w_conv1d"].shape[0]
    assert p["w_lat1"].shape[1] == K, "self.latent = Linear(250,128) requires K == 250"
    # TODO(synk): use_global_pos_enc positional encoding not implemented (default False).

    # ---- Kernel A: GroupNorm('ln') + 1x1 conv1d, channels-last ---------------
    x_cl = jnp.transpose(x, (0, 2, 1))                                # [B, L, Ci]
    y_cl = gn_conv1d(x_cl, p["gn_gamma"], p["gn_beta"], p["w_conv1d"][:, :, 0].T)  # [B, L, Co]

    # ---- segmentation (channels-last glue) -> [Co*B*S, K], rows = (n, b, s) --
    P = K // 2
    gap = K - (P + L % K) % K                                         # static python int, in [1, K]
    front = jnp.zeros((B, P, Co), y_cl.dtype)
    back = jnp.zeros((B, P + gap, Co), y_cl.dtype)
    yp = jnp.concatenate([front, y_cl, back], axis=1)                 # [B, Lp, Co]
    Lp = L + gap + 2 * P
    C = (Lp - P) // K
    S = 2 * C
    in1 = yp[:, :Lp - P, :].reshape(B, C, K, Co)                      # even chunks
    in2 = yp[:, P:, :].reshape(B, C, K, Co)                           # odd  chunks
    seg = jnp.stack([in1, in2], axis=2).reshape(B, S, K, Co)          # [b, s, k, n]
    x3 = jnp.transpose(seg, (3, 0, 1, 2)).reshape(Co * B * S, K)      # rows (n, b, s)

    # ---- Kernel B: fused latent chain + PReLU --------------------------------
    lc = latent_chain(
        x3,
        p["w_lat1"].T, p["b_lat1"].reshape(1, -1),
        p["w_lat2"].T, p["b_lat2"].reshape(1, -1),
        p["w_latconv"][:, :, 0].T, p["b_latconv"].reshape(1, -1),
        p["prelu_a"],
    )                                                                 # [Co*B*S, K]
    # TODO(synk): perceiver MultiheadAttention layers only execute for num_layers >= 3
    # (loop `range(0, num_layers-2, 2)`); dead code for the default num_layers=1.

    # ---- overlap-add on the Co-channel tensor (conv2d commuted past it) ------
    BS = B * S
    lc3 = lc.reshape(Co, BS, K)                                       # [n, bs, k]
    even = lc3[:, 0::2, :].reshape(Co, -1)
    odd = lc3[:, 1::2, :].reshape(Co, -1)
    oa = even[:, P:] + odd[:, :-P]
    if gap > 0:
        oa = oa[:, :-gap]                                             # [Co, L]
    oa_cl = oa.T                                                      # [L, Co]

    # ---- Kernel C: conv2d(per-speaker, 2*bias) + gate + end conv + ReLU ------
    w2 = p["w_conv2d"][:, :, 0, 0]                                    # [Co*spks, Co]
    w2_spk = jnp.transpose(w2.reshape(num_spks, Co, Co), (0, 2, 1))   # [spks, Cin, Cout]
    b2_spk = 2.0 * p["b_conv2d"].reshape(num_spks, 1, Co)             # bias doubled (2 chunks/pos)
    out = speaker_heads(
        oa_cl, w2_spk, b2_spk,
        p["w_out"][:, :, 0].T, p["b_out"].reshape(1, -1),
        p["w_gate"][:, :, 0].T, p["b_gate"].reshape(1, -1),
        p["w_end"][:, :, 0].T,
    )                                                                 # [spks, L, Ci]

    # torch: view(1, spks, Ci, L).transpose(0, 1) -> [spks, 1, Ci, L]
    return jnp.transpose(out, (0, 2, 1))[:, None, :, :]


# ----------------------------------------------------------------------------
# Pure-JAX reference (literal translation of the PyTorch op order) — self check.
# ----------------------------------------------------------------------------
def _reference_forward(x, p, K, num_spks):
    B, Ci, L = x.shape
    Co = p["w_conv1d"].shape[0]
    mean = jnp.mean(x, axis=(1, 2), keepdims=True)
    var = jnp.mean((x - mean) ** 2, axis=(1, 2), keepdims=True)
    xn = (x - mean) / jnp.sqrt(var + EPS)
    xn = xn * p["gn_gamma"].reshape(1, Ci, 1) + p["gn_beta"].reshape(1, Ci, 1)
    y = jnp.einsum("oc,bcl->bol", p["w_conv1d"][:, :, 0], xn)
    P = K // 2
    gap = K - (P + L % K) % K
    if gap > 0:
        y = jnp.concatenate([y, jnp.zeros((B, Co, gap), y.dtype)], axis=2)
    pad = jnp.zeros((B, Co, P), y.dtype)
    y = jnp.concatenate([pad, y, pad], axis=2)
    in1 = y[:, :, :-P].reshape(B, Co, -1, K)
    in2 = y[:, :, P:].reshape(B, Co, -1, K)
    seg = jnp.concatenate([in1, in2], axis=3).reshape(B, Co, -1, K)
    seg = jnp.transpose(seg, (0, 1, 3, 2))                            # [B, N, K, S]
    _, N, Kk, S = seg.shape
    x3 = jnp.transpose(seg, (0, 3, 2, 1)).reshape(B * S, Kk, N)
    x3 = jnp.transpose(x3, (2, 0, 1))                                 # [N, B*S, K]
    lat = jax.nn.relu(x3 @ p["w_lat1"].T + p["b_lat1"])
    lat = jax.nn.relu(lat @ p["w_lat2"].T + p["b_lat2"])              # [N, B*S, 128]
    latent = jnp.transpose(lat, (1, 2, 0))                            # [B*S, 128, N]
    lc = jnp.einsum("ok,bkn->bon", p["w_latconv"][:, :, 0], latent) + p["b_latconv"][None, :, None]
    x4 = jnp.transpose(lc[None], (0, 3, 2, 1))                        # [1, N, K, B*S]
    a = p["prelu_a"][0]
    x4 = jnp.where(x4 >= 0, x4, a * x4)
    w2 = p["w_conv2d"][:, :, 0, 0]
    x5 = jnp.einsum("oc,bcks->boks", w2, x4) + p["b_conv2d"][None, :, None, None]
    x5 = x5.reshape(num_spks, Co, Kk, B * S)
    x6 = jnp.transpose(x5, (0, 1, 3, 2)).reshape(num_spks, Co, -1, Kk * 2)
    o1 = x6[:, :, :, :Kk].reshape(num_spks, Co, -1)[:, :, P:]
    o2 = x6[:, :, :, Kk:].reshape(num_spks, Co, -1)[:, :, :-P]
    oa = o1 + o2
    if gap > 0:
        oa = oa[:, :, :-gap]                                          # [spks, Co, L]
    t = jnp.tanh(jnp.einsum("oc,scl->sol", p["w_out"][:, :, 0], oa) + p["b_out"][None, :, None])
    g = jax.nn.sigmoid(jnp.einsum("oc,scl->sol", p["w_gate"][:, :, 0], oa) + p["b_gate"][None, :, None])
    e = jnp.einsum("oc,scl->sol", p["w_end"][:, :, 0], t * g)
    return jax.nn.relu(e)[:, None, :, :]


# ----------------------------------------------------------------------------
if __name__ == "__main__":
    in_channels, out_channels = 8, 16
    num_spks = 2
    K = 250               # forced by Linear(250, 128) in self.latent
    B, L = 1, 300

    keys = jax.random.split(jax.random.PRNGKey(0), 18)
    f32 = jnp.float32
    params = dict(
        gn_gamma=jnp.ones((in_channels,), f32) + 0.1 * jax.random.normal(keys[0], (in_channels,), f32),
        gn_beta=0.1 * jax.random.normal(keys[1], (in_channels,), f32),
        w_conv1d=0.1 * jax.random.normal(keys[2], (out_channels, in_channels, 1), f32),
        w_lat1=0.1 * jax.random.normal(keys[3], (128, 250), f32),
        b_lat1=0.1 * jax.random.normal(keys[4], (128,), f32),
        w_lat2=0.1 * jax.random.normal(keys[5], (128, 128), f32),
        b_lat2=0.1 * jax.random.normal(keys[6], (128,), f32),
        w_latconv=0.1 * jax.random.normal(keys[7], (250, 128, 1), f32),
        b_latconv=0.1 * jax.random.normal(keys[8], (250,), f32),
        w_conv2d=0.1 * jax.random.normal(keys[9], (out_channels * num_spks, out_channels, 1, 1), f32),
        b_conv2d=0.1 * jax.random.normal(keys[10], (out_channels * num_spks,), f32),
        w_out=0.1 * jax.random.normal(keys[11], (out_channels, out_channels, 1), f32),
        b_out=0.1 * jax.random.normal(keys[12], (out_channels,), f32),
        w_gate=0.1 * jax.random.normal(keys[13], (out_channels, out_channels, 1), f32),
        b_gate=0.1 * jax.random.normal(keys[14], (out_channels,), f32),
        w_end=0.1 * jax.random.normal(keys[15], (in_channels, out_channels, 1), f32),
        prelu_a=jnp.array([0.25], f32),       # nn.PReLU learnable slope (default init)
    )
    x = jax.random.normal(keys[16], (B, in_channels, L), f32)

    fwd = jax.jit(functools.partial(forward, K=K, num_spks=num_spks))
    out = jax.block_until_ready(fwd(x, params))

    ref = jax.block_until_ready(
        jax.jit(functools.partial(_reference_forward, K=K, num_spks=num_spks))(x, params)
    )

    assert out.shape == (num_spks, 1, in_channels, L), out.shape
    assert bool(jnp.all(jnp.isfinite(out)))
    max_err = float(jnp.max(jnp.abs(out - ref)))
    assert max_err < 2e-2, f"mismatch vs pure-JAX reference: {max_err}"
    print("KERNEL_OK")
</pallas_src>

<mosaic_0001>
module attributes {stable_mosaic.version = 11 : i64} {
  func.func @_gn_conv_kernel(%arg0: i32, %arg1: memref<1x300x8xf32, #tpu.memory_space<vmem>>, %arg2: memref<1x8xf32, #tpu.memory_space<vmem>>, %arg3: memref<1x8xf32, #tpu.memory_space<vmem>>, %arg4: memref<8x16xf32, #tpu.memory_space<vmem>>, %arg5: memref<1x300x16xf32, #tpu.memory_space<vmem>>) attributes {dimension_semantics = [#tpu.dimension_semantics<parallel>], iteration_bounds = array<i64: 1>, scalar_prefetch = 0 : i64, scratch_operands = 0 : i64, tpu.core_type = #tpu.core_type<tc>, window_params = [{transform_indices = @transform_0, window_bounds = array<i64: 1, 300, 8>}, {pipeline_mode = #tpu.pipeline_mode<synchronous>, transform_indices = @transform_1, window_bounds = array<i64: 1, 8>}, {pipeline_mode = #tpu.pipeline_mode<synchronous>, transform_indices = @transform_2, window_bounds = array<i64: 1, 8>}, {pipeline_mode = #tpu.pipeline_mode<synchronous>, transform_indices = @transform_3, window_bounds = array<i64: 8, 16>}, {transform_indices = @transform_4, window_bounds = array<i64: 1, 300, 16>}]} {
    %c0 = arith.constant 0 : index
    %c0_0 = arith.constant 0 : index
    %c0_1 = arith.constant 0 : index
    %0 = vector.load %arg1[%c0, %c0_0, %c0_1] : memref<1x300x8xf32, #tpu.memory_space<vmem>>, vector<1x300x8xf32>
    %1 = vector.shape_cast %0 : vector<1x300x8xf32> to vector<300x8xf32>
    %2 = vector.shape_cast %1 : vector<300x8xf32> to vector<1x300x8xf32>
    %cst = arith.constant dense<0.000000e+00> : vector<1xf32>
    %3 = vector.multi_reduction <add>, %2, %cst [1, 2] : vector<1x300x8xf32> to vector<1xf32>
    %4 = vector.shape_cast %3 : vector<1xf32> to vector<1x1x1xf32>
    %5 = vector.extract %4[0, 0, 0] : f32 from vector<1x1x1xf32>
    %6 = vector.broadcast %5 : f32 to vector<1x1xf32>
    %cst_2 = arith.constant 2.400000e+03 : f32
    %7 = vector.broadcast %cst_2 : f32 to vector<1x1xf32>
    %8 = arith.divf %6, %7 : vector<1x1xf32>
    %9 = vector.broadcast %8 : vector<1x1xf32> to vector<300x8xf32>
    %10 = arith.subf %1, %9 : vector<300x8xf32>
    %11 = arith.mulf %10, %10 : vector<300x8xf32>
    %12 = vector.shape_cast %11 : vector<300x8xf32> to vector<1x300x8xf32>
    %cst_3 = arith.constant dense<0.000000e+00> : vector<1xf32>
    %13 = vector.multi_reduction <add>, %12, %cst_3 [1, 2] : vector<1x300x8xf32> to vector<1xf32>
    %14 = vector.shape_cast %13 : vector<1xf32> to vector<1x1x1xf32>
    %15 = vector.extract %14[0, 0, 0] : f32 from vector<1x1x1xf32>
    %16 = vector.broadcast %15 : f32 to vector<1x1xf32>
    %cst_4 = arith.constant 2.400000e+03 : f32
    %17 = vector.broadcast %cst_4 : f32 to vector<1x1xf32>
    %18 = arith.divf %16, %17 : vector<1x1xf32>
    %19 = vector.broadcast %8 : vector<1x1xf32> to vector<300x8xf32>
    %20 = arith.subf %1, %19 : vector<300x8xf32>
    %cst_5 = arith.constant 9.99999993E-9 : f32
    %21 = vector.broadcast %cst_5 : f32 to vector<1x1xf32>
    %22 = arith.addf %18, %21 : vector<1x1xf32>
    %23 = math.sqrt %22 : vector<1x1xf32>
    %24 = vector.broadcast %23 : vector<1x1xf32> to vector<300x8xf32>
    %25 = arith.divf %20, %24 : vector<300x8xf32>
    %c0_6 = arith.constant 0 : index
    %c0_7 = arith.constant 0 : index
    %26 = vector.load %arg2[%c0_6, %c0_7] : memref<1x8xf32, #tpu.memory_space<vmem>>, vector<1x8xf32>
    %27 = vector.broadcast %26 : vector<1x8xf32> to vector<300x8xf32>
    %28 = arith.mulf %25, %27 : vector<300x8xf32>
    %c0_8 = arith.constant 0 : index
    %c0_9 = arith.constant 0 : index
    %29 = vector.load %arg3[%c0_8, %c0_9] : memref<1x8xf32, #tpu.memory_space<vmem>>, vector<1x8xf32>
    %30 = vector.broadcast %29 : vector<1x8xf32> to vector<300x8xf32>
    %31 = arith.addf %28, %30 : vector<300x8xf32>
    %c0_10 = arith.constant 0 : index
    %c0_11 = arith.constant 0 : index
    %32 = vector.load %arg4[%c0_10, %c0_11] : memref<8x16xf32, #tpu.memory_space<vmem>>, vector<8x16xf32>
    %cst_12 = arith.constant dense<0.000000e+00> : vector<300x16xf32>
    %33 = tpu.matmul %31, %32, %cst_12 {dimension_numbers = #tpu.dot_dimension_numbers<[1], [0], [0], [1], [0, 0, 1, 1], [], []>} : vector<300x8xf32>, vector<8x16xf32>, vector<300x16xf32> -> vector<300x16xf32>
    %34 = vector.shape_cast %33 : vector<300x16xf32> to vector<1x300x16xf32>
    %c0_13 = arith.constant 0 : index
    %c0_14 = arith.constant 0 : index
    %c0_15 = arith.constant 0 : index
    %35 = vector.load %arg5[%c0_13, %c0_14, %c0_15] : memref<1x300x16xf32, #tpu.memory_space<vmem>>, vector<1x300x16xf32>
    tpu.vector_store %arg5[%c0_13, %c0_14, %c0_15], %34 {strides = array<i32>} : memref<1x300x16xf32, #tpu.memory_space<vmem>>, vector<1x300x16xf32>,
    return
  }
  func.func @transform_0(%arg0: i32) -> (i32, i32, i32) {
    %c0_i32 = arith.constant 0 : i32
    %c0_i32_0 = arith.constant 0 : i32
    %c0_i32_1 = arith.constant 0 : i32
    return %arg0, %c0_i32, %c0_i32_0 : i32, i32, i32
  }
  func.func @transform_1(%arg0: i32) -> (i32, i32) {
    %c0_i32 = arith.constant 0 : i32
    %c0_i32_0 = arith.constant 0 : i32
    %c0_i32_1 = arith.constant 0 : i32
    return %c0_i32, %c0_i32_0 : i32, i32
  }
  func.func @transform_2(%arg0: i32) -> (i32, i32) {
    %c0_i32 = arith.constant 0 : i32
    %c0_i32_0 = arith.constant 0 : i32
    %c0_i32_1 = arith.constant 0 : i32
    return %c0_i32, %c0_i32_0 : i32, i32
  }
  func.func @transform_3(%arg0: i32) -> (i32, i32) {
    %c0_i32 = arith.constant 0 : i32
    %c0_i32_0 = arith.constant 0 : i32
    %c0_i32_1 = arith.constant 0 : i32
    return %c0_i32, %c0_i32_0 : i32, i32
  }
  func.func @transform_4(%arg0: i32) -> (i32, i32, i32) {
    %c0_i32 = arith.constant 0 : i32
    %c0_i32_0 = arith.constant 0 : i32
    %c0_i32_1 = arith.constant 0 : i32
    return %arg0, %c0_i32, %c0_i32_0 : i32, i32, i32
  }
}

module attributes {stable_mosaic.version = 11 : i64} {
  func.func @_latent_chain_kernel(%arg0: i32, %arg1: memref<1xf32, #tpu.memory_space<smem>>, %arg2: memref<64x250xf32, #tpu.memory_space<vmem>>, %arg3: memref<250x128xf32, #tpu.memory_space<vmem>>, %arg4: memref<1x128xf32, #tpu.memory_space<vmem>>, %arg5: memref<128x128xf32, #tpu.memory_space<vmem>>, %arg6: memref<1x128xf32, #tpu.memory_space<vmem>>, %arg7: memref<128x250xf32, #tpu.memory_space<vmem>>, %arg8: memref<1x250xf32, #tpu.memory_space<vmem>>, %arg9: memref<64x250xf32, #tpu.memory_space<vmem>>) attributes {dimension_semantics = [#tpu.dimension_semantics<arbitrary>], iteration_bounds = array<i64: 1>, scalar_prefetch = 0 : i64, scratch_operands = 0 : i64, tpu.core_type = #tpu.core_type<tc>, window_params = [{transform_indices = @transform_0, window_bounds = array<i64: 1>}, {pipeline_mode = #tpu.pipeline_mode<synchronous>, transform_indices = @transform_1, window_bounds = array<i64: 64, 250>}, {pipeline_mode = #tpu.pipeline_mode<synchronous>, transform_indices = @transform_2, window_bounds = array<i64: 250, 128>}, {pipeline_mode = #tpu.pipeline_mode<synchronous>, transform_indices = @transform_3, window_bounds = array<i64: 1, 128>}, {pipeline_mode = #tpu.pipeline_mode<synchronous>, transform_indices = @transform_4, window_bounds = array<i64: 128, 128>}, {pipeline_mode = #tpu.pipeline_mode<synchronous>, transform_indices = @transform_5, window_bounds = array<i64: 1, 128>}, {pipeline_mode = #tpu.pipeline_mode<synchronous>, transform_indices = @transform_6, window_bounds = array<i64: 128, 250>}, {pipeline_mode = #tpu.pipeline_mode<synchronous>, transform_indices = @transform_7, window_bounds = array<i64: 1, 250>}, {pipeline_mode = #tpu.pipeline_mode<synchronous>, transform_indices = @transform_8, window_bounds = array<i64: 64, 250>}]} {
    %c0 = arith.constant 0 : index
    %c0_0 = arith.constant 0 : index
    %0 = vector.load %arg2[%c0, %c0_0] : memref<64x250xf32, #tpu.memory_space<vmem>>, vector<64x250xf32>
    %c0_1 = arith.constant 0 : index
    %c0_2 = arith.constant 0 : index
    %1 = vector.load %arg3[%c0_1, %c0_2] : memref<250x128xf32, #tpu.memory_space<vmem>>, vector<250x128xf32>
    %cst = arith.constant dense<0.000000e+00> : vector<64x128xf32>
    %2 = tpu.matmul %0, %1, %cst {dimension_numbers = #tpu.dot_dimension_numbers<[1], [0], [0], [1], [0, 0, 1, 1], [], []>} : vector<64x250xf32>, vector<250x128xf32>, vector<64x128xf32> -> vector<64x128xf32>
    %c0_3 = arith.constant 0 : index
    %c0_4 = arith.constant 0 : index
    %3 = vector.load %arg4[%c0_3, %c0_4] : memref<1x128xf32, #tpu.memory_space<vmem>>, vector<1x128xf32>
    %4 = vector.broadcast %3 : vector<1x128xf32> to vector<64x128xf32>
    %5 = arith.addf %2, %4 : vector<64x128xf32>
    %cst_5 = arith.constant 0.000000e+00 : f32
    %6 = vector.broadcast %cst_5 : f32 to vector<64x128xf32>
    %7 = arith.maximumf %5, %6 : vector<64x128xf32>
    %c0_6 = arith.constant 0 : index
    %c0_7 = arith.constant 0 : index
    %8 = vector.load %arg5[%c0_6, %c0_7] : memref<128x128xf32, #tpu.memory_space<vmem>>, vector<128x128xf32>
    %cst_8 = arith.constant dense<0.000000e+00> : vector<64x128xf32>
    %9 = tpu.matmul %7, %8, %cst_8 {dimension_numbers = #tpu.dot_dimension_numbers<[1], [0], [0], [1], [0, 0, 1, 1], [], []>} : vector<64x128xf32>, vector<128x128xf32>, vector<64x128xf32> -> vector<64x128xf32>
    %c0_9 = arith.constant 0 : index
    %c0_10 = arith.constant 0 : index
    %10 = vector.load %arg6[%c0_9, %c0_10] : memref<1x128xf32, #tpu.memory_space<vmem>>, vector<1x128xf32>
    %11 = vector.broadcast %10 : vector<1x128xf32> to vector<64x128xf32>
    %12 = arith.addf %9, %11 : vector<64x128xf32>
    %cst_11 = arith.constant 0.000000e+00 : f32
    %13 = vector.broadcast %cst_11 : f32 to vector<64x128xf32>
    %14 = arith.maximumf %12, %13 : vector<64x128xf32>
    %c0_12 = arith.constant 0 : index
    %c0_13 = arith.constant 0 : index
    %15 = vector.load %arg7[%c0_12, %c0_13] : memref<128x250xf32, #tpu.memory_space<vmem>>, vector<128x250xf32>
    %cst_14 = arith.constant dense<0.000000e+00> : vector<64x250xf32>
    %16 = tpu.matmul %14, %15, %cst_14 {dimension_numbers = #tpu.dot_dimension_numbers<[1], [0], [0], [1], [0, 0, 1, 1], [], []>} : vector<64x128xf32>, vector<128x250xf32>, vector<64x250xf32> -> vector<64x250xf32>
    %c0_15 = arith.constant 0 : index
    %c0_16 = arith.constant 0 : index
    %17 = vector.load %arg8[%c0_15, %c0_16] : memref<1x250xf32, #tpu.memory_space<vmem>>, vector<1x250xf32>
    %18 = vector.broadcast %17 : vector<1x250xf32> to vector<64x250xf32>
    %19 = arith.addf %16, %18 : vector<64x250xf32>
    %c0_17 = arith.constant 0 : index
    %20 = memref.load %arg1[%c0_17] : memref<1xf32, #tpu.memory_space<smem>>
    %cst_18 = arith.constant 0.000000e+00 : f32
    %21 = vector.broadcast %cst_18 : f32 to vector<64x250xf32>
    %22 = arith.cmpf oge, %19, %21 : vector<64x250xf32>
    %23 = vector.broadcast %20 : f32 to vector<64x250xf32>
    %24 = arith.mulf %23, %19 : vector<64x250xf32>
    %25 = arith.select %22, %19, %24 : vector<64x250xi1>, vector<64x250xf32>
    %c0_19 = arith.constant 0 : index
    %c0_20 = arith.constant 0 : index
    %26 = vector.load %arg9[%c0_19, %c0_20] : memref<64x250xf32, #tpu.memory_space<vmem>>, vector<64x250xf32>
    tpu.vector_store %arg9[%c0_19, %c0_20], %25 {strides = array<i32>} : memref<64x250xf32, #tpu.memory_space<vmem>>, vector<64x250xf32>,
    return
  }
  func.func @transform_0(%arg0: i32) -> i32 {
    %c0_i32 = arith.constant 0 : i32
    %c0_i32_0 = arith.constant 0 : i32
    return %c0_i32 : i32
  }
  func.func @transform_1(%arg0: i32) -> (i32, i32) {
    %c0_i32 = arith.constant 0 : i32
    %c0_i32_0 = arith.constant 0 : i32
    %c0_i32_1 = arith.constant 0 : i32
    return %c0_i32, %c0_i32_0 : i32, i32
  }
  func.func @transform_2(%arg0: i32) -> (i32, i32) {
    %c0_i32 = arith.constant 0 : i32
    %c0_i32_0 = arith.constant 0 : i32
    %c0_i32_1 = arith.constant 0 : i32
    return %c0_i32, %c0_i32_0 : i32, i32
  }
  func.func @transform_3(%arg0: i32) -> (i32, i32) {
    %c0_i32 = arith.constant 0 : i32
    %c0_i32_0 = arith.constant 0 : i32
    %c0_i32_1 = arith.constant 0 : i32
    return %c0_i32, %c0_i32_0 : i32, i32
  }
  func.func @transform_4(%arg0: i32) -> (i32, i32) {
    %c0_i32 = arith.constant 0 : i32
    %c0_i32_0 = arith.constant 0 : i32
    %c0_i32_1 = arith.constant 0 : i32
    return %c0_i32, %c0_i32_0 : i32, i32
  }
  func.func @transform_5(%arg0: i32) -> (i32, i32) {
    %c0_i32 = arith.constant 0 : i32
    %c0_i32_0 = arith.constant 0 : i32
    %c0_i32_1 = arith.constant 0 : i32
    return %c0_i32, %c0_i32_0 : i32, i32
  }
  func.func @transform_6(%arg0: i32) -> (i32, i32) {
    %c0_i32 = arith.constant 0 : i32
    %c0_i32_0 = arith.constant 0 : i32
    %c0_i32_1 = arith.constant 0 : i32
    return %c0_i32, %c0_i32_0 : i32, i32
  }
  func.func @transform_7(%arg0: i32) -> (i32, i32) {
    %c0_i32 = arith.constant 0 : i32
    %c0_i32_0 = arith.constant 0 : i32
    %c0_i32_1 = arith.constant 0 : i32
    return %c0_i32, %c0_i32_0 : i32, i32
  }
  func.func @transform_8(%arg0: i32) -> (i32, i32) {
    %c0_i32 = arith.constant 0 : i32
    %c0_i32_0 = arith.constant 0 : i32
    %c0_i32_1 = arith.constant 0 : i32
    return %c0_i32, %c0_i32_0 : i32, i32
  }
}

module attributes {stable_mosaic.version = 11 : i64} {
  func.func @_spk_head_kernel(%arg0: i32, %arg1: memref<300x16xf32, #tpu.memory_space<vmem>>, %arg2: memref<1x16x16xf32, #tpu.memory_space<vmem>>, %arg3: memref<1x1x16xf32, #tpu.memory_space<vmem>>, %arg4: memref<16x16xf32, #tpu.memory_space<vmem>>, %arg5: memref<1x16xf32, #tpu.memory_space<vmem>>, %arg6: memref<16x16xf32, #tpu.memory_space<vmem>>, %arg7: memref<1x16xf32, #tpu.memory_space<vmem>>, %arg8: memref<16x8xf32, #tpu.memory_space<vmem>>, %arg9: memref<1x300x8xf32, #tpu.memory_space<vmem>>) attributes {dimension_semantics = [#tpu.dimension_semantics<parallel>], iteration_bounds = array<i64: 2>, scalar_prefetch = 0 : i64, scratch_operands = 0 : i64, tpu.core_type = #tpu.core_type<tc>, window_params = [{pipeline_mode = #tpu.pipeline_mode<synchronous>, transform_indices = @transform_0, window_bounds = array<i64: 300, 16>}, {transform_indices = @transform_1, window_bounds = array<i64: 1, 16, 16>}, {transform_indices = @transform_2, window_bounds = array<i64: 1, 1, 16>}, {pipeline_mode = #tpu.pipeline_mode<synchronous>, transform_indices = @transform_3, window_bounds = array<i64: 16, 16>}, {pipeline_mode = #tpu.pipeline_mode<synchronous>, transform_indices = @transform_4, window_bounds = array<i64: 1, 16>}, {pipeline_mode = #tpu.pipeline_mode<synchronous>, transform_indices = @transform_5, window_bounds = array<i64: 16, 16>}, {pipeline_mode = #tpu.pipeline_mode<synchronous>, transform_indices = @transform_6, window_bounds = array<i64: 1, 16>}, {pipeline_mode = #tpu.pipeline_mode<synchronous>, transform_indices = @transform_7, window_bounds = array<i64: 16, 8>}, {transform_indices = @transform_8, window_bounds = array<i64: 1, 300, 8>}]} {
    %c0 = arith.constant 0 : index
    %c0_0 = arith.constant 0 : index
    %0 = vector.load %arg1[%c0, %c0_0] : memref<300x16xf32, #tpu.memory_space<vmem>>, vector<300x16xf32>
    %c0_1 = arith.constant 0 : index
    %c0_2 = arith.constant 0 : index
    %c0_3 = arith.constant 0 : index
    %1 = vector.load %arg2[%c0_1, %c0_2, %c0_3] : memref<1x16x16xf32, #tpu.memory_space<vmem>>, vector<1x16x16xf32>
    %2 = vector.shape_cast %1 : vector<1x16x16xf32> to vector<16x16xf32>
    %cst = arith.constant dense<0.000000e+00> : vector<300x16xf32>
    %3 = tpu.matmul %0, %2, %cst {dimension_numbers = #tpu.dot_dimension_numbers<[1], [0], [0], [1], [0, 0, 1, 1], [], []>} : vector<300x16xf32>, vector<16x16xf32>, vector<300x16xf32> -> vector<300x16xf32>
    %c0_4 = arith.constant 0 : index
    %c0_5 = arith.constant 0 : index
    %c0_6 = arith.constant 0 : index
    %4 = vector.load %arg3[%c0_4, %c0_5, %c0_6] : memref<1x1x16xf32, #tpu.memory_space<vmem>>, vector<1x1x16xf32>
    %5 = vector.shape_cast %4 : vector<1x1x16xf32> to vector<1x16xf32>
    %6 = vector.broadcast %5 : vector<1x16xf32> to vector<300x16xf32>
    %7 = arith.addf %3, %6 : vector<300x16xf32>
    %c0_7 = arith.constant 0 : index
    %c0_8 = arith.constant 0 : index
    %8 = vector.load %arg4[%c0_7, %c0_8] : memref<16x16xf32, #tpu.memory_space<vmem>>, vector<16x16xf32>
    %cst_9 = arith.constant dense<0.000000e+00> : vector<300x16xf32>
    %9 = tpu.matmul %7, %8, %cst_9 {dimension_numbers = #tpu.dot_dimension_numbers<[1], [0], [0], [1], [0, 0, 1, 1], [], []>} : vector<300x16xf32>, vector<16x16xf32>, vector<300x16xf32> -> vector<300x16xf32>
    %c0_10 = arith.constant 0 : index
    %c0_11 = arith.constant 0 : index
    %10 = vector.load %arg5[%c0_10, %c0_11] : memref<1x16xf32, #tpu.memory_space<vmem>>, vector<1x16xf32>
    %11 = vector.broadcast %10 : vector<1x16xf32> to vector<300x16xf32>
    %12 = arith.addf %9, %11 : vector<300x16xf32>
    %13 = math.tanh %12 : vector<300x16xf32>
    %c0_12 = arith.constant 0 : index
    %c0_13 = arith.constant 0 : index
    %14 = vector.load %arg6[%c0_12, %c0_13] : memref<16x16xf32, #tpu.memory_space<vmem>>, vector<16x16xf32>
    %cst_14 = arith.constant dense<0.000000e+00> : vector<300x16xf32>
    %15 = tpu.matmul %7, %14, %cst_14 {dimension_numbers = #tpu.dot_dimension_numbers<[1], [0], [0], [1], [0, 0, 1, 1], [], []>} : vector<300x16xf32>, vector<16x16xf32>, vector<300x16xf32> -> vector<300x16xf32>
    %c0_15 = arith.constant 0 : index
    %c0_16 = arith.constant 0 : index
    %16 = vector.load %arg7[%c0_15, %c0_16] : memref<1x16xf32, #tpu.memory_space<vmem>>, vector<1x16xf32>
    %17 = vector.broadcast %16 : vector<1x16xf32> to vector<300x16xf32>
    %18 = arith.addf %15, %17 : vector<300x16xf32>
    %19 = arith.negf %18 : vector<300x16xf32>
    %20 = math.exp %19 : vector<300x16xf32>
    %cst_17 = arith.constant 1.000000e+00 : f32
    %21 = vector.broadcast %cst_17 : f32 to vector<300x16xf32>
    %22 = arith.addf %21, %20 : vector<300x16xf32>
    %23 = arith.divf %21, %22 : vector<300x16xf32>
    %24 = arith.mulf %13, %23 : vector<300x16xf32>
    %c0_18 = arith.constant 0 : index
    %c0_19 = arith.constant 0 : index
    %25 = vector.load %arg8[%c0_18, %c0_19] : memref<16x8xf32, #tpu.memory_space<vmem>>, vector<16x8xf32>
    %cst_20 = arith.constant dense<0.000000e+00> : vector<300x8xf32>
    %26 = tpu.matmul %24, %25, %cst_20 {dimension_numbers = #tpu.dot_dimension_numbers<[1], [0], [0], [1], [0, 0, 1, 1], [], []>} : vector<300x16xf32>, vector<16x8xf32>, vector<300x8xf32> -> vector<300x8xf32>
    %cst_21 = arith.constant 0.000000e+00 : f32
    %27 = vector.broadcast %cst_21 : f32 to vector<300x8xf32>
    %28 = arith.maximumf %26, %27 : vector<300x8xf32>
    %29 = vector.shape_cast %28 : vector<300x8xf32> to vector<1x300x8xf32>
    %c0_22 = arith.constant 0 : index
    %c0_23 = arith.constant 0 : index
    %c0_24 = arith.constant 0 : index
    %30 = vector.load %arg9[%c0_22, %c0_23, %c0_24] : memref<1x300x8xf32, #tpu.memory_space<vmem>>, vector<1x300x8xf32>
    tpu.vector_store %arg9[%c0_22, %c0_23, %c0_24], %29 {strides = array<i32>} : memref<1x300x8xf32, #tpu.memory_space<vmem>>, vector<1x300x8xf32>,
    return
  }
  func.func @transform_0(%arg0: i32) -> (i32, i32) {
    %c0_i32 = arith.constant 0 : i32
    %c0_i32_0 = arith.constant 0 : i32
    %c0_i32_1 = arith.constant 0 : i32
    return %c0_i32, %c0_i32_0 : i32, i32
  }
  func.func @transform_1(%arg0: i32) -> (i32, i32, i32) {
    %c0_i32 = arith.constant 0 : i32
    %c0_i32_0 = arith.constant 0 : i32
    %c0_i32_1 = arith.constant 0 : i32
    return %arg0, %c0_i32, %c0_i32_0 : i32, i32, i32
  }
  func.func @transform_2(%arg0: i32) -> (i32, i32, i32) {
    %c0_i32 = arith.constant 0 : i32
    %c0_i32_0 = arith.constant 0 : i32
    %c0_i32_1 = arith.constant 0 : i32
    return %arg0, %c0_i32, %c0_i32_0 : i32, i32, i32
  }
  func.func @transform_3(%arg0: i32) -> (i32, i32) {
    %c0_i32 = arith.constant 0 : i32
    %c0_i32_0 = arith.constant 0 : i32
    %c0_i32_1 = arith.constant 0 : i32
    return %c0_i32, %c0_i32_0 : i32, i32
  }
  func.func @transform_4(%arg0: i32) -> (i32, i32) {
    %c0_i32 = arith.constant 0 : i32
    %c0_i32_0 = arith.constant 0 : i32
    %c0_i32_1 = arith.constant 0 : i32
    return %c0_i32, %c0_i32_0 : i32, i32
  }
  func.func @transform_5(%arg0: i32) -> (i32, i32) {
    %c0_i32 = arith.constant 0 : i32
    %c0_i32_0 = arith.constant 0 : i32
    %c0_i32_1 = arith.constant 0 : i32
    return %c0_i32, %c0_i32_0 : i32, i32
  }
  func.func @transform_6(%arg0: i32) -> (i32, i32) {
    %c0_i32 = arith.constant 0 : i32
    %c0_i32_0 = arith.constant 0 : i32
    %c0_i32_1 = arith.constant 0 : i32
    return %c0_i32, %c0_i32_0 : i32, i32
  }
  func.func @transform_7(%arg0: i32) -> (i32, i32) {
    %c0_i32 = arith.constant 0 : i32
    %c0_i32_0 = arith.constant 0 : i32
    %c0_i32_1 = arith.constant 0 : i32
    return %c0_i32, %c0_i32_0 : i32, i32
  }
  func.func @transform_8(%arg0: i32) -> (i32, i32, i32) {
    %c0_i32 = arith.constant 0 : i32
    %c0_i32_0 = arith.constant 0 : i32
    %c0_i32_1 = arith.constant 0 : i32
    return %arg0, %c0_i32, %c0_i32_0 : i32, i32, i32
  }
}

</mosaic_0001>

<llo_original>
// kernel: squeeze.8
$region0: #{squeeze.8}
  %s0 = inlined_call_operand.vmem [shape: f32[32,16], index: 0, kind: input, shape index: {}]
  %s1 = inlined_call_operand.vmem [shape: f32[2,16,16], index: 1, kind: output, shape index: {}]
  $region1: #{squeeze.8} parent=0
    #allocation0 [shape = 'u8[65536]{0}', space=vmem, size = 0x10000, scoped, tag = 'scoped mem for output reshape']
    %v2 = vld [vmem:[%s0] sm:$0xff]
    %vm3 = vcmask 130048
    %4 = vst.msk [vmem:[#allocation0] ss:$8 sm:$0xf] %vm3, %v2
    %5 = vst.msk [vmem:[#allocation0] ss:$8 sm:$0xf0] %vm3, %v2
    %s6 = scalar_lea.vmem %s0, 8
    %v7 = vld [vmem:[%s6] sm:$0xff]
    %vm8 = vcmask 130048
    %s9 = scalar_lea.vmem [#allocation0], 64
    %10 = vst.msk [vmem:[%s9] ss:$8 sm:$0xf] %vm8, %v7
    %s11 = scalar_lea.vmem [#allocation0], 64
    %12 = vst.msk [vmem:[%s11] ss:$8 sm:$0xf0] %vm8, %v7
    %v13 = vld [vmem:[%s0] sm:$0xff]
    %14 = vrot.lane.b32.xlu0 %v13, 112
    %v15 = vpop.permute.xlu0 %14
    %vm16 = vcmask 130048
    %s17 = scalar_lea.vmem [#allocation0], 1
    %18 = vst.msk [vmem:[%s17] ss:$8 sm:$0xf] %vm16, %v15
    %s19 = scalar_lea.vmem [#allocation0], 1
    %20 = vst.msk [vmem:[%s19] ss:$8 sm:$0xf0] %vm16, %v15
    %s21 = scalar_lea.vmem %s0, 8
    %v22 = vld [vmem:[%s21] sm:$0xff]
    %23 = vrot.lane.b32.xlu0 %v22, 112
    %v24 = vpop.permute.xlu0 %23
    %vm25 = vcmask 130048
    %s26 = scalar_lea.vmem [#allocation0], 65
    %27 = vst.msk [vmem:[%s26] ss:$8 sm:$0xf] %vm25, %v24
    %s28 = scalar_lea.vmem [#allocation0], 65
    %29 = vst.msk [vmem:[%s28] ss:$8 sm:$0xf0] %vm25, %v24
    %s31 = sshll.u32 1, 2
    %s32 = ssub.s32 %s31, 1
    %v34 = vld [vmem:[#allocation0] sm:%s32]
    %s35 = sshll.u32 1, 2
    %s36 = ssub.s32 %s35, 1
    %37 = vst [vmem:[%s1] sm:%s36] %v34
    %s38 = scalar_lea.vmem [#allocation0], 8
    %v39 = vld [vmem:[%s38] sm:%s32]
    %s40 = sshll.u32 1, 2
    %s41 = ssub.s32 %s40, 1
    %s42 = scalar_lea.vmem %s1, 2
    %43 = vst [vmem:[%s42] sm:%s41] %v39
    %s44 = scalar_lea.vmem [#allocation0], 16
    %v45 = vld [vmem:[%s44] sm:%s32]
    %s46 = sshll.u32 1, 2
    %s47 = ssub.s32 %s46, 1
    %s48 = smul.addr 2, 2
    %s49 = scalar_lea.vmem %s1, %s48
    %50 = vst [vmem:[%s49] sm:%s47] %v45
    %s51 = scalar_lea.vmem [#allocation0], 24
    %v52 = vld [vmem:[%s51] sm:%s32]
    %s53 = sshll.u32 1, 2
    %s54 = ssub.s32 %s53, 1
    %s55 = smul.addr 2, 3
    %s56 = scalar_lea.vmem %s1, %s55
    %57 = vst [vmem:[%s56] sm:%s54] %v52
    %s58 = scalar_lea.vmem [#allocation0], 32
    %v59 = vld [vmem:[%s58] sm:%s32]
    %s60 = sshll.u32 1, 2
    %s61 = ssub.s32 %s60, 1
    %s62 = smul.addr 2, 4
    %s63 = scalar_lea.vmem %s1, %s62
    %64 = vst [vmem:[%s63] sm:%s61] %v59
    %s65 = scalar_lea.vmem [#allocation0], 40
    %v66 = vld [vmem:[%s65] sm:%s32]
    %s67 = sshll.u32 1, 2
    %s68 = ssub.s32 %s67, 1
    %s69 = smul.addr 2, 5
    %s70 = scalar_lea.vmem %s1, %s69
    %71 = vst [vmem:[%s70] sm:%s68] %v66
    %s72 = scalar_lea.vmem [#allocation0], 48
    %v73 = vld [vmem:[%s72] sm:%s32]
    %s74 = sshll.u32 1, 2
    %s75 = ssub.s32 %s74, 1
    %s76 = smul.addr 2, 6
    %s77 = scalar_lea.vmem %s1, %s76
    %78 = vst [vmem:[%s77] sm:%s75] %v73
    %s79 = scalar_lea.vmem [#allocation0], 56
    %v80 = vld [vmem:[%s79] sm:%s32]
    %s81 = sshll.u32 1, 2
    %s82 = ssub.s32 %s81, 1
    %s83 = smul.addr 2, 7
    %s84 = scalar_lea.vmem %s1, %s83
    %85 = vst [vmem:[%s84] sm:%s82] %v80
    %s86 = scalar_lea.vmem [#allocation0], 64
    %v87 = vld [vmem:[%s86] sm:%s32]
    %s88 = sshll.u32 1, 2
    %s89 = ssub.s32 %s88, 1
    %s90 = smul.addr 2, 8
    %s91 = scalar_lea.vmem %s1, %s90
    %92 = vst [vmem:[%s91] sm:%s89] %v87
    %s93 = scalar_lea.vmem [#allocation0], 72
    %v94 = vld [vmem:[%s93] sm:%s32]
    %s95 = sshll.u32 1, 2
    %s96 = ssub.s32 %s95, 1
    %s97 = smul.addr 2, 9
    %s98 = scalar_lea.vmem %s1, %s97
    %99 = vst [vmem:[%s98] sm:%s96] %v94
    %s100 = scalar_lea.vmem [#allocation0], 80
    %v101 = vld [vmem:[%s100] sm:%s32]
    %s102 = sshll.u32 1, 2
    %s103 = ssub.s32 %s102, 1
    %s104 = smul.addr 2, 10
    %s105 = scalar_lea.vmem %s1, %s104
    %106 = vst [vmem:[%s105] sm:%s103] %v101
    %s107 = scalar_lea.vmem [#allocation0], 88
    %v108 = vld [vmem:[%s107] sm:%s32]
    %s109 = sshll.u32 1, 2
    %s110 = ssub.s32 %s109, 1
    %s111 = smul.addr 2, 11
    %s112 = scalar_lea.vmem %s1, %s111
    %113 = vst [vmem:[%s112] sm:%s110] %v108
    %s114 = scalar_lea.vmem [#allocation0], 96
    %v115 = vld [vmem:[%s114] sm:%s32]
    %s116 = sshll.u32 1, 2
    %s117 = ssub.s32 %s116, 1
    %s118 = smul.addr 2, 12
    %s119 = scalar_lea.vmem %s1, %s118
    %120 = vst [vmem:[%s119] sm:%s117] %v115
    %s121 = scalar_lea.vmem [#allocation0], 104
    %v122 = vld [vmem:[%s121] sm:%s32]
    %s123 = sshll.u32 1, 2
    %s124 = ssub.s32 %s123, 1
    %s125 = smul.addr 2, 13
    %s126 = scalar_lea.vmem %s1, %s125
    %127 = vst [vmem:[%s126] sm:%s124] %v122
    %s128 = scalar_lea.vmem [#allocation0], 112
    %v129 = vld [vmem:[%s128] sm:%s32]
    %s130 = sshll.u32 1, 2
    %s131 = ssub.s32 %s130, 1
    %s132 = smul.addr 2, 14
    %s133 = scalar_lea.vmem %s1, %s132
    %134 = vst [vmem:[%s133] sm:%s131] %v129
    %s135 = scalar_lea.vmem [#allocation0], 120
    %v136 = vld [vmem:[%s135] sm:%s32]
    %s137 = sshll.u32 1, 2
    %s138 = ssub.s32 %s137, 1
    %s139 = smul.addr 2, 15
    %s140 = scalar_lea.vmem %s1, %s139
    %141 = vst [vmem:[%s140] sm:%s138] %v136

// kernel: forward.4
$region0: #{forward.4}
  #allocation0 [shape = 'u32[]', space=smem, size = 0x4, offset = 0x4, fixed_abs, tag = 'smem constant byte address 0x4 - core index']
  #allocation1 [shape = 'u32[144,128]{1,0:T(1,128)}', space=vmem, size = 0x12000, scoped, tag = 'internal scratch']
  #allocation2 [shape = 'f32[1]{0:T(128)S(6)}', space=smem, size = 0x200, scoped, tag = 'scoped memory for forward.4']
  %s0 = inlined_call_operand.<no memory space> [shape: f32[1], index: 0, kind: input, shape index: {}]
  %s1 = inlined_call_operand.vmem [shape: f32[64,250], index: 1, kind: input, shape index: {}]
  %s2 = inlined_call_operand.vmem [shape: f32[250,128], index: 2, kind: input, shape index: {}]
  %s3 = inlined_call_operand.vmem [shape: f32[1,128], index: 3, kind: input, shape index: {}]
  %s4 = inlined_call_operand.vmem [shape: f32[128,128], index: 4, kind: input, shape index: {}]
  %s5 = inlined_call_operand.vmem [shape: f32[1,128], index: 5, kind: input, shape index: {}]
  %s6 = inlined_call_operand.vmem [shape: f32[128,250], index: 6, kind: input, shape index: {}]
  %s7 = inlined_call_operand.vmem [shape: f32[1,250], index: 7, kind: input, shape index: {}]
  %s8 = inlined_call_operand.vmem [shape: f32[64,250], index: 8, kind: output, shape index: {}]
  %s9 = sld [smem:[#allocation0]]
  $region42: #{forward.4} parent=0
    _
  %s11 = ssub.s32 1, %s9
  %s12 = scalar_select 0, %s11, %s9
  %13 = sst [smem:[#allocation2]] %s0
  // Predicated region
  $region2: #{forward.4} parent=0 // pred_check
    _
  $region3: #{forward.4} parent=0 // pred_check_branch
    %15 = sbr.rel (0) target = $region5
  $region4: #{forward.4} parent=0 // pred_region
    _
  $region5: #{forward.4} parent=0 // pred_fallthru
    _
  // Predicated region
  $region6: #{forward.4} parent=0 // pred_check
    _
  $region7: #{forward.4} parent=0 // pred_check_branch
    %17 = sbr.rel (0) target = $region9
  $region8: #{forward.4} parent=0 // pred_region
    _
  $region9: #{forward.4} parent=0 // pred_fallthru
    _
  // Predicated region
  $region10: #{forward.4} parent=0 // pred_check
    _
  $region11: #{forward.4} parent=0 // pred_check_branch
    %19 = sbr.rel (0) target = $region13
  $region12: #{forward.4} parent=0 // pred_region
    _
  $region13: #{forward.4} parent=0 // pred_fallthru
    _
  // Predicated region
  $region14: #{forward.4} parent=0 // pred_check
    _
  $region15: #{forward.4} parent=0 // pred_check_branch
    %21 = sbr.rel (0) target = $region17
  $region16: #{forward.4} parent=0 // pred_region
    _
  $region17: #{forward.4} parent=0 // pred_fallthru
    _
  // Predicated region
  $region18: #{forward.4} parent=0 // pred_check
    _
  $region19: #{forward.4} parent=0 // pred_check_branch
    %23 = sbr.rel (0) target = $region21
  $region20: #{forward.4} parent=0 // pred_region
    _
  $region21: #{forward.4} parent=0 // pred_fallthru
    _
  // Predicated region
  $region22: #{forward.4} parent=0 // pred_check
    _
  $region23: #{forward.4} parent=0 // pred_check_branch
    %25 = sbr.rel (0) target = $region25
  $region24: #{forward.4} parent=0 // pred_region
    _
  $region25: #{forward.4} parent=0 // pred_fallthru
    _
  // Predicated region
  $region26: #{forward.4} parent=0 // pred_check
    _
  $region27: #{forward.4} parent=0 // pred_check_branch
    %27 = sbr.rel (0) target = $region29
  $region28: #{forward.4} parent=0 // pred_region
    _
  $region29: #{forward.4} parent=0 // pred_fallthru
    _
  // Predicated region
  $region30: #{forward.4} parent=0 // pred_check
    _
  $region31: #{forward.4} parent=0 // pred_check_branch
    %29 = sbr.rel (0) target = $region33
  $region32: #{forward.4} parent=0 // pred_region
    _
  $region33: #{forward.4} parent=0 // pred_fallthru
    _
  %v30 = vld [vmem:[%s1] sm:$0xff]
  %v31 = vld [vmem:[%s1 + $0x8] sm:$0xff]
  %v32 = vld [vmem:[%s1 + $0x10] sm:$0xff]
  %v33 = vld [vmem:[%s1 + $0x18] sm:$0xff]
  %v34 = vld [vmem:[%s1 + $0x20] sm:$0xff]
  %v35 = vld [vmem:[%s1 + $0x28] sm:$0xff]
  %v36 = vld [vmem:[%s1 + $0x30] sm:$0xff]
  %v37 = vld [vmem:[%s1 + $0x38] sm:$0xff]
  %v38 = vld [vmem:[%s1 + $0x40] sm:$0xff]
  %v39 = vld [vmem:[%s1 + $0x48] sm:$0xff]
  %v40 = vld [vmem:[%s1 + $0x50] sm:$0xff]
  %v41 = vld [vmem:[%s1 + $0x58] sm:$0xff]
  %v42 = vld [vmem:[%s1 + $0x60] sm:$0xff]
  %v43 = vld [vmem:[%s1 + $0x68] sm:$0xff]
  %v44 = vld [vmem:[%s1 + $0x70] sm:$0xff]
  %v45 = vld [vmem:[%s1 + $0x78] sm:$0xff]
  %v46 = vld [vmem:[%s2] sm:$0xff]
  %v47 = vld [vmem:[%s2 + $0x8] sm:$0xff]
  %v48 = vld [vmem:[%s2 + $0x10] sm:$0xff]
  %v49 = vld [vmem:[%s2 + $0x18] sm:$0xff]
  %v50 = vld [vmem:[%s2 + $0x20] sm:$0xff]
  %v51 = vld [vmem:[%s2 + $0x28] sm:$0xff]
  %v52 = vld [vmem:[%s2 + $0x30] sm:$0xff]
  %v53 = vld [vmem:[%s2 + $0x38] sm:$0xff]
  %v54 = vld [vmem:[%s2 + $0x40] sm:$0xff]
  %v55 = vld [vmem:[%s2 + $0x48] sm:$0xff]
  %v56 = vld [vmem:[%s2 + $0x50] sm:$0xff]
  %v57 = vld [vmem:[%s2 + $0x58] sm:$0xff]
  %v58 = vld [vmem:[%s2 + $0x60] sm:$0xff]
  %v59 = vld [vmem:[%s2 + $0x68] sm:$0xff]
  %v60 = vld [vmem:[%s2 + $0x70] sm:$0xff]
  %v61 = vld [vmem:[%s2 + $0x78] sm:$0xff]
  %v62 = vld [vmem:[%s2 + $0x80] sm:$0xff]
  %v63 = vld [vmem:[%s2 + $0x88] sm:$0xff]
  %v64 = vld [vmem:[%s2 + $0x90] sm:$0xff]
  %v65 = vld [vmem:[%s2 + $0x98] sm:$0xff]
  %v66 = vld [vmem:[%s2 + $0xa0] sm:$0xff]
  %v67 = vld [vmem:[%s2 + $0xa8] sm:$0xff]
  %v68 = vld [vmem:[%s2 + $0xb0] sm:$0xff]
  %v69 = vld [vmem:[%s2 + $0xb8] sm:$0xff]
  %v70 = vld [vmem:[%s2 + $0xc0] sm:$0xff]
  %v71 = vld [vmem:[%s2 + $0xc8] sm:$0xff]
  %v72 = vld [vmem:[%s2 + $0xd0] sm:$0xff]
  %v73 = vld [vmem:[%s2 + $0xd8] sm:$0xff]
  %v74 = vld [vmem:[%s2 + $0xe0] sm:$0xff]
  %v75 = vld [vmem:[%s2 + $0xe8] sm:$0xff]
  %v76 = vld [vmem:[%s2 + $0xf0] sm:$0xff]
  %v77 = vld [vmem:[%s2 + $0xf8] sm:$0x3]
  %v78 = vld [vmem:[%s3] sm:$0x1]
  %v80 = vlaneseq
  %v81 = vshrl.u32 %v80, 7
  %v82 = vsub.s32 0, %v81
  %v83 = vrot.slane %v78, %v82
  %vm85 = vcmask 998400
  %v87 = vsel %vm85, %v31, 0
  %v90 = vsel %vm85, %v33, 0
  %v93 = vsel %vm85, %v35, 0
  %v96 = vsel %vm85, %v37, 0
  %v99 = vsel %vm85, %v39, 0
  %v102 = vsel %vm85, %v41, 0
  %v105 = vsel %vm85, %v43, 0
  %v108 = vsel %vm85, %v45, 0
  %vm110 = vcmask 1041408
  %v112 = vsel %vm110, %v77, 0
  %114 = vmatprep.subr.mxu0 0.0
  %115 = vmatpush1.msra.mxu0 %v61
  %116 = vmatprep.subr.mxu0 0.0
  %117 = vmatpush1.msra.mxu0 %v60
  %118 = vmatprep.subr.mxu0 0.0
  %119 = vmatpush1.msra.mxu0 %v59
  %120 = vmatprep.subr.mxu0 0.0
  %121 = vmatpush1.msra.mxu0 %v58
  %122 = vmatprep.subr.mxu0 0.0
  %123 = vmatpush1.msra.mxu0 %v57
  %124 = vmatprep.subr.mxu0 0.0
  %125 = vmatpush1.msra.mxu0 %v56
  %126 = vmatprep.subr.mxu0 0.0
  %127 = vmatpush1.msra.mxu0 %v55
  %128 = vmatprep.subr.mxu0 0.0
  %129 = vmatpush1.msra.mxu0 %v54
  %130 = vmatprep.subr.mxu0 0.0
  %131 = vmatpush1.msra.mxu0 %v53
  %132 = vmatprep.subr.mxu0 0.0
  %133 = vmatpush1.msra.mxu0 %v52
  %134 = vmatprep.subr.mxu0 0.0
  %135 = vmatpush1.msra.mxu0 %v51
  %136 = vmatprep.subr.mxu0 0.0
  %137 = vmatpush1.msra.mxu0 %v50
  %138 = vmatprep.subr.mxu0 0.0
  %139 = vmatpush1.msra.mxu0 %v49
  %140 = vmatprep.subr.mxu0 0.0
  %141 = vmatpush1.msra.mxu0 %v48
  %142 = vmatprep.subr.mxu0 0.0
  %143 = vmatpush1.msra.mxu0 %v47
  %144 = vmatprep.subr.mxu0 0.0
  %145 = vmatpush1.msra.mxu0 %v46
  %146 = vmatprep.subr.mxu0 0.0
  %147 = vmatpush2.msra.mxu0 %v112
  %148 = vmatprep.subr.mxu0 0.0
  %149 = vmatpush2.msra.mxu0 %v76
  %150 = vmatprep.subr.mxu0 0.0
  %151 = vmatpush2.msra.mxu0 %v75
  %152 = vmatprep.subr.mxu0 0.0
  %153 = vmatpush2.msra.mxu0 %v74
  %154 = vmatprep.subr.mxu0 0.0
  %155 = vmatpush2.msra.mxu0 %v73
  %156 = vmatprep.subr.mxu0 0.0
  %157 = vmatpush2.msra.mxu0 %v72
  %158 = vmatprep.subr.mxu0 0.0
  %159 = vmatpush2.msra.mxu0 %v71
  %160 = vmatprep.subr.mxu0 0.0
  %161 = vmatpush2.msra.mxu0 %v70
  %162 = vmatprep.subr.mxu0 0.0
  %163 = vmatpush2.msra.mxu0 %v69
  %164 = vmatprep.subr.mxu0 0.0
  %165 = vmatpush2.msra.mxu0 %v68
  %166 = vmatprep.subr.mxu0 0.0
  %167 = vmatpush2.msra.mxu0 %v67
  %168 = vmatprep.subr.mxu0 0.0
  %169 = vmatpush2.msra.mxu0 %v66
  %170 = vmatprep.subr.mxu0 0.0
  %171 = vmatpush2.msra.mxu0 %v65
  %172 = vmatprep.subr.mxu0 0.0
  %173 = vmatpush2.msra.mxu0 %v64
  %174 = vmatprep.subr.mxu0 0.0
  %175 = vmatpush2.msra.mxu0 %v63
  %176 = vmatprep.subr.mxu0 0.0
  %177 = vmatpush2.msra.mxu0 %v62
  %178 = vmatprep.mubr.f32.mxu0 %v87
  %179 = vmatmul.mubr.f32.gmra.mxu0 %v30
  %v180 = vpop.f32.mrf.mxu0
  %v181 = vadd.f32 %v83, %v180
  %v182 = vpop.f32.mrf.mxu0
  %183 = vmatprep.mubr.f32.mxu0 %v90
  %184 = vmatmul.mubr.f32.gmra.mxu0 %v32
  %v185 = vpop.f32.mrf.mxu0
  %v186 = vadd.f32 %v83, %v185
  %v187 = vpop.f32.mrf.mxu0
  %188 = vmatprep.mubr.f32.mxu0 %v93
  %189 = vmatmul.mubr.f32.gmra.mxu0 %v34
  %v190 = vpop.f32.mrf.mxu0
  %v191 = vadd.f32 %v83, %v190
  %v192 = vpop.f32.mrf.mxu0
  %193 = vmatprep.mubr.f32.mxu0 %v96
  %194 = vmatmul.mubr.f32.gmra.mxu0 %v36
  %v195 = vpop.f32.mrf.mxu0
  %v196 = vadd.f32 %v83, %v195
  %v197 = vpop.f32.mrf.mxu0
  %198 = vmatprep.mubr.f32.mxu0 %v99
  %199 = vmatmul.mubr.f32.gmra.mxu0 %v38
  %v200 = vpop.f32.mrf.mxu0
  %v201 = vadd.f32 %v83, %v200
  %v202 = vpop.f32.mrf.mxu0
  %203 = vmatprep.mubr.f32.mxu0 %v102
  %204 = vmatmul.mubr.f32.gmra.mxu0 %v40
  %v205 = vpop.f32.mrf.mxu0
  %v206 = vadd.f32 %v83, %v205
  %v207 = vpop.f32.mrf.mxu0
  %208 = vmatprep.mubr.f32.mxu0 %v105
  %209 = vmatmul.mubr.f32.gmra.mxu0 %v42
  %v210 = vpop.f32.mrf.mxu0
  %v211 = vadd.f32 %v83, %v210
  %v212 = vpop.f32.mrf.mxu0
  %213 = vmatprep.mubr.f32.mxu0 %v108
  %214 = vmatmul.mubr.f32.gmra.mxu0 %v44
  %v215 = vpop.f32.mrf.mxu0
  %v216 = vadd.f32 %v83, %v215
  %v217 = vpop.f32.mrf.mxu0
  %218 = vdwg.mxu0
  %v219 = vmax.f32 %v181, 0.0
  %v220 = vmax.f32 %v186, 0.0
  %v221 = vmax.f32 %v191, 0.0
  %v222 = vmax.f32 %v196, 0.0
  %v223 = vmax.f32 %v201, 0.0
  %v224 = vmax.f32 %v206, 0.0
  %v225 = vmax.f32 %v211, 0.0
  %v226 = vmax.f32 %v216, 0.0
  %v227 = vld [vmem:[%s4] sm:$0xff]
  %v228 = vld [vmem:[%s4 + $0x8] sm:$0xff]
  %v229 = vld [vmem:[%s4 + $0x10] sm:$0xff]
  %v230 = vld [vmem:[%s4 + $0x18] sm:$0xff]
  %v231 = vld [vmem:[%s4 + $0x20] sm:$0xff]
  %v232 = vld [vmem:[%s4 + $0x28] sm:$0xff]
  %v233 = vld [vmem:[%s4 + $0x30] sm:$0xff]
  %v234 = vld [vmem:[%s4 + $0x38] sm:$0xff]
  %v235 = vld [vmem:[%s4 + $0x40] sm:$0xff]
  %v236 = vld [vmem:[%s4 + $0x48] sm:$0xff]
  %v237 = vld [vmem:[%s4 + $0x50] sm:$0xff]
  %v238 = vld [vmem:[%s4 + $0x58] sm:$0xff]
  %v239 = vld [vmem:[%s4 + $0x60] sm:$0xff]
  %v240 = vld [vmem:[%s4 + $0x68] sm:$0xff]
  %v241 = vld [vmem:[%s4 + $0x70] sm:$0xff]
  %v242 = vld [vmem:[%s4 + $0x78] sm:$0xff]
  %v243 = vld [vmem:[%s5] sm:$0x1]
  %v245 = vlaneseq
  %v246 = vshrl.u32 %v245, 7
  %v247 = vsub.s32 0, %v246
  %v248 = vrot.slane %v243, %v247
  %250 = vmatprep.subr.mxu0 0.0
  %251 = vmatpush1.msra.mxu0 %v242
  %252 = vmatprep.subr.mxu0 0.0
  %253 = vmatpush1.msra.mxu0 %v241
  %254 = vmatprep.subr.mxu0 0.0
  %255 = vmatpush1.msra.mxu0 %v240
  %256 = vmatprep.subr.mxu0 0.0
  %257 = vmatpush1.msra.mxu0 %v239
  %258 = vmatprep.subr.mxu0 0.0
  %259 = vmatpush1.msra.mxu0 %v238
  %260 = vmatprep.subr.mxu0 0.0
  %261 = vmatpush1.msra.mxu0 %v237
  %262 = vmatprep.subr.mxu0 0.0
  %263 = vmatpush1.msra.mxu0 %v236
  %264 = vmatprep.subr.mxu0 0.0
  %265 = vmatpush1.msra.mxu0 %v235
  %266 = vmatprep.subr.mxu0 0.0
  %267 = vmatpush1.msra.mxu0 %v234
  %268 = vmatprep.subr.mxu0 0.0
  %269 = vmatpush1.msra.mxu0 %v233
  %270 = vmatprep.subr.mxu0 0.0
  %271 = vmatpush1.msra.mxu0 %v232
  %272 = vmatprep.subr.mxu0 0.0
  %273 = vmatpush1.msra.mxu0 %v231
  %274 = vmatprep.subr.mxu0 0.0
  %275 = vmatpush1.msra.mxu0 %v230
  %276 = vmatprep.subr.mxu0 0.0
  %277 = vmatpush1.msra.mxu0 %v229
  %278 = vmatprep.subr.mxu0 0.0
  %279 = vmatpush1.msra.mxu0 %v228
  %280 = vmatprep.subr.mxu0 0.0
  %281 = vmatpush1.msra.mxu0 %v227
  %282 = vmatprep.subr.mxu0 0.0
  %283 = vmatpush2.msra.mxu0 0.0
  %284 = vmatprep.subr.mxu0 0.0
  %285 = vmatpush2.msra.mxu0 0.0
  %286 = vmatprep.subr.mxu0 0.0
  %287 = vmatpush2.msra.mxu0 0.0
  %288 = vmatprep.subr.mxu0 0.0
  %289 = vmatpush2.msra.mxu0 0.0
  %290 = vmatprep.subr.mxu0 0.0
  %291 = vmatpush2.msra.mxu0 0.0
  %292 = vmatprep.subr.mxu0 0.0
  %293 = vmatpush2.msra.mxu0 0.0
  %294 = vmatprep.subr.mxu0 0.0
  %295 = vmatpush2.msra.mxu0 0.0
  %296 = vmatprep.subr.mxu0 0.0
  %297 = vmatpush2.msra.mxu0 0.0
  %298 = vmatprep.subr.mxu0 0.0
  %299 = vmatpush2.msra.mxu0 0.0
  %300 = vmatprep.subr.mxu0 0.0
  %301 = vmatpush2.msra.mxu0 0.0
  %302 = vmatprep.subr.mxu0 0.0
  %303 = vmatpush2.msra.mxu0 0.0
  %304 = vmatprep.subr.mxu0 0.0
  %305 = vmatpush2.msra.mxu0 0.0
  %306 = vmatprep.subr.mxu0 0.0
  %307 = vmatpush2.msra.mxu0 0.0
  %308 = vmatprep.subr.mxu0 0.0
  %309 = vmatpush2.msra.mxu0 0.0
  %310 = vmatprep.subr.mxu0 0.0
  %311 = vmatpush2.msra.mxu0 0.0
  %312 = vmatprep.subr.mxu0 0.0
  %313 = vmatpush2.msra.mxu0 0.0
  %314 = vmatprep.mubr.f32.mxu0 0.0
  %315 = vmatmul.mubr.f32.gmra.mxu0 %v219
  %v316 = vpop.f32.mrf.mxu0
  %v317 = vadd.f32 %v248, %v316
  %v318 = vpop.f32.mrf.mxu0
  %319 = vmatprep.mubr.f32.mxu0 0.0
  %320 = vmatmul.mubr.f32.gmra.mxu0 %v220
  %v321 = vpop.f32.mrf.mxu0
  %v322 = vadd.f32 %v248, %v321
  %v323 = vpop.f32.mrf.mxu0
  %324 = vmatprep.mubr.f32.mxu0 0.0
  %325 = vmatmul.mubr.f32.gmra.mxu0 %v221
  %v326 = vpop.f32.mrf.mxu0
  %v327 = vadd.f32 %v248, %v326
  %v328 = vpop.f32.mrf.mxu0
  %329 = vmatprep.mubr.f32.mxu0 0.0
  %330 = vmatmul.mubr.f32.gmra.mxu0 %v222
  %v331 = vpop.f32.mrf.mxu0
  %v332 = vadd.f32 %v248, %v331
  %v333 = vpop.f32.mrf.mxu0
  %334 = vmatprep.mubr.f32.mxu0 0.0
  %335 = vmatmul.mubr.f32.gmra.mxu0 %v223
  %v336 = vpop.f32.mrf.mxu0
  %v337 = vadd.f32 %v248, %v336
  %v338 = vpop.f32.mrf.mxu0
  %339 = vmatprep.mubr.f32.mxu0 0.0
  %340 = vmatmul.mubr.f32.gmra.mxu0 %v224
  %v341 = vpop.f32.mrf.mxu0
  %v342 = vadd.f32 %v248, %v341
  %v343 = vpop.f32.mrf.mxu0
  %344 = vmatprep.mubr.f32.mxu0 0.0
  %345 = vmatmul.mubr.f32.gmra.mxu0 %v225
  %v346 = vpop.f32.mrf.mxu0
  %v347 = vadd.f32 %v248, %v346
  %v348 = vpop.f32.mrf.mxu0
  %349 = vmatprep.mubr.f32.mxu0 0.0
  %350 = vmatmul.mubr.f32.gmra.mxu0 %v226
  %v351 = vpop.f32.mrf.mxu0
  %v352 = vadd.f32 %v248, %v351
  %v353 = vpop.f32.mrf.mxu0
  %354 = vdwg.mxu0
  %v355 = vmax.f32 %v317, 0.0
  %v356 = vmax.f32 %v322, 0.0
  %v357 = vmax.f32 %v327, 0.0
  %v358 = vmax.f32 %v332, 0.0
  %v359 = vmax.f32 %v337, 0.0
  %v360 = vmax.f32 %v342, 0.0
  %v361 = vmax.f32 %v347, 0.0
  %v362 = vmax.f32 %v352, 0.0
  %v363 = vld [vmem:[%s6] sm:$0xff]
  %v364 = vld [vmem:[%s6 + $0x8] sm:$0xff]
  %v365 = vld [vmem:[%s6 + $0x10] sm:$0xff]
  %v366 = vld [vmem:[%s6 + $0x18] sm:$0xff]
  %v367 = vld [vmem:[%s6 + $0x20] sm:$0xff]
  %v368 = vld [vmem:[%s6 + $0x28] sm:$0xff]
  %v369 = vld [vmem:[%s6 + $0x30] sm:$0xff]
  %v370 = vld [vmem:[%s6 + $0x38] sm:$0xff]
  %v371 = vld [vmem:[%s6 + $0x40] sm:$0xff]
  %v372 = vld [vmem:[%s6 + $0x48] sm:$0xff]
  %v373 = vld [vmem:[%s6 + $0x50] sm:$0xff]
  %v374 = vld [vmem:[%s6 + $0x58] sm:$0xff]
  %v375 = vld [vmem:[%s6 + $0x60] sm:$0xff]
  %v376 = vld [vmem:[%s6 + $0x68] sm:$0xff]
  %v377 = vld [vmem:[%s6 + $0x70] sm:$0xff]
  %v378 = vld [vmem:[%s6 + $0x78] sm:$0xff]
  %v379 = vld [vmem:[%s6 + $0x80] sm:$0xff]
  %v380 = vld [vmem:[%s6 + $0x88] sm:$0xff]
  %v381 = vld [vmem:[%s6 + $0x90] sm:$0xff]
  %v382 = vld [vmem:[%s6 + $0x98] sm:$0xff]
  %v383 = vld [vmem:[%s6 + $0xa0] sm:$0xff]
  %v384 = vld [vmem:[%s6 + $0xa8] sm:$0xff]
  %v385 = vld [vmem:[%s6 + $0xb0] sm:$0xff]
  %v386 = vld [vmem:[%s6 + $0xb8] sm:$0xff]
  %v387 = vld [vmem:[%s6 + $0xc0] sm:$0xff]
  %v388 = vld [vmem:[%s6 + $0xc8] sm:$0xff]
  %v389 = vld [vmem:[%s6 + $0xd0] sm:$0xff]
  %v390 = vld [vmem:[%s6 + $0xd8] sm:$0xff]
  %v391 = vld [vmem:[%s6 + $0xe0] sm:$0xff]
  %v392 = vld [vmem:[%s6 + $0xe8] sm:$0xff]
  %v393 = vld [vmem:[%s6 + $0xf0] sm:$0xff]
  %v394 = vld [vmem:[%s6 + $0xf8] sm:$0xff]
  %v395 = vld [vmem:[%s7] sm:$0x3]
  %v397 = vlaneseq
  %v398 = vshrl.u32 %v397, 7
  %v399 = vsub.s32 0, %v398
  %v400 = vrot.slane %v395, %v399
  %v401 = vlaneseq
  %v402 = vshrl.u32 %v401, 7
  %v403 = vsub.s32 1, %v402
  %v404 = vrot.slane %v395, %v403
  %407 = vmatprep.subr.mxu0 %v394
  %408 = vmatpush1.msra.mxu0 %v393
  %409 = vmatprep.subr.mxu0 %v392
  %410 = vmatpush1.msra.mxu0 %v391
  %411 = vmatprep.subr.mxu0 %v390
  %412 = vmatpush1.msra.mxu0 %v389
  %413 = vmatprep.subr.mxu0 %v388
  %414 = vmatpush1.msra.mxu0 %v387
  %415 = vmatprep.subr.mxu0 %v386
  %416 = vmatpush1.msra.mxu0 %v385
  %417 = vmatprep.subr.mxu0 %v384
  %418 = vmatpush1.msra.mxu0 %v383
  %419 = vmatprep.subr.mxu0 %v382
  %420 = vmatpush1.msra.mxu0 %v381
  %421 = vmatprep.subr.mxu0 %v380
  %422 = vmatpush1.msra.mxu0 %v379
  %423 = vmatprep.subr.mxu0 %v378
  %424 = vmatpush1.msra.mxu0 %v377
  %425 = vmatprep.subr.mxu0 %v376
  %426 = vmatpush1.msra.mxu0 %v375
  %427 = vmatprep.subr.mxu0 %v374
  %428 = vmatpush1.msra.mxu0 %v373
  %429 = vmatprep.subr.mxu0 %v372
  %430 = vmatpush1.msra.mxu0 %v371
  %431 = vmatprep.subr.mxu0 %v370
  %432 = vmatpush1.msra.mxu0 %v369
  %433 = vmatprep.subr.mxu0 %v368
  %434 = vmatpush1.msra.mxu0 %v367
  %435 = vmatprep.subr.mxu0 %v366
  %436 = vmatpush1.msra.mxu0 %v365
  %437 = vmatprep.subr.mxu0 %v364
  %438 = vmatpush1.msra.mxu0 %v363
  %439 = vmatprep.subr.mxu0 0.0
  %440 = vmatpush2.msra.mxu0 0.0
  %441 = vmatprep.subr.mxu0 0.0
  %442 = vmatpush2.msra.mxu0 0.0
  %443 = vmatprep.subr.mxu0 0.0
  %444 = vmatpush2.msra.mxu0 0.0
  %445 = vmatprep.subr.mxu0 0.0
  %446 = vmatpush2.msra.mxu0 0.0
  %447 = vmatprep.subr.mxu0 0.0
  %448 = vmatpush2.msra.mxu0 0.0
  %449 = vmatprep.subr.mxu0 0.0
  %450 = vmatpush2.msra.mxu0 0.0
  %451 = vmatprep.subr.mxu0 0.0
  %452 = vmatpush2.msra.mxu0 0.0
  %453 = vmatprep.subr.mxu0 0.0
  %454 = vmatpush2.msra.mxu0 0.0
  %455 = vmatprep.subr.mxu0 0.0
  %456 = vmatpush2.msra.mxu0 0.0
  %457 = vmatprep.subr.mxu0 0.0
  %458 = vmatpush2.msra.mxu0 0.0
  %459 = vmatprep.subr.mxu0 0.0
  %460 = vmatpush2.msra.mxu0 0.0
  %461 = vmatprep.subr.mxu0 0.0
  %462 = vmatpush2.msra.mxu0 0.0
  %463 = vmatprep.subr.mxu0 0.0
  %464 = vmatpush2.msra.mxu0 0.0
  %465 = vmatprep.subr.mxu0 0.0
  %466 = vmatpush2.msra.mxu0 0.0
  %467 = vmatprep.subr.mxu0 0.0
  %468 = vmatpush2.msra.mxu0 0.0
  %469 = vmatprep.subr.mxu0 0.0
  %470 = vmatpush2.msra.mxu0 0.0
  %471 = vmatprep.mubr.f32.mxu0 0.0
  %472 = vmatmul.mubr.f32.gmra.mxu0 %v355
  %v473 = vpop.f32.mrf.mxu0
  %v474 = vadd.f32 %v400, %v473
  %v475 = vpop.f32.mrf.mxu0
  %v476 = vadd.f32 %v404, %v475
  %477 = vmatprep.mubr.f32.mxu0 0.0
  %478 = vmatmul.mubr.f32.gmra.mxu0 %v356
  %v479 = vpop.f32.mrf.mxu0
  %v480 = vadd.f32 %v400, %v479
  %v481 = vpop.f32.mrf.mxu0
  %v482 = vadd.f32 %v404, %v481
  %483 = vmatprep.mubr.f32.mxu0 0.0
  %484 = vmatmul.mubr.f32.gmra.mxu0 %v357
  %v485 = vpop.f32.mrf.mxu0
  %v486 = vadd.f32 %v400, %v485
  %v487 = vpop.f32.mrf.mxu0
  %v488 = vadd.f32 %v404, %v487
  %489 = vmatprep.mubr.f32.mxu0 0.0
  %490 = vmatmul.mubr.f32.gmra.mxu0 %v358
  %v491 = vpop.f32.mrf.mxu0
  %v492 = vadd.f32 %v400, %v491
  %v493 = vpop.f32.mrf.mxu0
  %v494 = vadd.f32 %v404, %v493
  %495 = vmatprep.mubr.f32.mxu0 0.0
  %496 = vmatmul.mubr.f32.gmra.mxu0 %v359
  %v497 = vpop.f32.mrf.mxu0
  %v498 = vadd.f32 %v400, %v497
  %v499 = vpop.f32.mrf.mxu0
  %v500 = vadd.f32 %v404, %v499
  %501 = vmatprep.mubr.f32.mxu0 0.0
  %502 = vmatmul.mubr.f32.gmra.mxu0 %v360
  %v503 = vpop.f32.mrf.mxu0
  %v504 = vadd.f32 %v400, %v503
  %v505 = vpop.f32.mrf.mxu0
  %v506 = vadd.f32 %v404, %v505
  %507 = vmatprep.mubr.f32.mxu0 0.0
  %508 = vmatmul.mubr.f32.gmra.mxu0 %v361
  %v509 = vpop.f32.mrf.mxu0
  %v510 = vadd.f32 %v400, %v509
  %v511 = vpop.f32.mrf.mxu0
  %v512 = vadd.f32 %v404, %v511
  %513 = vmatprep.mubr.f32.mxu0 0.0
  %514 = vmatmul.mubr.f32.gmra.mxu0 %v362
  %v515 = vpop.f32.mrf.mxu0
  %v516 = vadd.f32 %v400, %v515
  %v517 = vpop.f32.mrf.mxu0
  %v518 = vadd.f32 %v404, %v517
  %519 = vdwg.mxu0
  %s520 = sld [smem:[#allocation2]]
  %vm521 = vcmp.ge.f32.partialorder %v474, 0.0
  %vm522 = vcmp.ge.f32.partialorder %v476, 0.0
  %vm523 = vcmp.ge.f32.partialorder %v480, 0.0
  %vm524 = vcmp.ge.f32.partialorder %v482, 0.0
  %vm525 = vcmp.ge.f32.partialorder %v486, 0.0
  %vm526 = vcmp.ge.f32.partialorder %v488, 0.0
  %vm527 = vcmp.ge.f32.partialorder %v492, 0.0
  %vm528 = vcmp.ge.f32.partialorder %v494, 0.0
  %vm529 = vcmp.ge.f32.partialorder %v498, 0.0
  %vm530 = vcmp.ge.f32.partialorder %v500, 0.0
  %vm531 = vcmp.ge.f32.partialorder %v504, 0.0
  %vm532 = vcmp.ge.f32.partialorder %v506, 0.0
  %vm533 = vcmp.ge.f32.partialorder %v510, 0.0
  %vm534 = vcmp.ge.f32.partialorder %v512, 0.0
  %vm535 = vcmp.ge.f32.partialorder %v516, 0.0
  %vm536 = vcmp.ge.f32.partialorder %v518, 0.0
  %v537 = vstv %s520
  %v538 = vmul.f32 %v537, %v474
  %v539 = vmul.f32 %v537, %v476
  %v540 = vmul.f32 %v537, %v480
  %v541 = vmul.f32 %v537, %v482
  %v542 = vmul.f32 %v537, %v486
  %v543 = vmul.f32 %v537, %v488
  %v544 = vmul.f32 %v537, %v492
  %v545 = vmul.f32 %v537, %v494
  %v546 = vmul.f32 %v537, %v498
  %v547 = vmul.f32 %v537, %v500
  %v548 = vmul.f32 %v537, %v504
  %v549 = vmul.f32 %v537, %v506
  %v550 = vmul.f32 %v537, %v510
  %v551 = vmul.f32 %v537, %v512
  %v552 = vmul.f32 %v537, %v516
  %v553 = vmul.f32 %v537, %v518
  %v554 = vsel %vm521, %v474, %v538
  %v555 = vsel %vm522, %v476, %v539
  %v556 = vsel %vm523, %v480, %v540
  %v557 = vsel %vm524, %v482, %v541
  %v558 = vsel %vm525, %v486, %v542
  %v559 = vsel %vm526, %v488, %v543
  %v560 = vsel %vm527, %v492, %v544
  %v561 = vsel %vm528, %v494, %v545
  %v562 = vsel %vm529, %v498, %v546
  %v563 = vsel %vm530, %v500, %v547
  %v564 = vsel %vm531, %v504, %v548
  %v565 = vsel %vm532, %v506, %v549
  %v566 = vsel %vm533, %v510, %v550
  %v567 = vsel %vm534, %v512, %v551
  %v568 = vsel %vm535, %v516, %v552
  %v569 = vsel %vm536, %v518, %v553
  %570 = vst [vmem:[%s8] sm:$0xff] %v554
  %571 = vst.msk [vmem:[%s8 + $0x8] sm:$0xff] %vm85, %v555
  %572 = vst [vmem:[%s8 + $0x10] sm:$0xff] %v556
  %573 = vst.msk [vmem:[%s8 + $0x18] sm:$0xff] %vm85, %v557
  %574 = vst [vmem:[%s8 + $0x20] sm:$0xff] %v558
  %575 = vst.msk [vmem:[%s8 + $0x28] sm:$0xff] %vm85, %v559
  %576 = vst [vmem:[%s8 + $0x30] sm:$0xff] %v560
  %577 = vst.msk [vmem:[%s8 + $0x38] sm:$0xff] %vm85, %v561
  %578 = vst [vmem:[%s8 + $0x40] sm:$0xff] %v562
  %579 = vst.msk [vmem:[%s8 + $0x48] sm:$0xff] %vm85, %v563
  %580 = vst [vmem:[%s8 + $0x50] sm:$0xff] %v564
  %581 = vst.msk [vmem:[%s8 + $0x58] sm:$0xff] %vm85, %v565
  %582 = vst [vmem:[%s8 + $0x60] sm:$0xff] %v566
  %583 = vst.msk [vmem:[%s8 + $0x68] sm:$0xff] %vm85, %v567
  %584 = vst [vmem:[%s8 + $0x70] sm:$0xff] %v568
  %585 = vst.msk [vmem:[%s8 + $0x78] sm:$0xff] %vm85, %v569
  // Predicated region
  $region34: #{forward.4} parent=0 // pred_check
    _
  $region35: #{forward.4} parent=0 // pred_check_branch
    %587 = sbr.rel (0) target = $region37
  $region36: #{forward.4} parent=0 // pred_region
    _
  $region37: #{forward.4} parent=0 // pred_fallthru
    _
  // Predicated region
  $region38: #{forward.4} parent=0 // pred_check
    _
  $region39: #{forward.4} parent=0 // pred_check_branch
    %589 = sbr.rel (0) target = $region41
  $region40: #{forward.4} parent=0 // pred_region
    _
  $region41: #{forward.4} parent=0 // pred_fallthru
    _

// kernel: forward.3
$region0: #{forward.3}
  #allocation0 [shape = 'u32[]', space=smem, size = 0x4, offset = 0x4, fixed_abs, tag = 'smem constant byte address 0x4 - core index']
  #allocation1 [shape = 'u32[144,128]{1,0:T(1,128)}', space=vmem, size = 0x12000, scoped, tag = 'internal scratch']
  %s0 = inlined_call_operand.vmem [shape: f32[1,300,8], index: 0, kind: input, shape index: {}]
  %s1 = inlined_call_operand.vmem [shape: f32[1,8], index: 1, kind: input, shape index: {}]
  %s2 = inlined_call_operand.vmem [shape: f32[1,8], index: 2, kind: input, shape index: {}]
  %s3 = inlined_call_operand.vmem [shape: f32[8,16], index: 3, kind: input, shape index: {}]
  %s4 = inlined_call_operand.vmem [shape: f32[1,300,16], index: 4, kind: output, shape index: {}]
  %s5 = sld [smem:[#allocation0]]
  $region26: #{forward.3} parent=0
    _
  %s7 = ssub.s32 1, %s5
  %s8 = scalar_select 0, %s7, %s5
  // Predicated region
  $region2: #{forward.3} parent=0 // pred_check
    _
  $region3: #{forward.3} parent=0 // pred_check_branch
    %10 = sbr.rel (0) target = $region5
  $region4: #{forward.3} parent=0 // pred_region
    _
  $region5: #{forward.3} parent=0 // pred_fallthru
    _
  // Predicated region
  $region6: #{forward.3} parent=0 // pred_check
    _
  $region7: #{forward.3} parent=0 // pred_check_branch
    %12 = sbr.rel (0) target = $region9
  $region8: #{forward.3} parent=0 // pred_region
    _
  $region9: #{forward.3} parent=0 // pred_fallthru
    _
  // Predicated region
  $region10: #{forward.3} parent=0 // pred_check
    _
  $region11: #{forward.3} parent=0 // pred_check_branch
    %14 = sbr.rel (0) target = $region13
  $region12: #{forward.3} parent=0 // pred_region
    _
  $region13: #{forward.3} parent=0 // pred_fallthru
    _
  // Predicated region
  $region14: #{forward.3} parent=0 // pred_check
    _
  $region15: #{forward.3} parent=0 // pred_check_branch
    %16 = sbr.rel (0) target = $region17
  $region16: #{forward.3} parent=0 // pred_region
    _
  $region17: #{forward.3} parent=0 // pred_fallthru
    _
  %v17 = vld [vmem:[%s0] sm:$0xff]
  %v18 = vld [vmem:[%s0 + $0x8] sm:$0xff]
  %v19 = vld [vmem:[%s0 + $0x10] sm:$0xff]
  %v20 = vld [vmem:[%s0 + $0x18] sm:$0xff]
  %v21 = vld [vmem:[%s0 + $0x20] sm:$0xff]
  %v22 = vld [vmem:[%s0 + $0x28] sm:$0xff]
  %v23 = vld [vmem:[%s0 + $0x30] sm:$0xff]
  %v24 = vld [vmem:[%s0 + $0x38] sm:$0xff]
  %v25 = vld [vmem:[%s0 + $0x40] sm:$0xff]
  %v26 = vld [vmem:[%s0 + $0x48] sm:$0xff]
  %v27 = vld [vmem:[%s0 + $0x50] sm:$0xff]
  %v28 = vld [vmem:[%s0 + $0x58] sm:$0xff]
  %v29 = vld [vmem:[%s0 + $0x60] sm:$0xff]
  %v30 = vld [vmem:[%s0 + $0x68] sm:$0xff]
  %v31 = vld [vmem:[%s0 + $0x70] sm:$0xff]
  %v32 = vld [vmem:[%s0 + $0x78] sm:$0xff]
  %v33 = vld [vmem:[%s0 + $0x80] sm:$0xff]
  %v34 = vld [vmem:[%s0 + $0x88] sm:$0xff]
  %v35 = vld [vmem:[%s0 + $0x90] sm:$0xff]
  %v36 = vld [vmem:[%s0 + $0x98] sm:$0xff]
  %v37 = vld [vmem:[%s0 + $0xa0] sm:$0xff]
  %v38 = vld [vmem:[%s0 + $0xa8] sm:$0xff]
  %v39 = vld [vmem:[%s0 + $0xb0] sm:$0xff]
  %v40 = vld [vmem:[%s0 + $0xb8] sm:$0xff]
  %v41 = vld [vmem:[%s0 + $0xc0] sm:$0xff]
  %v42 = vld [vmem:[%s0 + $0xc8] sm:$0xff]
  %v43 = vld [vmem:[%s0 + $0xd0] sm:$0xff]
  %v44 = vld [vmem:[%s0 + $0xd8] sm:$0xff]
  %v45 = vld [vmem:[%s0 + $0xe0] sm:$0xff]
  %v46 = vld [vmem:[%s0 + $0xe8] sm:$0xff]
  %v47 = vld [vmem:[%s0 + $0xf0] sm:$0xff]
  %v48 = vld [vmem:[%s0 + $0xf8] sm:$0xff]
  %v49 = vld [vmem:[%s0 + $0x100] sm:$0xff]
  %v50 = vld [vmem:[%s0 + $0x108] sm:$0xff]
  %v51 = vld [vmem:[%s0 + $0x110] sm:$0xff]
  %v52 = vld [vmem:[%s0 + $0x118] sm:$0xff]
  %v53 = vld [vmem:[%s0 + $0x120] sm:$0xff]
  %v54 = vld [vmem:[%s0 + $0x128] sm:$0xf]
  %vm55 = vcmask 64512
  %v56 = vsel %vm55, %v17, 0.0
  %v57 = vsel %vm55, %v18, 0.0
  %v58 = vadd.f32 %v56, %v57
  %v59 = vsel %vm55, %v19, 0.0
  %v60 = vadd.f32 %v58, %v59
  %v61 = vsel %vm55, %v20, 0.0
  %v62 = vadd.f32 %v60, %v61
  %v63 = vsel %vm55, %v21, 0.0
  %v64 = vadd.f32 %v62, %v63
  %v65 = vsel %vm55, %v22, 0.0
  %v66 = vadd.f32 %v64, %v65
  %v67 = vsel %vm55, %v23, 0.0
  %v68 = vadd.f32 %v66, %v67
  %v69 = vsel %vm55, %v24, 0.0
  %v70 = vadd.f32 %v68, %v69
  %v71 = vsel %vm55, %v25, 0.0
  %v72 = vadd.f32 %v70, %v71
  %v73 = vsel %vm55, %v26, 0.0
  %v74 = vadd.f32 %v72, %v73
  %v75 = vsel %vm55, %v27, 0.0
  %v76 = vadd.f32 %v74, %v75
  %v77 = vsel %vm55, %v28, 0.0
  %v78 = vadd.f32 %v76, %v77
  %v79 = vsel %vm55, %v29, 0.0
  %v80 = vadd.f32 %v78, %v79
  %v81 = vsel %vm55, %v30, 0.0
  %v82 = vadd.f32 %v80, %v81
  %v83 = vsel %vm55, %v31, 0.0
  %v84 = vadd.f32 %v82, %v83
  %v85 = vsel %vm55, %v32, 0.0
  %v86 = vadd.f32 %v84, %v85
  %v87 = vsel %vm55, %v33, 0.0
  %v88 = vadd.f32 %v86, %v87
  %v89 = vsel %vm55, %v34, 0.0
  %v90 = vadd.f32 %v88, %v89
  %v91 = vsel %vm55, %v35, 0.0
  %v92 = vadd.f32 %v90, %v91
  %v93 = vsel %vm55, %v36, 0.0
  %v94 = vadd.f32 %v92, %v93
  %v95 = vsel %vm55, %v37, 0.0
  %v96 = vadd.f32 %v94, %v95
  %v97 = vsel %vm55, %v38, 0.0
  %v98 = vadd.f32 %v96, %v97
  %v99 = vsel %vm55, %v39, 0.0
  %v100 = vadd.f32 %v98, %v99
  %v101 = vsel %vm55, %v40, 0.0
  %v102 = vadd.f32 %v100, %v101
  %v103 = vsel %vm55, %v41, 0.0
  %v104 = vadd.f32 %v102, %v103
  %v105 = vsel %vm55, %v42, 0.0
  %v106 = vadd.f32 %v104, %v105
  %v107 = vsel %vm55, %v43, 0.0
  %v108 = vadd.f32 %v106, %v107
  %v109 = vsel %vm55, %v44, 0.0
  %v110 = vadd.f32 %v108, %v109
  %v111 = vsel %vm55, %v45, 0.0
  %v112 = vadd.f32 %v110, %v111
  %v113 = vsel %vm55, %v46, 0.0
  %v114 = vadd.f32 %v112, %v113
  %v115 = vsel %vm55, %v47, 0.0
  %v116 = vadd.f32 %v114, %v115
  %v117 = vsel %vm55, %v48, 0.0
  %v118 = vadd.f32 %v116, %v117
  %v119 = vsel %vm55, %v49, 0.0
  %v120 = vadd.f32 %v118, %v119
  %v121 = vsel %vm55, %v50, 0.0
  %v122 = vadd.f32 %v120, %v121
  %v123 = vsel %vm55, %v51, 0.0
  %v124 = vadd.f32 %v122, %v123
  %v125 = vsel %vm55, %v52, 0.0
  %v126 = vadd.f32 %v124, %v125
  %v127 = vsel %vm55, %v53, 0.0
  %v128 = vadd.f32 %v126, %v127
  %vm129 = vcmask 60416
  %v130 = vsel %vm129, %v54, 0.0
  %v131 = vadd.f32 %v128, %v130
  %132 = vadd.xlane.f32.xlu0 %v131
  %v133 = vpop.xlane.xlu0 %132
  %v134 = vrot.slane %v133, 4
  %v135 = vadd.f32 %v133, %v134
  %v136 = vrot.slane %v135, 2
  %v137 = vadd.f32 %v135, %v136
  %v138 = vrot.slane %v137, 1
  %v139 = vadd.f32 %v137, %v138
  %s140 = vtos %v139
  %v141 = vstv %s140
  %v142 = vrcp.pop 2400.0
  %v143 = vmul.f32 %v141, %v142
  %v144 = vsub.f32 %v17, %v143
  %v145 = vsub.f32 %v18, %v143
  %v146 = vsub.f32 %v19, %v143
  %v147 = vsub.f32 %v20, %v143
  %v148 = vsub.f32 %v21, %v143
  %v149 = vsub.f32 %v22, %v143
  %v150 = vsub.f32 %v23, %v143
  %v151 = vsub.f32 %v24, %v143
  %v152 = vsub.f32 %v25, %v143
  %v153 = vsub.f32 %v26, %v143
  %v154 = vsub.f32 %v27, %v143
  %v155 = vsub.f32 %v28, %v143
  %v156 = vsub.f32 %v29, %v143
  %v157 = vsub.f32 %v30, %v143
  %v158 = vsub.f32 %v31, %v143
  %v159 = vsub.f32 %v32, %v143
  %v160 = vsub.f32 %v33, %v143
  %v161 = vsub.f32 %v34, %v143
  %v162 = vsub.f32 %v35, %v143
  %v163 = vsub.f32 %v36, %v143
  %v164 = vsub.f32 %v37, %v143
  %v165 = vsub.f32 %v38, %v143
  %v166 = vsub.f32 %v39, %v143
  %v167 = vsub.f32 %v40, %v143
  %v168 = vsub.f32 %v41, %v143
  %v169 = vsub.f32 %v42, %v143
  %v170 = vsub.f32 %v43, %v143
  %v171 = vsub.f32 %v44, %v143
  %v172 = vsub.f32 %v45, %v143
  %v173 = vsub.f32 %v46, %v143
  %v174 = vsub.f32 %v47, %v143
  %v175 = vsub.f32 %v48, %v143
  %v176 = vsub.f32 %v49, %v143
  %v177 = vsub.f32 %v50, %v143
  %v178 = vsub.f32 %v51, %v143
  %v179 = vsub.f32 %v52, %v143
  %v180 = vsub.f32 %v53, %v143
  %v181 = vsub.f32 %v54, %v143
  %v182 = vmul.f32 %v144, %v144
  %v183 = vmul.f32 %v145, %v145
  %v184 = vmul.f32 %v146, %v146
  %v185 = vmul.f32 %v147, %v147
  %v186 = vmul.f32 %v148, %v148
  %v187 = vmul.f32 %v149, %v149
  %v188 = vmul.f32 %v150, %v150
  %v189 = vmul.f32 %v151, %v151
  %v190 = vmul.f32 %v152, %v152
  %v191 = vmul.f32 %v153, %v153
  %v192 = vmul.f32 %v154, %v154
  %v193 = vmul.f32 %v155, %v155
  %v194 = vmul.f32 %v156, %v156
  %v195 = vmul.f32 %v157, %v157
  %v196 = vmul.f32 %v158, %v158
  %v197 = vmul.f32 %v159, %v159
  %v198 = vmul.f32 %v160, %v160
  %v199 = vmul.f32 %v161, %v161
  %v200 = vmul.f32 %v162, %v162
  %v201 = vmul.f32 %v163, %v163
  %v202 = vmul.f32 %v164, %v164
  %v203 = vmul.f32 %v165, %v165
  %v204 = vmul.f32 %v166, %v166
  %v205 = vmul.f32 %v167, %v167
  %v206 = vmul.f32 %v168, %v168
  %v207 = vmul.f32 %v169, %v169
  %v208 = vmul.f32 %v170, %v170
  %v209 = vmul.f32 %v171, %v171
  %v210 = vmul.f32 %v172, %v172
  %v211 = vmul.f32 %v173, %v173
  %v212 = vmul.f32 %v174, %v174
  %v213 = vmul.f32 %v175, %v175
  %v214 = vmul.f32 %v176, %v176
  %v215 = vmul.f32 %v177, %v177
  %v216 = vmul.f32 %v178, %v178
  %v217 = vmul.f32 %v179, %v179
  %v218 = vmul.f32 %v180, %v180
  %v219 = vmul.f32 %v181, %v181
  %v220 = vsel %vm55, %v182, 0.0
  %v221 = vsel %vm55, %v183, 0.0
  %v222 = vadd.f32 %v220, %v221
  %v223 = vsel %vm55, %v184, 0.0
  %v224 = vadd.f32 %v222, %v223
  %v225 = vsel %vm55, %v185, 0.0
  %v226 = vadd.f32 %v224, %v225
  %v227 = vsel %vm55, %v186, 0.0
  %v228 = vadd.f32 %v226, %v227
  %v229 = vsel %vm55, %v187, 0.0
  %v230 = vadd.f32 %v228, %v229
  %v231 = vsel %vm55, %v188, 0.0
  %v232 = vadd.f32 %v230, %v231
  %v233 = vsel %vm55, %v189, 0.0
  %v234 = vadd.f32 %v232, %v233
  %v235 = vsel %vm55, %v190, 0.0
  %v236 = vadd.f32 %v234, %v235
  %v237 = vsel %vm55, %v191, 0.0
  %v238 = vadd.f32 %v236, %v237
  %v239 = vsel %vm55, %v192, 0.0
  %v240 = vadd.f32 %v238, %v239
  %v241 = vsel %vm55, %v193, 0.0
  %v242 = vadd.f32 %v240, %v241
  %v243 = vsel %vm55, %v194, 0.0
  %v244 = vadd.f32 %v242, %v243
  %v245 = vsel %vm55, %v195, 0.0
  %v246 = vadd.f32 %v244, %v245
  %v247 = vsel %vm55, %v196, 0.0
  %v248 = vadd.f32 %v246, %v247
  %v249 = vsel %vm55, %v197, 0.0
  %v250 = vadd.f32 %v248, %v249
  %v251 = vsel %vm55, %v198, 0.0
  %v252 = vadd.f32 %v250, %v251
  %v253 = vsel %vm55, %v199, 0.0
  %v254 = vadd.f32 %v252, %v253
  %v255 = vsel %vm55, %v200, 0.0
  %v256 = vadd.f32 %v254, %v255
  %v257 = vsel %vm55, %v201, 0.0
  %v258 = vadd.f32 %v256, %v257
  %v259 = vsel %vm55, %v202, 0.0
  %v260 = vadd.f32 %v258, %v259
  %v261 = vsel %vm55, %v203, 0.0
  %v262 = vadd.f32 %v260, %v261
  %v263 = vsel %vm55, %v204, 0.0
  %v264 = vadd.f32 %v262, %v263
  %v265 = vsel %vm55, %v205, 0.0
  %v266 = vadd.f32 %v264, %v265
  %v267 = vsel %vm55, %v206, 0.0
  %v268 = vadd.f32 %v266, %v267
  %v269 = vsel %vm55, %v207, 0.0
  %v270 = vadd.f32 %v268, %v269
  %v271 = vsel %vm55, %v208, 0.0
  %v272 = vadd.f32 %v270, %v271
  %v273 = vsel %vm55, %v209, 0.0
  %v274 = vadd.f32 %v272, %v273
  %v275 = vsel %vm55, %v210, 0.0
  %v276 = vadd.f32 %v274, %v275
  %v277 = vsel %vm55, %v211, 0.0
  %v278 = vadd.f32 %v276, %v277
  %v279 = vsel %vm55, %v212, 0.0
  %v280 = vadd.f32 %v278, %v279
  %v281 = vsel %vm55, %v213, 0.0
  %v282 = vadd.f32 %v280, %v281
  %v283 = vsel %vm55, %v214, 0.0
  %v284 = vadd.f32 %v282, %v283
  %v285 = vsel %vm55, %v215, 0.0
  %v286 = vadd.f32 %v284, %v285
  %v287 = vsel %vm55, %v216, 0.0
  %v288 = vadd.f32 %v286, %v287
  %v289 = vsel %vm55, %v217, 0.0
  %v290 = vadd.f32 %v288, %v289
  %v291 = vsel %vm55, %v218, 0.0
  %v292 = vadd.f32 %v290, %v291
  %v293 = vsel %vm129, %v219, 0.0
  %v294 = vadd.f32 %v292, %v293
  %295 = vadd.xlane.f32.xlu0 %v294
  %v296 = vpop.xlane.xlu0 %295
  %v297 = vrot.slane %v296, 4
  %v298 = vadd.f32 %v296, %v297
  %v299 = vrot.slane %v298, 2
  %v300 = vadd.f32 %v298, %v299
  %v301 = vrot.slane %v300, 1
  %v302 = vadd.f32 %v300, %v301
  %s303 = vtos %v302
  %v304 = vstv %s303
  %v305 = vmul.f32 %v304, %v142
  %v306 = vadd.f32 %v305, 1e-08
  %v307 = vrsqrt.pop %v306
  %v308 = vmul.f32 %v306, %v307
  %vm309 = vcmp.eq.f32.partialorder %v306, inf
  %v310 = vsel %vm309, %v306, %v308
  %vm311 = vcmp.eq.f32.partialorder %v306, 0.0
  %v312 = vand.u32 %v306, 2147483648
  %v313 = vsel %vm311, %v312, %v310
  %v314 = vrcp.pop %v313
  %v315 = vmul.f32 %v144, %v314
  %v316 = vmul.f32 %v145, %v314
  %v317 = vmul.f32 %v146, %v314
  %v318 = vmul.f32 %v147, %v314
  %v319 = vmul.f32 %v148, %v314
  %v320 = vmul.f32 %v149, %v314
  %v321 = vmul.f32 %v150, %v314
  %v322 = vmul.f32 %v151, %v314
  %v323 = vmul.f32 %v152, %v314
  %v324 = vmul.f32 %v153, %v314
  %v325 = vmul.f32 %v154, %v314
  %v326 = vmul.f32 %v155, %v314
  %v327 = vmul.f32 %v156, %v314
  %v328 = vmul.f32 %v157, %v314
  %v329 = vmul.f32 %v158, %v314
  %v330 = vmul.f32 %v159, %v314
  %v331 = vmul.f32 %v160, %v314
  %v332 = vmul.f32 %v161, %v314
  %v333 = vmul.f32 %v162, %v314
  %v334 = vmul.f32 %v163, %v314
  %v335 = vmul.f32 %v164, %v314
  %v336 = vmul.f32 %v165, %v314
  %v337 = vmul.f32 %v166, %v314
  %v338 = vmul.f32 %v167, %v314
  %v339 = vmul.f32 %v168, %v314
  %v340 = vmul.f32 %v169, %v314
  %v341 = vmul.f32 %v170, %v314
  %v342 = vmul.f32 %v171, %v314
  %v343 = vmul.f32 %v172, %v314
  %v344 = vmul.f32 %v173, %v314
  %v345 = vmul.f32 %v174, %v314
  %v346 = vmul.f32 %v175, %v314
  %v347 = vmul.f32 %v176, %v314
  %v348 = vmul.f32 %v177, %v314
  %v349 = vmul.f32 %v178, %v314
  %v350 = vmul.f32 %v179, %v314
  %v351 = vmul.f32 %v180, %v314
  %v352 = vmul.f32 %v181, %v314
  %v353 = vld [vmem:[%s1] sm:$0x1]
  %v355 = vlaneseq
  %v356 = vshrl.u32 %v355, 7
  %v357 = vsub.s32 0, %v356
  %v358 = vrot.slane %v353, %v357
  %v360 = vmul.f32 %v315, %v358
  %v361 = vmul.f32 %v316, %v358
  %v362 = vmul.f32 %v317, %v358
  %v363 = vmul.f32 %v318, %v358
  %v364 = vmul.f32 %v319, %v358
  %v365 = vmul.f32 %v320, %v358
  %v366 = vmul.f32 %v321, %v358
  %v367 = vmul.f32 %v322, %v358
  %v368 = vmul.f32 %v323, %v358
  %v369 = vmul.f32 %v324, %v358
  %v370 = vmul.f32 %v325, %v358
  %v371 = vmul.f32 %v326, %v358
  %v372 = vmul.f32 %v327, %v358
  %v373 = vmul.f32 %v328, %v358
  %v374 = vmul.f32 %v329, %v358
  %v375 = vmul.f32 %v330, %v358
  %v376 = vmul.f32 %v331, %v358
  %v377 = vmul.f32 %v332, %v358
  %v378 = vmul.f32 %v333, %v358
  %v379 = vmul.f32 %v334, %v358
  %v380 = vmul.f32 %v335, %v358
  %v381 = vmul.f32 %v336, %v358
  %v382 = vmul.f32 %v337, %v358
  %v383 = vmul.f32 %v338, %v358
  %v384 = vmul.f32 %v339, %v358
  %v385 = vmul.f32 %v340, %v358
  %v386 = vmul.f32 %v341, %v358
  %v387 = vmul.f32 %v342, %v358
  %v388 = vmul.f32 %v343, %v358
  %v389 = vmul.f32 %v344, %v358
  %v390 = vmul.f32 %v345, %v358
  %v391 = vmul.f32 %v346, %v358
  %v392 = vmul.f32 %v347, %v358
  %v393 = vmul.f32 %v348, %v358
  %v394 = vmul.f32 %v349, %v358
  %v395 = vmul.f32 %v350, %v358
  %v396 = vmul.f32 %v351, %v358
  %v397 = vmul.f32 %v352, %v358
  %v398 = vld [vmem:[%s2] sm:$0x1]
  %v400 = vlaneseq
  %v401 = vshrl.u32 %v400, 7
  %v402 = vsub.s32 0, %v401
  %v403 = vrot.slane %v398, %v402
  %v405 = vadd.f32 %v360, %v403
  %v406 = vadd.f32 %v361, %v403
  %v407 = vadd.f32 %v362, %v403
  %v408 = vadd.f32 %v363, %v403
  %v409 = vadd.f32 %v364, %v403
  %v410 = vadd.f32 %v365, %v403
  %v411 = vadd.f32 %v366, %v403
  %v412 = vadd.f32 %v367, %v403
  %v413 = vadd.f32 %v368, %v403
  %v414 = vadd.f32 %v369, %v403
  %v415 = vadd.f32 %v370, %v403
  %v416 = vadd.f32 %v371, %v403
  %v417 = vadd.f32 %v372, %v403
  %v418 = vadd.f32 %v373, %v403
  %v419 = vadd.f32 %v374, %v403
  %v420 = vadd.f32 %v375, %v403
  %v421 = vadd.f32 %v376, %v403
  %v422 = vadd.f32 %v377, %v403
  %v423 = vadd.f32 %v378, %v403
  %v424 = vadd.f32 %v379, %v403
  %v425 = vadd.f32 %v380, %v403
  %v426 = vadd.f32 %v381, %v403
  %v427 = vadd.f32 %v382, %v403
  %v428 = vadd.f32 %v383, %v403
  %v429 = vadd.f32 %v384, %v403
  %v430 = vadd.f32 %v385, %v403
  %v431 = vadd.f32 %v386, %v403
  %v432 = vadd.f32 %v387, %v403
  %v433 = vadd.f32 %v388, %v403
  %v434 = vadd.f32 %v389, %v403
  %v435 = vadd.f32 %v390, %v403
  %v436 = vadd.f32 %v391, %v403
  %v437 = vadd.f32 %v392, %v403
  %v438 = vadd.f32 %v393, %v403
  %v439 = vadd.f32 %v394, %v403
  %v440 = vadd.f32 %v395, %v403
  %v441 = vadd.f32 %v396, %v403
  %v442 = vadd.f32 %v397, %v403
  %v443 = vld [vmem:[%s3] sm:$0xff]
  %v445 = vsel %vm55, %v405, 0
  %v448 = vsel %vm55, %v406, 0
  %v451 = vsel %vm55, %v407, 0
  %v454 = vsel %vm55, %v408, 0
  %v457 = vsel %vm55, %v409, 0
  %v460 = vsel %vm55, %v410, 0
  %v463 = vsel %vm55, %v411, 0
  %v466 = vsel %vm55, %v412, 0
  %v469 = vsel %vm55, %v413, 0
  %v472 = vsel %vm55, %v414, 0
  %v475 = vsel %vm55, %v415, 0
  %v478 = vsel %vm55, %v416, 0
  %v481 = vsel %vm55, %v417, 0
  %v484 = vsel %vm55, %v418, 0
  %v487 = vsel %vm55, %v419, 0
  %v490 = vsel %vm55, %v420, 0
  %v493 = vsel %vm55, %v421, 0
  %v496 = vsel %vm55, %v422, 0
  %v499 = vsel %vm55, %v423, 0
  %v502 = vsel %vm55, %v424, 0
  %v505 = vsel %vm55, %v425, 0
  %v508 = vsel %vm55, %v426, 0
  %v511 = vsel %vm55, %v427, 0
  %v514 = vsel %vm55, %v428, 0
  %v517 = vsel %vm55, %v429, 0
  %v520 = vsel %vm55, %v430, 0
  %v523 = vsel %vm55, %v431, 0
  %v526 = vsel %vm55, %v432, 0
  %v529 = vsel %vm55, %v433, 0
  %v532 = vsel %vm55, %v434, 0
  %v535 = vsel %vm55, %v435, 0
  %v538 = vsel %vm55, %v436, 0
  %v541 = vsel %vm55, %v437, 0
  %v544 = vsel %vm55, %v438, 0
  %v547 = vsel %vm55, %v439, 0
  %v550 = vsel %vm55, %v440, 0
  %v553 = vsel %vm55, %v441, 0
  %v556 = vsel %vm55, %v442, 0
  %558 = vmatprep.subr.mxu0 0.0
  %559 = vmatpush1.msra.mxu0 0.0
  %560 = vmatprep.subr.mxu0 0.0
  %561 = vmatpush1.msra.mxu0 0.0
  %562 = vmatprep.subr.mxu0 0.0
  %563 = vmatpush1.msra.mxu0 0.0
  %564 = vmatprep.subr.mxu0 0.0
  %565 = vmatpush1.msra.mxu0 0.0
  %566 = vmatprep.subr.mxu0 0.0
  %567 = vmatpush1.msra.mxu0 0.0
  %568 = vmatprep.subr.mxu0 0.0
  %569 = vmatpush1.msra.mxu0 0.0
  %570 = vmatprep.subr.mxu0 0.0
  %571 = vmatpush1.msra.mxu0 0.0
  %572 = vmatprep.subr.mxu0 0.0
  %573 = vmatpush1.msra.mxu0 0.0
  %574 = vmatprep.subr.mxu0 0.0
  %575 = vmatpush1.msra.mxu0 0.0
  %576 = vmatprep.subr.mxu0 0.0
  %577 = vmatpush1.msra.mxu0 0.0
  %578 = vmatprep.subr.mxu0 0.0
  %579 = vmatpush1.msra.mxu0 0.0
  %580 = vmatprep.subr.mxu0 0.0
  %581 = vmatpush1.msra.mxu0 0.0
  %582 = vmatprep.subr.mxu0 0.0
  %583 = vmatpush1.msra.mxu0 0.0
  %584 = vmatprep.subr.mxu0 0.0
  %585 = vmatpush1.msra.mxu0 0.0
  %586 = vmatprep.subr.mxu0 0.0
  %587 = vmatpush1.msra.mxu0 0.0
  %588 = vmatprep.subr.mxu0 0.0
  %589 = vmatpush1.msra.mxu0 %v443
  %590 = vmatprep.subr.mxu0 0.0
  %591 = vmatpush2.msra.mxu0 0.0
  %592 = vmatprep.subr.mxu0 0.0
  %593 = vmatpush2.msra.mxu0 0.0
  %594 = vmatprep.subr.mxu0 0.0
  %595 = vmatpush2.msra.mxu0 0.0
  %596 = vmatprep.subr.mxu0 0.0
  %597 = vmatpush2.msra.mxu0 0.0
  %598 = vmatprep.subr.mxu0 0.0
  %599 = vmatpush2.msra.mxu0 0.0
  %600 = vmatprep.subr.mxu0 0.0
  %601 = vmatpush2.msra.mxu0 0.0
  %602 = vmatprep.subr.mxu0 0.0
  %603 = vmatpush2.msra.mxu0 0.0
  %604 = vmatprep.subr.mxu0 0.0
  %605 = vmatpush2.msra.mxu0 0.0
  %606 = vmatprep.subr.mxu0 0.0
  %607 = vmatpush2.msra.mxu0 0.0
  %608 = vmatprep.subr.mxu0 0.0
  %609 = vmatpush2.msra.mxu0 0.0
  %610 = vmatprep.subr.mxu0 0.0
  %611 = vmatpush2.msra.mxu0 0.0
  %612 = vmatprep.subr.mxu0 0.0
  %613 = vmatpush2.msra.mxu0 0.0
  %614 = vmatprep.subr.mxu0 0.0
  %615 = vmatpush2.msra.mxu0 0.0
  %616 = vmatprep.subr.mxu0 0.0
  %617 = vmatpush2.msra.mxu0 0.0
  %618 = vmatprep.subr.mxu0 0.0
  %619 = vmatpush2.msra.mxu0 0.0
  %620 = vmatprep.subr.mxu0 0.0
  %621 = vmatpush2.msra.mxu0 0.0
  %622 = vmatprep.mubr.f32.mxu0 0.0
  %623 = vmatmul.mubr.f32.gmra.mxu0 %v445
  %v624 = vpop.f32.mrf.mxu0
  %v625 = vadd.f32 0.0, %v624
  %v626 = vpop.f32.mrf.mxu0
  %627 = vmatprep.mubr.f32.mxu0 0.0
  %628 = vmatmul.mubr.f32.gmra.mxu0 %v448
  %v629 = vpop.f32.mrf.mxu0
  %v630 = vadd.f32 0.0, %v629
  %v631 = vpop.f32.mrf.mxu0
  %632 = vmatprep.mubr.f32.mxu0 0.0
  %633 = vmatmul.mubr.f32.gmra.mxu0 %v451
  %v634 = vpop.f32.mrf.mxu0
  %v635 = vadd.f32 0.0, %v634
  %v636 = vpop.f32.mrf.mxu0
  %637 = vmatprep.mubr.f32.mxu0 0.0
  %638 = vmatmul.mubr.f32.gmra.mxu0 %v454
  %v639 = vpop.f32.mrf.mxu0
  %v640 = vadd.f32 0.0, %v639
  %v641 = vpop.f32.mrf.mxu0
  %642 = vmatprep.mubr.f32.mxu0 0.0
  %643 = vmatmul.mubr.f32.gmra.mxu0 %v457
  %v644 = vpop.f32.mrf.mxu0
  %v645 = vadd.f32 0.0, %v644
  %v646 = vpop.f32.mrf.mxu0
  %647 = vmatprep.mubr.f32.mxu0 0.0
  %648 = vmatmul.mubr.f32.gmra.mxu0 %v460
  %v649 = vpop.f32.mrf.mxu0
  %v650 = vadd.f32 0.0, %v649
  %v651 = vpop.f32.mrf.mxu0
  %652 = vmatprep.mubr.f32.mxu0 0.0
  %653 = vmatmul.mubr.f32.gmra.mxu0 %v463
  %v654 = vpop.f32.mrf.mxu0
  %v655 = vadd.f32 0.0, %v654
  %v656 = vpop.f32.mrf.mxu0
  %657 = vmatprep.mubr.f32.mxu0 0.0
  %658 = vmatmul.mubr.f32.gmra.mxu0 %v466
  %v659 = vpop.f32.mrf.mxu0
  %v660 = vadd.f32 0.0, %v659
  %v661 = vpop.f32.mrf.mxu0
  %662 = vmatprep.mubr.f32.mxu0 0.0
  %663 = vmatmul.mubr.f32.gmra.mxu0 %v469
  %v664 = vpop.f32.mrf.mxu0
  %v665 = vadd.f32 0.0, %v664
  %v666 = vpop.f32.mrf.mxu0
  %667 = vmatprep.mubr.f32.mxu0 0.0
  %668 = vmatmul.mubr.f32.gmra.mxu0 %v472
  %v669 = vpop.f32.mrf.mxu0
  %v670 = vadd.f32 0.0, %v669
  %v671 = vpop.f32.mrf.mxu0
  %672 = vmatprep.mubr.f32.mxu0 0.0
  %673 = vmatmul.mubr.f32.gmra.mxu0 %v475
  %v674 = vpop.f32.mrf.mxu0
  %v675 = vadd.f32 0.0, %v674
  %v676 = vpop.f32.mrf.mxu0
  %677 = vmatprep.mubr.f32.mxu0 0.0
  %678 = vmatmul.mubr.f32.gmra.mxu0 %v478
  %v679 = vpop.f32.mrf.mxu0
  %v680 = vadd.f32 0.0, %v679
  %v681 = vpop.f32.mrf.mxu0
  %682 = vmatprep.mubr.f32.mxu0 0.0
  %683 = vmatmul.mubr.f32.gmra.mxu0 %v481
  %v684 = vpop.f32.mrf.mxu0
  %v685 = vadd.f32 0.0, %v684
  %v686 = vpop.f32.mrf.mxu0
  %687 = vmatprep.mubr.f32.mxu0 0.0
  %688 = vmatmul.mubr.f32.gmra.mxu0 %v484
  %v689 = vpop.f32.mrf.mxu0
  %v690 = vadd.f32 0.0, %v689
  %v691 = vpop.f32.mrf.mxu0
  %692 = vmatprep.mubr.f32.mxu0 0.0
  %693 = vmatmul.mubr.f32.gmra.mxu0 %v487
  %v694 = vpop.f32.mrf.mxu0
  %v695 = vadd.f32 0.0, %v694
  %v696 = vpop.f32.mrf.mxu0
  %697 = vmatprep.mubr.f32.mxu0 0.0
  %698 = vmatmul.mubr.f32.gmra.mxu0 %v490
  %v699 = vpop.f32.mrf.mxu0
  %v700 = vadd.f32 0.0, %v699
  %v701 = vpop.f32.mrf.mxu0
  %702 = vmatprep.mubr.f32.mxu0 0.0
  %703 = vmatmul.mubr.f32.gmra.mxu0 %v493
  %v704 = vpop.f32.mrf.mxu0
  %v705 = vadd.f32 0.0, %v704
  %v706 = vpop.f32.mrf.mxu0
  %707 = vmatprep.mubr.f32.mxu0 0.0
  %708 = vmatmul.mubr.f32.gmra.mxu0 %v496
  %v709 = vpop.f32.mrf.mxu0
  %v710 = vadd.f32 0.0, %v709
  %v711 = vpop.f32.mrf.mxu0
  %712 = vmatprep.mubr.f32.mxu0 0.0
  %713 = vmatmul.mubr.f32.gmra.mxu0 %v499
  %v714 = vpop.f32.mrf.mxu0
  %v715 = vadd.f32 0.0, %v714
  %v716 = vpop.f32.mrf.mxu0
  %717 = vmatprep.mubr.f32.mxu0 0.0
  %718 = vmatmul.mubr.f32.gmra.mxu0 %v502
  %v719 = vpop.f32.mrf.mxu0
  %v720 = vadd.f32 0.0, %v719
  %v721 = vpop.f32.mrf.mxu0
  %722 = vmatprep.mubr.f32.mxu0 0.0
  %723 = vmatmul.mubr.f32.gmra.mxu0 %v505
  %v724 = vpop.f32.mrf.mxu0
  %v725 = vadd.f32 0.0, %v724
  %v726 = vpop.f32.mrf.mxu0
  %727 = vmatprep.mubr.f32.mxu0 0.0
  %728 = vmatmul.mubr.f32.gmra.mxu0 %v508
  %v729 = vpop.f32.mrf.mxu0
  %v730 = vadd.f32 0.0, %v729
  %v731 = vpop.f32.mrf.mxu0
  %732 = vmatprep.mubr.f32.mxu0 0.0
  %733 = vmatmul.mubr.f32.gmra.mxu0 %v511
  %v734 = vpop.f32.mrf.mxu0
  %v735 = vadd.f32 0.0, %v734
  %v736 = vpop.f32.mrf.mxu0
  %737 = vmatprep.mubr.f32.mxu0 0.0
  %738 = vmatmul.mubr.f32.gmra.mxu0 %v514
  %v739 = vpop.f32.mrf.mxu0
  %v740 = vadd.f32 0.0, %v739
  %v741 = vpop.f32.mrf.mxu0
  %742 = vmatprep.mubr.f32.mxu0 0.0
  %743 = vmatmul.mubr.f32.gmra.mxu0 %v517
  %v744 = vpop.f32.mrf.mxu0
  %v745 = vadd.f32 0.0, %v744
  %v746 = vpop.f32.mrf.mxu0
  %747 = vmatprep.mubr.f32.mxu0 0.0
  %748 = vmatmul.mubr.f32.gmra.mxu0 %v520
  %v749 = vpop.f32.mrf.mxu0
  %v750 = vadd.f32 0.0, %v749
  %v751 = vpop.f32.mrf.mxu0
  %752 = vmatprep.mubr.f32.mxu0 0.0
  %753 = vmatmul.mubr.f32.gmra.mxu0 %v523
  %v754 = vpop.f32.mrf.mxu0
  %v755 = vadd.f32 0.0, %v754
  %v756 = vpop.f32.mrf.mxu0
  %757 = vmatprep.mubr.f32.mxu0 0.0
  %758 = vmatmul.mubr.f32.gmra.mxu0 %v526
  %v759 = vpop.f32.mrf.mxu0
  %v760 = vadd.f32 0.0, %v759
  %v761 = vpop.f32.mrf.mxu0
  %762 = vmatprep.mubr.f32.mxu0 0.0
  %763 = vmatmul.mubr.f32.gmra.mxu0 %v529
  %v764 = vpop.f32.mrf.mxu0
  %v765 = vadd.f32 0.0, %v764
  %v766 = vpop.f32.mrf.mxu0
  %767 = vmatprep.mubr.f32.mxu0 0.0
  %768 = vmatmul.mubr.f32.gmra.mxu0 %v532
  %v769 = vpop.f32.mrf.mxu0
  %v770 = vadd.f32 0.0, %v769
  %v771 = vpop.f32.mrf.mxu0
  %772 = vmatprep.mubr.f32.mxu0 0.0
  %773 = vmatmul.mubr.f32.gmra.mxu0 %v535
  %v774 = vpop.f32.mrf.mxu0
  %v775 = vadd.f32 0.0, %v774
  %v776 = vpop.f32.mrf.mxu0
  %777 = vmatprep.mubr.f32.mxu0 0.0
  %778 = vmatmul.mubr.f32.gmra.mxu0 %v538
  %v779 = vpop.f32.mrf.mxu0
  %v780 = vadd.f32 0.0, %v779
  %v781 = vpop.f32.mrf.mxu0
  %782 = vmatprep.mubr.f32.mxu0 0.0
  %783 = vmatmul.mubr.f32.gmra.mxu0 %v541
  %v784 = vpop.f32.mrf.mxu0
  %v785 = vadd.f32 0.0, %v784
  %v786 = vpop.f32.mrf.mxu0
  %787 = vmatprep.mubr.f32.mxu0 0.0
  %788 = vmatmul.mubr.f32.gmra.mxu0 %v544
  %v789 = vpop.f32.mrf.mxu0
  %v790 = vadd.f32 0.0, %v789
  %v791 = vpop.f32.mrf.mxu0
  %792 = vmatprep.mubr.f32.mxu0 0.0
  %793 = vmatmul.mubr.f32.gmra.mxu0 %v547
  %v794 = vpop.f32.mrf.mxu0
  %v795 = vadd.f32 0.0, %v794
  %v796 = vpop.f32.mrf.mxu0
  %797 = vmatprep.mubr.f32.mxu0 0.0
  %798 = vmatmul.mubr.f32.gmra.mxu0 %v550
  %v799 = vpop.f32.mrf.mxu0
  %v800 = vadd.f32 0.0, %v799
  %v801 = vpop.f32.mrf.mxu0
  %802 = vmatprep.mubr.f32.mxu0 0.0
  %803 = vmatmul.mubr.f32.gmra.mxu0 %v553
  %v804 = vpop.f32.mrf.mxu0
  %v805 = vadd.f32 0.0, %v804
  %v806 = vpop.f32.mrf.mxu0
  %807 = vmatprep.mubr.f32.mxu0 0.0
  %808 = vmatmul.mubr.f32.gmra.mxu0 %v556
  %v809 = vpop.f32.mrf.mxu0
  %v810 = vadd.f32 0.0, %v809
  %v811 = vpop.f32.mrf.mxu0
  %812 = vdwg.mxu0
  %vm813 = vcmask 130048
  %814 = vst.msk [vmem:[%s4] sm:$0xff] %vm813, %v625
  %815 = vst.msk [vmem:[%s4 + $0x8] sm:$0xff] %vm813, %v630
  %816 = vst.msk [vmem:[%s4 + $0x10] sm:$0xff] %vm813, %v635
  %817 = vst.msk [vmem:[%s4 + $0x18] sm:$0xff] %vm813, %v640
  %818 = vst.msk [vmem:[%s4 + $0x20] sm:$0xff] %vm813, %v645
  %819 = vst.msk [vmem:[%s4 + $0x28] sm:$0xff] %vm813, %v650
  %820 = vst.msk [vmem:[%s4 + $0x30] sm:$0xff] %vm813, %v655
  %821 = vst.msk [vmem:[%s4 + $0x38] sm:$0xff] %vm813, %v660
  %822 = vst.msk [vmem:[%s4 + $0x40] sm:$0xff] %vm813, %v665
  %823 = vst.msk [vmem:[%s4 + $0x48] sm:$0xff] %vm813, %v670
  %824 = vst.msk [vmem:[%s4 + $0x50] sm:$0xff] %vm813, %v675
  %825 = vst.msk [vmem:[%s4 + $0x58] sm:$0xff] %vm813, %v680
  %826 = vst.msk [vmem:[%s4 + $0x60] sm:$0xff] %vm813, %v685
  %827 = vst.msk [vmem:[%s4 + $0x68] sm:$0xff] %vm813, %v690
  %828 = vst.msk [vmem:[%s4 + $0x70] sm:$0xff] %vm813, %v695
  %829 = vst.msk [vmem:[%s4 + $0x78] sm:$0xff] %vm813, %v700
  %830 = vst.msk [vmem:[%s4 + $0x80] sm:$0xff] %vm813, %v705
  %831 = vst.msk [vmem:[%s4 + $0x88] sm:$0xff] %vm813, %v710
  %832 = vst.msk [vmem:[%s4 + $0x90] sm:$0xff] %vm813, %v715
  %833 = vst.msk [vmem:[%s4 + $0x98] sm:$0xff] %vm813, %v720
  %834 = vst.msk [vmem:[%s4 + $0xa0] sm:$0xff] %vm813, %v725
  %835 = vst.msk [vmem:[%s4 + $0xa8] sm:$0xff] %vm813, %v730
  %836 = vst.msk [vmem:[%s4 + $0xb0] sm:$0xff] %vm813, %v735
  %837 = vst.msk [vmem:[%s4 + $0xb8] sm:$0xff] %vm813, %v740
  %838 = vst.msk [vmem:[%s4 + $0xc0] sm:$0xff] %vm813, %v745
  %839 = vst.msk [vmem:[%s4 + $0xc8] sm:$0xff] %vm813, %v750
  %840 = vst.msk [vmem:[%s4 + $0xd0] sm:$0xff] %vm813, %v755
  %841 = vst.msk [vmem:[%s4 + $0xd8] sm:$0xff] %vm813, %v760
  %842 = vst.msk [vmem:[%s4 + $0xe0] sm:$0xff] %vm813, %v765
  %843 = vst.msk [vmem:[%s4 + $0xe8] sm:$0xff] %vm813, %v770
  %844 = vst.msk [vmem:[%s4 + $0xf0] sm:$0xff] %vm813, %v775
  %845 = vst.msk [vmem:[%s4 + $0xf8] sm:$0xff] %vm813, %v780
  %846 = vst.msk [vmem:[%s4 + $0x100] sm:$0xff] %vm813, %v785
  %847 = vst.msk [vmem:[%s4 + $0x108] sm:$0xff] %vm813, %v790
  %848 = vst.msk [vmem:[%s4 + $0x110] sm:$0xff] %vm813, %v795
  %849 = vst.msk [vmem:[%s4 + $0x118] sm:$0xff] %vm813, %v800
  %850 = vst.msk [vmem:[%s4 + $0x120] sm:$0xff] %vm813, %v805
  %vm851 = vcmask 125952
  %852 = vst.msk [vmem:[%s4 + $0x128] sm:$0xf] %vm851, %v810
  // Predicated region
  $region18: #{forward.3} parent=0 // pred_check
    _
  $region19: #{forward.3} parent=0 // pred_check_branch
    %854 = sbr.rel (0) target = $region21
  $region20: #{forward.3} parent=0 // pred_region
    _
  $region21: #{forward.3} parent=0 // pred_fallthru
    _
  // Predicated region
  $region22: #{forward.3} parent=0 // pred_check
    _
  $region23: #{forward.3} parent=0 // pred_check_branch
    %856 = sbr.rel (0) target = $region25
  $region24: #{forward.3} parent=0 // pred_region
    _
  $region25: #{forward.3} parent=0 // pred_fallthru
    _

// kernel: forward.5
$region0: #{forward.5}
  #allocation0 [shape = 'u32[]', space=smem, size = 0x4, offset = 0x4, fixed_abs, tag = 'smem constant byte address 0x4 - core index']
  #allocation1 [shape = 'u32[144,128]{1,0:T(1,128)}', space=vmem, size = 0x12000, scoped, tag = 'internal scratch']
  %s0 = inlined_call_operand.vmem [shape: f32[300,16], index: 0, kind: input, shape index: {}]
  %s1 = inlined_call_operand.vmem [shape: f32[2,16,16], index: 1, kind: input, shape index: {}]
  %s2 = inlined_call_operand.vmem [shape: f32[2,1,16], index: 2, kind: input, shape index: {}]
  %s3 = inlined_call_operand.vmem [shape: f32[16,16], index: 3, kind: input, shape index: {}]
  %s4 = inlined_call_operand.vmem [shape: f32[1,16], index: 4, kind: input, shape index: {}]
  %s5 = inlined_call_operand.vmem [shape: f32[16,16], index: 5, kind: input, shape index: {}]
  %s6 = inlined_call_operand.vmem [shape: f32[1,16], index: 6, kind: input, shape index: {}]
  %s7 = inlined_call_operand.vmem [shape: f32[16,8], index: 7, kind: input, shape index: {}]
  %s8 = inlined_call_operand.vmem [shape: f32[2,300,8], index: 8, kind: output, shape index: {}]
  %s9 = sld [smem:[#allocation0]]
  $region65: #{forward.5} parent=0
    _
  %s11 = ssub.s32 1, %s9
  %s12 = scalar_select 0, %s11, %s9
  loop: start=0, step=1, limit=4
  $region2: #{forward.5} parent=0 // loop_pre_header
    _
  $region3: #{forward.5} parent=0 // loop_header
    %s14 = sphi 0, %s18
    %p15 = scmp.ge.s32.totalorder %s14, 4
    %s22 = sphi 0, %s22
    %s24 = sphi 0, %s22
    %s25 = sphi 0, %s24
    %s39 = sphi 0, %s25
    %s45 = sphi 0, %s47
    %s48 = sphi 0, %s45
    %s49 = sphi 0, %s48
    %s65 = sphi 0, %s49
    %s71 = sphi 0, %s73
    %s74 = sphi 0, %s71
    %s75 = sphi 0, %s74
    %s91 = sphi 0, %s75
    %s95 = sphi 0, %s95
    %s97 = sphi 0, %s95
    %s98 = sphi 0, %s97
    %s112 = sphi 0, %s98
    %s116 = sphi 0, %s116
    %s118 = sphi 0, %s116
    %s119 = sphi 0, %s118
    %s133 = sphi 0, %s119
    %s137 = sphi 0, %s137
    %s139 = sphi 0, %s137
    %s140 = sphi 0, %s139
    %s154 = sphi 0, %s140
    %s158 = sphi 0, %s158
    %s160 = sphi 0, %s158
    %s161 = sphi 0, %s160
    %s175 = sphi 0, %s161
    %s179 = sphi 0, %s179
    %s181 = sphi 0, %s179
    %s182 = sphi 0, %s181
    %s196 = sphi 0, %s182
    %s202 = sphi 0, %s204
    %s205 = sphi 0, %s202
    %s206 = sphi 0, %s205
    %s222 = sphi 0, %s206
  $region4: #{forward.5} parent=0 // loop_header_branch
    %17 = sbr.rel (%p15) target = $region8
  $region5: #{forward.5} parent=0 // loop_body
    %s19 = ssub.s32 %s14, 1
    %s20 = ssub.s32 %s14, 2
    %s21 = sadd.s32 %s14, 1
    %s23 = sadd.s32 %s22, 1
    %p26 = scmp.eq.s32.totalorder %s14, 1
    %p27 = scmp.ne.s32.totalorder %s22, %s24
    %p28 = scmp.eq.s32.totalorder %s14, 0
    %p29 = por %p27, %p28
    %p30 = scmp.ne.s32.totalorder %s22, %s24
    %p31 = scmp.eq.s32.totalorder %s19, 1
    %p32 = por %p30, %p31
    %p33 = scmp.ne.s32.totalorder %s24, %s25
    %p34 = scmp.eq.s32.totalorder %s19, 0
    %p35 = por %p33, %p34
    %p36 = scmp.ne.s32.totalorder %s24, %s25
    %p37 = scmp.eq.s32.totalorder %s20, 1
    %p38 = por %p36, %p37
    %p40 = scmp.ne.s32.totalorder %s25, %s39
    %p41 = scmp.eq.s32.totalorder %s20, 0
    %p42 = por %p40, %p41
    %s43 = ssub.s32 %s14, %s21
    %p44 = scmp.eq.s32.totalorder %s43, 0
    %s46 = sadd.s32 %s45, 1
    %s47 = scalar_select %p44, %s45, %s46
    %p50 = pneg %p44
    %p51 = scmp.eq.s32.totalorder %s14, 1
    %p52 = por %p50, %p51
    %p53 = scmp.ne.s32.totalorder %s45, %s48
    %p54 = scmp.eq.s32.totalorder %s14, 0
    %p55 = por %p53, %p54
    %p56 = scmp.ne.s32.totalorder %s45, %s48
    %p57 = scmp.eq.s32.totalorder %s19, 1
    %p58 = por %p56, %p57
    %p59 = scmp.ne.s32.totalorder %s48, %s49
    %p60 = scmp.eq.s32.totalorder %s19, 0
    %p61 = por %p59, %p60
    %p62 = scmp.ne.s32.totalorder %s48, %s49
    %p63 = scmp.eq.s32.totalorder %s20, 1
    %p64 = por %p62, %p63
    %p66 = scmp.ne.s32.totalorder %s49, %s65
    %p67 = scmp.eq.s32.totalorder %s20, 0
    %p68 = por %p66, %p67
    %s69 = ssub.s32 %s14, %s21
    %p70 = scmp.eq.s32.totalorder %s69, 0
    %s72 = sadd.s32 %s71, 1
    %s73 = scalar_select %p70, %s71, %s72
    %p76 = pneg %p70
    %p77 = scmp.eq.s32.totalorder %s14, 1
    %p78 = por %p76, %p77
    %p79 = scmp.ne.s32.totalorder %s71, %s74
    %p80 = scmp.eq.s32.totalorder %s14, 0
    %p81 = por %p79, %p80
    %p82 = scmp.ne.s32.totalorder %s71, %s74
    %p83 = scmp.eq.s32.totalorder %s19, 1
    %p84 = por %p82, %p83
    %p85 = scmp.ne.s32.totalorder %s74, %s75
    %p86 = scmp.eq.s32.totalorder %s19, 0
    %p87 = por %p85, %p86
    %p88 = scmp.ne.s32.totalorder %s74, %s75
    %p89 = scmp.eq.s32.totalorder %s20, 1
    %p90 = por %p88, %p89
    %p92 = scmp.ne.s32.totalorder %s75, %s91
    %p93 = scmp.eq.s32.totalorder %s20, 0
    %p94 = por %p92, %p93
    %s96 = sadd.s32 %s95, 1
    %p99 = scmp.eq.s32.totalorder %s14, 1
    %p100 = scmp.ne.s32.totalorder %s95, %s97
    %p101 = scmp.eq.s32.totalorder %s14, 0
    %p102 = por %p100, %p101
    %p103 = scmp.ne.s32.totalorder %s95, %s97
    %p104 = scmp.eq.s32.totalorder %s19, 1
    %p105 = por %p103, %p104
    %p106 = scmp.ne.s32.totalorder %s97, %s98
    %p107 = scmp.eq.s32.totalorder %s19, 0
    %p108 = por %p106, %p107
    %p109 = scmp.ne.s32.totalorder %s97, %s98
    %p110 = scmp.eq.s32.totalorder %s20, 1
    %p111 = por %p109, %p110
    %p113 = scmp.ne.s32.totalorder %s98, %s112
    %p114 = scmp.eq.s32.totalorder %s20, 0
    %p115 = por %p113, %p114
    %s117 = sadd.s32 %s116, 1
    %p120 = scmp.eq.s32.totalorder %s14, 1
    %p121 = scmp.ne.s32.totalorder %s116, %s118
    %p122 = scmp.eq.s32.totalorder %s14, 0
    %p123 = por %p121, %p122
    %p124 = scmp.ne.s32.totalorder %s116, %s118
    %p125 = scmp.eq.s32.totalorder %s19, 1
    %p126 = por %p124, %p125
    %p127 = scmp.ne.s32.totalorder %s118, %s119
    %p128 = scmp.eq.s32.totalorder %s19, 0
    %p129 = por %p127, %p128
    %p130 = scmp.ne.s32.totalorder %s118, %s119
    %p131 = scmp.eq.s32.totalorder %s20, 1
    %p132 = por %p130, %p131
    %p134 = scmp.ne.s32.totalorder %s119, %s133
    %p135 = scmp.eq.s32.totalorder %s20, 0
    %p136 = por %p134, %p135
    %s138 = sadd.s32 %s137, 1
    %p141 = scmp.eq.s32.totalorder %s14, 1
    %p142 = scmp.ne.s32.totalorder %s137, %s139
    %p143 = scmp.eq.s32.totalorder %s14, 0
    %p144 = por %p142, %p143
    %p145 = scmp.ne.s32.totalorder %s137, %s139
    %p146 = scmp.eq.s32.totalorder %s19, 1
    %p147 = por %p145, %p146
    %p148 = scmp.ne.s32.totalorder %s139, %s140
    %p149 = scmp.eq.s32.totalorder %s19, 0
    %p150 = por %p148, %p149
    %p151 = scmp.ne.s32.totalorder %s139, %s140
    %p152 = scmp.eq.s32.totalorder %s20, 1
    %p153 = por %p151, %p152
    %p155 = scmp.ne.s32.totalorder %s140, %s154
    %p156 = scmp.eq.s32.totalorder %s20, 0
    %p157 = por %p155, %p156
    %s159 = sadd.s32 %s158, 1
    %p162 = scmp.eq.s32.totalorder %s14, 1
    %p163 = scmp.ne.s32.totalorder %s158, %s160
    %p164 = scmp.eq.s32.totalorder %s14, 0
    %p165 = por %p163, %p164
    %p166 = scmp.ne.s32.totalorder %s158, %s160
    %p167 = scmp.eq.s32.totalorder %s19, 1
    %p168 = por %p166, %p167
    %p169 = scmp.ne.s32.totalorder %s160, %s161
    %p170 = scmp.eq.s32.totalorder %s19, 0
    %p171 = por %p169, %p170
    %p172 = scmp.ne.s32.totalorder %s160, %s161
    %p173 = scmp.eq.s32.totalorder %s20, 1
    %p174 = por %p172, %p173
    %p176 = scmp.ne.s32.totalorder %s161, %s175
    %p177 = scmp.eq.s32.totalorder %s20, 0
    %p178 = por %p176, %p177
    %s180 = sadd.s32 %s179, 1
    %p183 = scmp.eq.s32.totalorder %s14, 1
    %p184 = scmp.ne.s32.totalorder %s179, %s181
    %p185 = scmp.eq.s32.totalorder %s14, 0
    %p186 = por %p184, %p185
    %p187 = scmp.ne.s32.totalorder %s179, %s181
    %p188 = scmp.eq.s32.totalorder %s19, 1
    %p189 = por %p187, %p188
    %p190 = scmp.ne.s32.totalorder %s181, %s182
    %p191 = scmp.eq.s32.totalorder %s19, 0
    %p192 = por %p190, %p191
    %p193 = scmp.ne.s32.totalorder %s181, %s182
    %p194 = scmp.eq.s32.totalorder %s20, 1
    %p195 = por %p193, %p194
    %p197 = scmp.ne.s32.totalorder %s182, %s196
    %p198 = scmp.eq.s32.totalorder %s20, 0
    %p199 = por %p197, %p198
    %s200 = ssub.s32 %s14, %s21
    %p201 = scmp.eq.s32.totalorder %s200, 0
    %s203 = sadd.s32 %s202, 1
    %s204 = scalar_select %p201, %s202, %s203
    %p207 = pneg %p201
    %p208 = scmp.eq.s32.totalorder %s14, 1
    %p209 = por %p207, %p208
    %p210 = scmp.ne.s32.totalorder %s202, %s205
    %p211 = scmp.eq.s32.totalorder %s14, 0
    %p212 = por %p210, %p211
    %p213 = scmp.ne.s32.totalorder %s202, %s205
    %p214 = scmp.eq.s32.totalorder %s19, 1
    %p215 = por %p213, %p214
    %p216 = scmp.ne.s32.totalorder %s205, %s206
    %p217 = scmp.eq.s32.totalorder %s19, 0
    %p218 = por %p216, %p217
    %p219 = scmp.ne.s32.totalorder %s205, %s206
    %p220 = scmp.eq.s32.totalorder %s20, 1
    %p221 = por %p219, %p220
    %p223 = scmp.ne.s32.totalorder %s206, %s222
    %p224 = scmp.eq.s32.totalorder %s20, 0
    %p225 = por %p223, %p224
    %p226 = scmp.le.s32.totalorder 1, %s14
    %p227 = scmp.lt.s32.totalorder %s14, 3
    %p228 = pnand %p226, %p227
    %p229 = pneg %p228
    // Predicated region
    $region9: #{forward.5} parent=5 // pred_check
      _
    $region10: #{forward.5} parent=5 // pred_check_branch
      %231 = sbr.rel (%p228) target = $region12
    $region11: #{forward.5} parent=5 // pred_region
      %s232 = ssub.s32 %s14, 1
      // Predicated region
      $region13: #{forward.5} parent=11 // pred_check
        %p233 = pneg %p35
      $region14: #{forward.5} parent=11 // pred_check_branch
        %235 = sbr.rel (%p233) target = $region16
      $region15: #{forward.5} parent=11 // pred_region
        _
      $region16: #{forward.5} parent=11 // pred_fallthru
        _
      // Predicated region
      $region17: #{forward.5} parent=11 // pred_check
        %p236 = pneg %p108
      $region18: #{forward.5} parent=11 // pred_check_branch
        %238 = sbr.rel (%p236) target = $region20
      $region19: #{forward.5} parent=11 // pred_region
        _
      $region20: #{forward.5} parent=11 // pred_fallthru
        _
      // Predicated region
      $region21: #{forward.5} parent=11 // pred_check
        %p239 = pneg %p129
      $region22: #{forward.5} parent=11 // pred_check_branch
        %241 = sbr.rel (%p239) target = $region24
      $region23: #{forward.5} parent=11 // pred_region
        _
      $region24: #{forward.5} parent=11 // pred_fallthru
        _
      // Predicated region
      $region25: #{forward.5} parent=11 // pred_check
        %p242 = pneg %p150
      $region26: #{forward.5} parent=11 // pred_check_branch
        %244 = sbr.rel (%p242) target = $region28
      $region27: #{forward.5} parent=11 // pred_region
        _
      $region28: #{forward.5} parent=11 // pred_fallthru
        _
      // Predicated region
      $region29: #{forward.5} parent=11 // pred_check
        %p245 = pneg %p171
      $region30: #{forward.5} parent=11 // pred_check_branch
        %247 = sbr.rel (%p245) target = $region32
      $region31: #{forward.5} parent=11 // pred_region
        _
      $region32: #{forward.5} parent=11 // pred_fallthru
        _
      // Predicated region
      $region33: #{forward.5} parent=11 // pred_check
        %p248 = pneg %p192
      $region34: #{forward.5} parent=11 // pred_check_branch
        %250 = sbr.rel (%p248) target = $region36
      $region35: #{forward.5} parent=11 // pred_region
        _
      $region36: #{forward.5} parent=11 // pred_fallthru
        _
    $region12: #{forward.5} parent=5 // pred_fallthru
      _
    %p251 = scmp.lt.s32.totalorder %s14, 2
    // Predicated region
    $region37: #{forward.5} parent=5 // pred_check
      %p252 = pneg %p251
    $region38: #{forward.5} parent=5 // pred_check_branch
      %254 = sbr.rel (%p252) target = $region40
    $region39: #{forward.5} parent=5 // pred_region
      // Predicated region
      $region41: #{forward.5} parent=39 // pred_check
        %p255 = pneg %p55
      $region42: #{forward.5} parent=39 // pred_check_branch
        %257 = sbr.rel (%p255) target = $region44
      $region43: #{forward.5} parent=39 // pred_region
        %p258 = scmp.lt.s32.totalorder %s14, 1
        %s259 = scalar_select %p258, %s14, 1
        %s260 = smul.addr %s259, 2
        %s261 = smul.addr %s260, 8
        %s262 = scalar_lea.vmem %s1, %s261
      $region44: #{forward.5} parent=39 // pred_fallthru
        _
      // Predicated region
      $region45: #{forward.5} parent=39 // pred_check
        %p263 = pneg %p81
      $region46: #{forward.5} parent=39 // pred_check_branch
        %265 = sbr.rel (%p263) target = $region48
      $region47: #{forward.5} parent=39 // pred_region
        %p266 = scmp.lt.s32.totalorder %s14, 1
        %s267 = scalar_select %p266, %s14, 1
        %s268 = scalar_lea.vmem %s2, %s267
      $region48: #{forward.5} parent=39 // pred_fallthru
        _
    $region40: #{forward.5} parent=5 // pred_fallthru
      _
    %p269 = scmp.le.s32.totalorder 1, %s14
    %p270 = scmp.lt.s32.totalorder %s14, 3
    %p271 = pnand %p269, %p270
    %p272 = pneg %p271
    // Predicated region
    $region49: #{forward.5} parent=5 // pred_check
      _
    $region50: #{forward.5} parent=5 // pred_check_branch
      %274 = sbr.rel (%p271) target = $region52
    $region51: #{forward.5} parent=5 // pred_region
      %s275 = ssub.s32 %s14, 1
      %p276 = pneg %p35
      %p277 = pneg %p32
      %p278 = scmp.lt.s32.totalorder %s19, 1
      %s279 = scalar_select %p278, %s19, 1
      %s280 = smul.addr %s279, 2
      %s281 = smul.addr %s280, 8
      %s282 = scalar_lea.vmem %s1, %s281
      %p283 = pneg %p61
      %p284 = pneg %p58
      %p285 = scmp.lt.s32.totalorder %s19, 1
      %s286 = scalar_select %p285, %s19, 1
      %s287 = scalar_lea.vmem %s2, %s286
      %p288 = pneg %p87
      %p289 = pneg %p84
      %p290 = pneg %p108
      %p291 = pneg %p105
      %p292 = pneg %p129
      %p293 = pneg %p126
      %p294 = pneg %p150
      %p295 = pneg %p147
      %p296 = pneg %p171
      %p297 = pneg %p168
      %p298 = pneg %p192
      %p299 = pneg %p189
      %p300 = pneg %p218
      %p301 = pneg %p215
      %p302 = scmp.lt.s32.totalorder %s19, 1
      %s303 = scalar_select %p302, %s19, 1
      %s304 = smul.addr %s303, 38
      %s305 = smul.addr %s304, 8
      %s306 = scalar_lea.vmem %s8, %s305
      %p307 = scmp.lt.s32.totalorder %s19, 1
      %s308 = scalar_select %p307, %s19, 1
      %s309 = smul.addr %s308, 2
      %s310 = smul.addr %s309, 8
      %s311 = scalar_lea.vmem %s1, %s310
      %p312 = scmp.lt.s32.totalorder %s19, 1
      %s313 = scalar_select %p312, %s19, 1
      %s314 = scalar_lea.vmem %s2, %s313
      %p315 = scmp.lt.s32.totalorder %s19, 1
      %s316 = scalar_select %p315, %s19, 1
      %s317 = smul.addr %s316, 38
      %s318 = smul.addr %s317, 8
      %s319 = scalar_lea.vmem %s8, %s318
      %v320 = vld [vmem:[%s0] sm:$0xff]
      %v321 = vld [vmem:[%s0 + $0x8] sm:$0xff]
      %v322 = vld [vmem:[%s0 + $0x10] sm:$0xff]
      %v323 = vld [vmem:[%s0 + $0x18] sm:$0xff]
      %v324 = vld [vmem:[%s0 + $0x20] sm:$0xff]
      %v325 = vld [vmem:[%s0 + $0x28] sm:$0xff]
      %v326 = vld [vmem:[%s0 + $0x30] sm:$0xff]
      %v327 = vld [vmem:[%s0 + $0x38] sm:$0xff]
      %v328 = vld [vmem:[%s0 + $0x40] sm:$0xff]
      %v329 = vld [vmem:[%s0 + $0x48] sm:$0xff]
      %v330 = vld [vmem:[%s0 + $0x50] sm:$0xff]
      %v331 = vld [vmem:[%s0 + $0x58] sm:$0xff]
      %v332 = vld [vmem:[%s0 + $0x60] sm:$0xff]
      %v333 = vld [vmem:[%s0 + $0x68] sm:$0xff]
      %v334 = vld [vmem:[%s0 + $0x70] sm:$0xff]
      %v335 = vld [vmem:[%s0 + $0x78] sm:$0xff]
      %v336 = vld [vmem:[%s0 + $0x80] sm:$0xff]
      %v337 = vld [vmem:[%s0 + $0x88] sm:$0xff]
      %v338 = vld [vmem:[%s0 + $0x90] sm:$0xff]
      %v339 = vld [vmem:[%s0 + $0x98] sm:$0xff]
      %v340 = vld [vmem:[%s0 + $0xa0] sm:$0xff]
      %v341 = vld [vmem:[%s0 + $0xa8] sm:$0xff]
      %v342 = vld [vmem:[%s0 + $0xb0] sm:$0xff]
      %v343 = vld [vmem:[%s0 + $0xb8] sm:$0xff]
      %v344 = vld [vmem:[%s0 + $0xc0] sm:$0xff]
      %v345 = vld [vmem:[%s0 + $0xc8] sm:$0xff]
      %v346 = vld [vmem:[%s0 + $0xd0] sm:$0xff]
      %v347 = vld [vmem:[%s0 + $0xd8] sm:$0xff]
      %v348 = vld [vmem:[%s0 + $0xe0] sm:$0xff]
      %v349 = vld [vmem:[%s0 + $0xe8] sm:$0xff]
      %v350 = vld [vmem:[%s0 + $0xf0] sm:$0xff]
      %v351 = vld [vmem:[%s0 + $0xf8] sm:$0xff]
      %v352 = vld [vmem:[%s0 + $0x100] sm:$0xff]
      %v353 = vld [vmem:[%s0 + $0x108] sm:$0xff]
      %v354 = vld [vmem:[%s0 + $0x110] sm:$0xff]
      %v355 = vld [vmem:[%s0 + $0x118] sm:$0xff]
      %v356 = vld [vmem:[%s0 + $0x120] sm:$0xff]
      %v357 = vld [vmem:[%s0 + $0x128] sm:$0xf]
      %v358 = vld [vmem:[%s311] sm:$0xff]
      %v359 = vld [vmem:[%s311 + $0x8] sm:$0xff]
      %v360 = vld [vmem:[%s314] sm:$0x1]
      %v362 = vlaneseq
      %v363 = vshrl.u32 %v362, 7
      %v364 = vsub.s32 0, %v363
      %v365 = vrot.slane %v360, %v364
      %vm367 = vcmask 130048
      %v369 = vsel %vm367, %v320, 0
      %v372 = vsel %vm367, %v321, 0
      %v375 = vsel %vm367, %v322, 0
      %v378 = vsel %vm367, %v323, 0
      %v381 = vsel %vm367, %v324, 0
      %v384 = vsel %vm367, %v325, 0
      %v387 = vsel %vm367, %v326, 0
      %v390 = vsel %vm367, %v327, 0
      %v393 = vsel %vm367, %v328, 0
      %v396 = vsel %vm367, %v329, 0
      %v399 = vsel %vm367, %v330, 0
      %v402 = vsel %vm367, %v331, 0
      %v405 = vsel %vm367, %v332, 0
      %v408 = vsel %vm367, %v333, 0
      %v411 = vsel %vm367, %v334, 0
      %v414 = vsel %vm367, %v335, 0
      %v417 = vsel %vm367, %v336, 0
      %v420 = vsel %vm367, %v337, 0
      %v423 = vsel %vm367, %v338, 0
      %v426 = vsel %vm367, %v339, 0
      %v429 = vsel %vm367, %v340, 0
      %v432 = vsel %vm367, %v341, 0
      %v435 = vsel %vm367, %v342, 0
      %v438 = vsel %vm367, %v343, 0
      %v441 = vsel %vm367, %v344, 0
      %v444 = vsel %vm367, %v345, 0
      %v447 = vsel %vm367, %v346, 0
      %v450 = vsel %vm367, %v347, 0
      %v453 = vsel %vm367, %v348, 0
      %v456 = vsel %vm367, %v349, 0
      %v459 = vsel %vm367, %v350, 0
      %v462 = vsel %vm367, %v351, 0
      %v465 = vsel %vm367, %v352, 0
      %v468 = vsel %vm367, %v353, 0
      %v471 = vsel %vm367, %v354, 0
      %v474 = vsel %vm367, %v355, 0
      %v477 = vsel %vm367, %v356, 0
      %v480 = vsel %vm367, %v357, 0
      %482 = vmatprep.subr.mxu0 0.0
      %483 = vmatpush1.msra.mxu0 0.0
      %484 = vmatprep.subr.mxu0 0.0
      %485 = vmatpush1.msra.mxu0 0.0
      %486 = vmatprep.subr.mxu0 0.0
      %487 = vmatpush1.msra.mxu0 0.0
      %488 = vmatprep.subr.mxu0 0.0
      %489 = vmatpush1.msra.mxu0 0.0
      %490 = vmatprep.subr.mxu0 0.0
      %491 = vmatpush1.msra.mxu0 0.0
      %492 = vmatprep.subr.mxu0 0.0
      %493 = vmatpush1.msra.mxu0 0.0
      %494 = vmatprep.subr.mxu0 0.0
      %495 = vmatpush1.msra.mxu0 0.0
      %496 = vmatprep.subr.mxu0 0.0
      %497 = vmatpush1.msra.mxu0 0.0
      %498 = vmatprep.subr.mxu0 0.0
      %499 = vmatpush1.msra.mxu0 0.0
      %500 = vmatprep.subr.mxu0 0.0
      %501 = vmatpush1.msra.mxu0 0.0
      %502 = vmatprep.subr.mxu0 0.0
      %503 = vmatpush1.msra.mxu0 0.0
      %504 = vmatprep.subr.mxu0 0.0
      %505 = vmatpush1.msra.mxu0 0.0
      %506 = vmatprep.subr.mxu0 0.0
      %507 = vmatpush1.msra.mxu0 0.0
      %508 = vmatprep.subr.mxu0 0.0
      %509 = vmatpush1.msra.mxu0 0.0
      %510 = vmatprep.subr.mxu0 0.0
      %511 = vmatpush1.msra.mxu0 %v359
      %512 = vmatprep.subr.mxu0 0.0
      %513 = vmatpush1.msra.mxu0 %v358
      %514 = vmatprep.subr.mxu0 0.0
      %515 = vmatpush2.msra.mxu0 0.0
      %516 = vmatprep.subr.mxu0 0.0
      %517 = vmatpush2.msra.mxu0 0.0
      %518 = vmatprep.subr.mxu0 0.0
      %519 = vmatpush2.msra.mxu0 0.0
      %520 = vmatprep.subr.mxu0 0.0
      %521 = vmatpush2.msra.mxu0 0.0
      %522 = vmatprep.subr.mxu0 0.0
      %523 = vmatpush2.msra.mxu0 0.0
      %524 = vmatprep.subr.mxu0 0.0
      %525 = vmatpush2.msra.mxu0 0.0
      %526 = vmatprep.subr.mxu0 0.0
      %527 = vmatpush2.msra.mxu0 0.0
      %528 = vmatprep.subr.mxu0 0.0
      %529 = vmatpush2.msra.mxu0 0.0
      %530 = vmatprep.subr.mxu0 0.0
      %531 = vmatpush2.msra.mxu0 0.0
      %532 = vmatprep.subr.mxu0 0.0
      %533 = vmatpush2.msra.mxu0 0.0
      %534 = vmatprep.subr.mxu0 0.0
      %535 = vmatpush2.msra.mxu0 0.0
      %536 = vmatprep.subr.mxu0 0.0
      %537 = vmatpush2.msra.mxu0 0.0
      %538 = vmatprep.subr.mxu0 0.0
      %539 = vmatpush2.msra.mxu0 0.0
      %540 = vmatprep.subr.mxu0 0.0
      %541 = vmatpush2.msra.mxu0 0.0
      %542 = vmatprep.subr.mxu0 0.0
      %543 = vmatpush2.msra.mxu0 0.0
      %544 = vmatprep.subr.mxu0 0.0
      %545 = vmatpush2.msra.mxu0 0.0
      %546 = vmatprep.mubr.f32.mxu0 0.0
      %547 = vmatmul.mubr.f32.gmra.mxu0 %v369
      %v548 = vpop.f32.mrf.mxu0
      %v549 = vadd.f32 %v365, %v548
      %v550 = vpop.f32.mrf.mxu0
      %551 = vmatprep.mubr.f32.mxu0 0.0
      %552 = vmatmul.mubr.f32.gmra.mxu0 %v372
      %v553 = vpop.f32.mrf.mxu0
      %v554 = vadd.f32 %v365, %v553
      %v555 = vpop.f32.mrf.mxu0
      %556 = vmatprep.mubr.f32.mxu0 0.0
      %557 = vmatmul.mubr.f32.gmra.mxu0 %v375
      %v558 = vpop.f32.mrf.mxu0
      %v559 = vadd.f32 %v365, %v558
      %v560 = vpop.f32.mrf.mxu0
      %561 = vmatprep.mubr.f32.mxu0 0.0
      %562 = vmatmul.mubr.f32.gmra.mxu0 %v378
      %v563 = vpop.f32.mrf.mxu0
      %v564 = vadd.f32 %v365, %v563
      %v565 = vpop.f32.mrf.mxu0
      %566 = vmatprep.mubr.f32.mxu0 0.0
      %567 = vmatmul.mubr.f32.gmra.mxu0 %v381
      %v568 = vpop.f32.mrf.mxu0
      %v569 = vadd.f32 %v365, %v568
      %v570 = vpop.f32.mrf.mxu0
      %571 = vmatprep.mubr.f32.mxu0 0.0
      %572 = vmatmul.mubr.f32.gmra.mxu0 %v384
      %v573 = vpop.f32.mrf.mxu0
      %v574 = vadd.f32 %v365, %v573
      %v575 = vpop.f32.mrf.mxu0
      %576 = vmatprep.mubr.f32.mxu0 0.0
      %577 = vmatmul.mubr.f32.gmra.mxu0 %v387
      %v578 = vpop.f32.mrf.mxu0
      %v579 = vadd.f32 %v365, %v578
      %v580 = vpop.f32.mrf.mxu0
      %581 = vmatprep.mubr.f32.mxu0 0.0
      %582 = vmatmul.mubr.f32.gmra.mxu0 %v390
      %v583 = vpop.f32.mrf.mxu0
      %v584 = vadd.f32 %v365, %v583
      %v585 = vpop.f32.mrf.mxu0
      %586 = vmatprep.mubr.f32.mxu0 0.0
      %587 = vmatmul.mubr.f32.gmra.mxu0 %v393
      %v588 = vpop.f32.mrf.mxu0
      %v589 = vadd.f32 %v365, %v588
      %v590 = vpop.f32.mrf.mxu0
      %591 = vmatprep.mubr.f32.mxu0 0.0
      %592 = vmatmul.mubr.f32.gmra.mxu0 %v396
      %v593 = vpop.f32.mrf.mxu0
      %v594 = vadd.f32 %v365, %v593
      %v595 = vpop.f32.mrf.mxu0
      %596 = vmatprep.mubr.f32.mxu0 0.0
      %597 = vmatmul.mubr.f32.gmra.mxu0 %v399
      %v598 = vpop.f32.mrf.mxu0
      %v599 = vadd.f32 %v365, %v598
      %v600 = vpop.f32.mrf.mxu0
      %601 = vmatprep.mubr.f32.mxu0 0.0
      %602 = vmatmul.mubr.f32.gmra.mxu0 %v402
      %v603 = vpop.f32.mrf.mxu0
      %v604 = vadd.f32 %v365, %v603
      %v605 = vpop.f32.mrf.mxu0
      %606 = vmatprep.mubr.f32.mxu0 0.0
      %607 = vmatmul.mubr.f32.gmra.mxu0 %v405
      %v608 = vpop.f32.mrf.mxu0
      %v609 = vadd.f32 %v365, %v608
      %v610 = vpop.f32.mrf.mxu0
      %611 = vmatprep.mubr.f32.mxu0 0.0
      %612 = vmatmul.mubr.f32.gmra.mxu0 %v408
      %v613 = vpop.f32.mrf.mxu0
      %v614 = vadd.f32 %v365, %v613
      %v615 = vpop.f32.mrf.mxu0
      %616 = vmatprep.mubr.f32.mxu0 0.0
      %617 = vmatmul.mubr.f32.gmra.mxu0 %v411
      %v618 = vpop.f32.mrf.mxu0
      %v619 = vadd.f32 %v365, %v618
      %v620 = vpop.f32.mrf.mxu0
      %621 = vmatprep.mubr.f32.mxu0 0.0
      %622 = vmatmul.mubr.f32.gmra.mxu0 %v414
      %v623 = vpop.f32.mrf.mxu0
      %v624 = vadd.f32 %v365, %v623
      %v625 = vpop.f32.mrf.mxu0
      %626 = vmatprep.mubr.f32.mxu0 0.0
      %627 = vmatmul.mubr.f32.gmra.mxu0 %v417
      %v628 = vpop.f32.mrf.mxu0
      %v629 = vadd.f32 %v365, %v628
      %v630 = vpop.f32.mrf.mxu0
      %631 = vmatprep.mubr.f32.mxu0 0.0
      %632 = vmatmul.mubr.f32.gmra.mxu0 %v420
      %v633 = vpop.f32.mrf.mxu0
      %v634 = vadd.f32 %v365, %v633
      %v635 = vpop.f32.mrf.mxu0
      %636 = vmatprep.mubr.f32.mxu0 0.0
      %637 = vmatmul.mubr.f32.gmra.mxu0 %v423
      %v638 = vpop.f32.mrf.mxu0
      %v639 = vadd.f32 %v365, %v638
      %v640 = vpop.f32.mrf.mxu0
      %641 = vmatprep.mubr.f32.mxu0 0.0
      %642 = vmatmul.mubr.f32.gmra.mxu0 %v426
      %v643 = vpop.f32.mrf.mxu0
      %v644 = vadd.f32 %v365, %v643
      %v645 = vpop.f32.mrf.mxu0
      %646 = vmatprep.mubr.f32.mxu0 0.0
      %647 = vmatmul.mubr.f32.gmra.mxu0 %v429
      %v648 = vpop.f32.mrf.mxu0
      %v649 = vadd.f32 %v365, %v648
      %v650 = vpop.f32.mrf.mxu0
      %651 = vmatprep.mubr.f32.mxu0 0.0
      %652 = vmatmul.mubr.f32.gmra.mxu0 %v432
      %v653 = vpop.f32.mrf.mxu0
      %v654 = vadd.f32 %v365, %v653
      %v655 = vpop.f32.mrf.mxu0
      %656 = vmatprep.mubr.f32.mxu0 0.0
      %657 = vmatmul.mubr.f32.gmra.mxu0 %v435
      %v658 = vpop.f32.mrf.mxu0
      %v659 = vadd.f32 %v365, %v658
      %v660 = vpop.f32.mrf.mxu0
      %661 = vmatprep.mubr.f32.mxu0 0.0
      %662 = vmatmul.mubr.f32.gmra.mxu0 %v438
      %v663 = vpop.f32.mrf.mxu0
      %v664 = vadd.f32 %v365, %v663
      %v665 = vpop.f32.mrf.mxu0
      %666 = vmatprep.mubr.f32.mxu0 0.0
      %667 = vmatmul.mubr.f32.gmra.mxu0 %v441
      %v668 = vpop.f32.mrf.mxu0
      %v669 = vadd.f32 %v365, %v668
      %v670 = vpop.f32.mrf.mxu0
      %671 = vmatprep.mubr.f32.mxu0 0.0
      %672 = vmatmul.mubr.f32.gmra.mxu0 %v444
      %v673 = vpop.f32.mrf.mxu0
      %v674 = vadd.f32 %v365, %v673
      %v675 = vpop.f32.mrf.mxu0
      %676 = vmatprep.mubr.f32.mxu0 0.0
      %677 = vmatmul.mubr.f32.gmra.mxu0 %v447
      %v678 = vpop.f32.mrf.mxu0
      %v679 = vadd.f32 %v365, %v678
      %v680 = vpop.f32.mrf.mxu0
      %681 = vmatprep.mubr.f32.mxu0 0.0
      %682 = vmatmul.mubr.f32.gmra.mxu0 %v450
      %v683 = vpop.f32.mrf.mxu0
      %v684 = vadd.f32 %v365, %v683
      %v685 = vpop.f32.mrf.mxu0
      %686 = vmatprep.mubr.f32.mxu0 0.0
      %687 = vmatmul.mubr.f32.gmra.mxu0 %v453
      %v688 = vpop.f32.mrf.mxu0
      %v689 = vadd.f32 %v365, %v688
      %v690 = vpop.f32.mrf.mxu0
      %691 = vmatprep.mubr.f32.mxu0 0.0
      %692 = vmatmul.mubr.f32.gmra.mxu0 %v456
      %v693 = vpop.f32.mrf.mxu0
      %v694 = vadd.f32 %v365, %v693
      %v695 = vpop.f32.mrf.mxu0
      %696 = vmatprep.mubr.f32.mxu0 0.0
      %697 = vmatmul.mubr.f32.gmra.mxu0 %v459
      %v698 = vpop.f32.mrf.mxu0
      %v699 = vadd.f32 %v365, %v698
      %v700 = vpop.f32.mrf.mxu0
      %701 = vmatprep.mubr.f32.mxu0 0.0
      %702 = vmatmul.mubr.f32.gmra.mxu0 %v462
      %v703 = vpop.f32.mrf.mxu0
      %v704 = vadd.f32 %v365, %v703
      %v705 = vpop.f32.mrf.mxu0
      %706 = vmatprep.mubr.f32.mxu0 0.0
      %707 = vmatmul.mubr.f32.gmra.mxu0 %v465
      %v708 = vpop.f32.mrf.mxu0
      %v709 = vadd.f32 %v365, %v708
      %v710 = vpop.f32.mrf.mxu0
      %711 = vmatprep.mubr.f32.mxu0 0.0
      %712 = vmatmul.mubr.f32.gmra.mxu0 %v468
      %v713 = vpop.f32.mrf.mxu0
      %v714 = vadd.f32 %v365, %v713
      %v715 = vpop.f32.mrf.mxu0
      %716 = vmatprep.mubr.f32.mxu0 0.0
      %717 = vmatmul.mubr.f32.gmra.mxu0 %v471
      %v718 = vpop.f32.mrf.mxu0
      %v719 = vadd.f32 %v365, %v718
      %v720 = vpop.f32.mrf.mxu0
      %721 = vmatprep.mubr.f32.mxu0 0.0
      %722 = vmatmul.mubr.f32.gmra.mxu0 %v474
      %v723 = vpop.f32.mrf.mxu0
      %v724 = vadd.f32 %v365, %v723
      %v725 = vpop.f32.mrf.mxu0
      %726 = vmatprep.mubr.f32.mxu0 0.0
      %727 = vmatmul.mubr.f32.gmra.mxu0 %v477
      %v728 = vpop.f32.mrf.mxu0
      %v729 = vadd.f32 %v365, %v728
      %v730 = vpop.f32.mrf.mxu0
      %731 = vmatprep.mubr.f32.mxu0 0.0
      %732 = vmatmul.mubr.f32.gmra.mxu0 %v480
      %v733 = vpop.f32.mrf.mxu0
      %v734 = vadd.f32 %v365, %v733
      %v735 = vpop.f32.mrf.mxu0
      %736 = vdwg.mxu0
      %v737 = vld [vmem:[%s3] sm:$0xff]
      %v738 = vld [vmem:[%s3 + $0x8] sm:$0xff]
      %v739 = vld [vmem:[%s4] sm:$0x1]
      %v741 = vlaneseq
      %v742 = vshrl.u32 %v741, 7
      %v743 = vsub.s32 0, %v742
      %v744 = vrot.slane %v739, %v743
      %v747 = vsel %vm367, %v549, 0
      %v750 = vsel %vm367, %v554, 0
      %v753 = vsel %vm367, %v559, 0
      %v756 = vsel %vm367, %v564, 0
      %v759 = vsel %vm367, %v569, 0
      %v762 = vsel %vm367, %v574, 0
      %v765 = vsel %vm367, %v579, 0
      %v768 = vsel %vm367, %v584, 0
      %v771 = vsel %vm367, %v589, 0
      %v774 = vsel %vm367, %v594, 0
      %v777 = vsel %vm367, %v599, 0
      %v780 = vsel %vm367, %v604, 0
      %v783 = vsel %vm367, %v609, 0
      %v786 = vsel %vm367, %v614, 0
      %v789 = vsel %vm367, %v619, 0
      %v792 = vsel %vm367, %v624, 0
      %v795 = vsel %vm367, %v629, 0
      %v798 = vsel %vm367, %v634, 0
      %v801 = vsel %vm367, %v639, 0
      %v804 = vsel %vm367, %v644, 0
      %v807 = vsel %vm367, %v649, 0
      %v810 = vsel %vm367, %v654, 0
      %v813 = vsel %vm367, %v659, 0
      %v816 = vsel %vm367, %v664, 0
      %v819 = vsel %vm367, %v669, 0
      %v822 = vsel %vm367, %v674, 0
      %v825 = vsel %vm367, %v679, 0
      %v828 = vsel %vm367, %v684, 0
      %v831 = vsel %vm367, %v689, 0
      %v834 = vsel %vm367, %v694, 0
      %v837 = vsel %vm367, %v699, 0
      %v840 = vsel %vm367, %v704, 0
      %v843 = vsel %vm367, %v709, 0
      %v846 = vsel %vm367, %v714, 0
      %v849 = vsel %vm367, %v719, 0
      %v852 = vsel %vm367, %v724, 0
      %v855 = vsel %vm367, %v729, 0
      %v858 = vsel %vm367, %v734, 0
      %860 = vmatprep.subr.mxu0 0.0
      %861 = vmatpush1.msra.mxu0 0.0
      %862 = vmatprep.subr.mxu0 0.0
      %863 = vmatpush1.msra.mxu0 0.0
      %864 = vmatprep.subr.mxu0 0.0
      %865 = vmatpush1.msra.mxu0 0.0
      %866 = vmatprep.subr.mxu0 0.0
      %867 = vmatpush1.msra.mxu0 0.0
      %868 = vmatprep.subr.mxu0 0.0
      %869 = vmatpush1.msra.mxu0 0.0
      %870 = vmatprep.subr.mxu0 0.0
      %871 = vmatpush1.msra.mxu0 0.0
      %872 = vmatprep.subr.mxu0 0.0
      %873 = vmatpush1.msra.mxu0 0.0
      %874 = vmatprep.subr.mxu0 0.0
      %875 = vmatpush1.msra.mxu0 0.0
      %876 = vmatprep.subr.mxu0 0.0
      %877 = vmatpush1.msra.mxu0 0.0
      %878 = vmatprep.subr.mxu0 0.0
      %879 = vmatpush1.msra.mxu0 0.0
      %880 = vmatprep.subr.mxu0 0.0
      %881 = vmatpush1.msra.mxu0 0.0
      %882 = vmatprep.subr.mxu0 0.0
      %883 = vmatpush1.msra.mxu0 0.0
      %884 = vmatprep.subr.mxu0 0.0
      %885 = vmatpush1.msra.mxu0 0.0
      %886 = vmatprep.subr.mxu0 0.0
      %887 = vmatpush1.msra.mxu0 0.0
      %888 = vmatprep.subr.mxu0 0.0
      %889 = vmatpush1.msra.mxu0 %v738
      %890 = vmatprep.subr.mxu0 0.0
      %891 = vmatpush1.msra.mxu0 %v737
      %892 = vmatprep.subr.mxu0 0.0
      %893 = vmatpush2.msra.mxu0 0.0
      %894 = vmatprep.subr.mxu0 0.0
      %895 = vmatpush2.msra.mxu0 0.0
      %896 = vmatprep.subr.mxu0 0.0
      %897 = vmatpush2.msra.mxu0 0.0
      %898 = vmatprep.subr.mxu0 0.0
      %899 = vmatpush2.msra.mxu0 0.0
      %900 = vmatprep.subr.mxu0 0.0
      %901 = vmatpush2.msra.mxu0 0.0
      %902 = vmatprep.subr.mxu0 0.0
      %903 = vmatpush2.msra.mxu0 0.0
      %904 = vmatprep.subr.mxu0 0.0
      %905 = vmatpush2.msra.mxu0 0.0
      %906 = vmatprep.subr.mxu0 0.0
      %907 = vmatpush2.msra.mxu0 0.0
      %908 = vmatprep.subr.mxu0 0.0
      %909 = vmatpush2.msra.mxu0 0.0
      %910 = vmatprep.subr.mxu0 0.0
      %911 = vmatpush2.msra.mxu0 0.0
      %912 = vmatprep.subr.mxu0 0.0
      %913 = vmatpush2.msra.mxu0 0.0
      %914 = vmatprep.subr.mxu0 0.0
      %915 = vmatpush2.msra.mxu0 0.0
      %916 = vmatprep.subr.mxu0 0.0
      %917 = vmatpush2.msra.mxu0 0.0
      %918 = vmatprep.subr.mxu0 0.0
      %919 = vmatpush2.msra.mxu0 0.0
      %920 = vmatprep.subr.mxu0 0.0
      %921 = vmatpush2.msra.mxu0 0.0
      %922 = vmatprep.subr.mxu0 0.0
      %923 = vmatpush2.msra.mxu0 0.0
      %924 = vmatprep.mubr.f32.mxu0 0.0
      %925 = vmatmul.mubr.f32.gmra.mxu0 %v747
      %v926 = vpop.f32.mrf.mxu0
      %v927 = vadd.f32 %v744, %v926
      %v928 = vpop.f32.mrf.mxu0
      %929 = vmatprep.mubr.f32.mxu0 0.0
      %930 = vmatmul.mubr.f32.gmra.mxu0 %v750
      %v931 = vpop.f32.mrf.mxu0
      %v932 = vadd.f32 %v744, %v931
      %v933 = vpop.f32.mrf.mxu0
      %934 = vmatprep.mubr.f32.mxu0 0.0
      %935 = vmatmul.mubr.f32.gmra.mxu0 %v753
      %v936 = vpop.f32.mrf.mxu0
      %v937 = vadd.f32 %v744, %v936
      %v938 = vpop.f32.mrf.mxu0
      %939 = vmatprep.mubr.f32.mxu0 0.0
      %940 = vmatmul.mubr.f32.gmra.mxu0 %v756
      %v941 = vpop.f32.mrf.mxu0
      %v942 = vadd.f32 %v744, %v941
      %v943 = vpop.f32.mrf.mxu0
      %944 = vmatprep.mubr.f32.mxu0 0.0
      %945 = vmatmul.mubr.f32.gmra.mxu0 %v759
      %v946 = vpop.f32.mrf.mxu0
      %v947 = vadd.f32 %v744, %v946
      %v948 = vpop.f32.mrf.mxu0
      %949 = vmatprep.mubr.f32.mxu0 0.0
      %950 = vmatmul.mubr.f32.gmra.mxu0 %v762
      %v951 = vpop.f32.mrf.mxu0
      %v952 = vadd.f32 %v744, %v951
      %v953 = vpop.f32.mrf.mxu0
      %954 = vmatprep.mubr.f32.mxu0 0.0
      %955 = vmatmul.mubr.f32.gmra.mxu0 %v765
      %v956 = vpop.f32.mrf.mxu0
      %v957 = vadd.f32 %v744, %v956
      %v958 = vpop.f32.mrf.mxu0
      %959 = vmatprep.mubr.f32.mxu0 0.0
      %960 = vmatmul.mubr.f32.gmra.mxu0 %v768
      %v961 = vpop.f32.mrf.mxu0
      %v962 = vadd.f32 %v744, %v961
      %v963 = vpop.f32.mrf.mxu0
      %964 = vmatprep.mubr.f32.mxu0 0.0
      %965 = vmatmul.mubr.f32.gmra.mxu0 %v771
      %v966 = vpop.f32.mrf.mxu0
      %v967 = vadd.f32 %v744, %v966
      %v968 = vpop.f32.mrf.mxu0
      %969 = vmatprep.mubr.f32.mxu0 0.0
      %970 = vmatmul.mubr.f32.gmra.mxu0 %v774
      %v971 = vpop.f32.mrf.mxu0
      %v972 = vadd.f32 %v744, %v971
      %v973 = vpop.f32.mrf.mxu0
      %974 = vmatprep.mubr.f32.mxu0 0.0
      %975 = vmatmul.mubr.f32.gmra.mxu0 %v777
      %v976 = vpop.f32.mrf.mxu0
      %v977 = vadd.f32 %v744, %v976
      %v978 = vpop.f32.mrf.mxu0
      %979 = vmatprep.mubr.f32.mxu0 0.0
      %980 = vmatmul.mubr.f32.gmra.mxu0 %v780
      %v981 = vpop.f32.mrf.mxu0
      %v982 = vadd.f32 %v744, %v981
      %v983 = vpop.f32.mrf.mxu0
      %984 = vmatprep.mubr.f32.mxu0 0.0
      %985 = vmatmul.mubr.f32.gmra.mxu0 %v783
      %v986 = vpop.f32.mrf.mxu0
      %v987 = vadd.f32 %v744, %v986
      %v988 = vpop.f32.mrf.mxu0
      %989 = vmatprep.mubr.f32.mxu0 0.0
      %990 = vmatmul.mubr.f32.gmra.mxu0 %v786
      %v991 = vpop.f32.mrf.mxu0
      %v992 = vadd.f32 %v744, %v991
      %v993 = vpop.f32.mrf.mxu0
      %994 = vmatprep.mubr.f32.mxu0 0.0
      %995 = vmatmul.mubr.f32.gmra.mxu0 %v789
      %v996 = vpop.f32.mrf.mxu0
      %v997 = vadd.f32 %v744, %v996
      %v998 = vpop.f32.mrf.mxu0
      %999 = vmatprep.mubr.f32.mxu0 0.0
      %1000 = vmatmul.mubr.f32.gmra.mxu0 %v792
      %v1001 = vpop.f32.mrf.mxu0
      %v1002 = vadd.f32 %v744, %v1001
      %v1003 = vpop.f32.mrf.mxu0
      %1004 = vmatprep.mubr.f32.mxu0 0.0
      %1005 = vmatmul.mubr.f32.gmra.mxu0 %v795
      %v1006 = vpop.f32.mrf.mxu0
      %v1007 = vadd.f32 %v744, %v1006
      %v1008 = vpop.f32.mrf.mxu0
      %1009 = vmatprep.mubr.f32.mxu0 0.0
      %1010 = vmatmul.mubr.f32.gmra.mxu0 %v798
      %v1011 = vpop.f32.mrf.mxu0
      %v1012 = vadd.f32 %v744, %v1011
      %v1013 = vpop.f32.mrf.mxu0
      %1014 = vmatprep.mubr.f32.mxu0 0.0
      %1015 = vmatmul.mubr.f32.gmra.mxu0 %v801
      %v1016 = vpop.f32.mrf.mxu0
      %v1017 = vadd.f32 %v744, %v1016
      %v1018 = vpop.f32.mrf.mxu0
      %1019 = vmatprep.mubr.f32.mxu0 0.0
      %1020 = vmatmul.mubr.f32.gmra.mxu0 %v804
      %v1021 = vpop.f32.mrf.mxu0
      %v1022 = vadd.f32 %v744, %v1021
      %v1023 = vpop.f32.mrf.mxu0
      %1024 = vmatprep.mubr.f32.mxu0 0.0
      %1025 = vmatmul.mubr.f32.gmra.mxu0 %v807
      %v1026 = vpop.f32.mrf.mxu0
      %v1027 = vadd.f32 %v744, %v1026
      %v1028 = vpop.f32.mrf.mxu0
      %1029 = vmatprep.mubr.f32.mxu0 0.0
      %1030 = vmatmul.mubr.f32.gmra.mxu0 %v810
      %v1031 = vpop.f32.mrf.mxu0
      %v1032 = vadd.f32 %v744, %v1031
      %v1033 = vpop.f32.mrf.mxu0
      %1034 = vmatprep.mubr.f32.mxu0 0.0
      %1035 = vmatmul.mubr.f32.gmra.mxu0 %v813
      %v1036 = vpop.f32.mrf.mxu0
      %v1037 = vadd.f32 %v744, %v1036
      %v1038 = vpop.f32.mrf.mxu0
      %1039 = vmatprep.mubr.f32.mxu0 0.0
      %1040 = vmatmul.mubr.f32.gmra.mxu0 %v816
      %v1041 = vpop.f32.mrf.mxu0
      %v1042 = vadd.f32 %v744, %v1041
      %v1043 = vpop.f32.mrf.mxu0
      %1044 = vmatprep.mubr.f32.mxu0 0.0
      %1045 = vmatmul.mubr.f32.gmra.mxu0 %v819
      %v1046 = vpop.f32.mrf.mxu0
      %v1047 = vadd.f32 %v744, %v1046
      %v1048 = vpop.f32.mrf.mxu0
      %1049 = vmatprep.mubr.f32.mxu0 0.0
      %1050 = vmatmul.mubr.f32.gmra.mxu0 %v822
      %v1051 = vpop.f32.mrf.mxu0
      %v1052 = vadd.f32 %v744, %v1051
      %v1053 = vpop.f32.mrf.mxu0
      %1054 = vmatprep.mubr.f32.mxu0 0.0
      %1055 = vmatmul.mubr.f32.gmra.mxu0 %v825
      %v1056 = vpop.f32.mrf.mxu0
      %v1057 = vadd.f32 %v744, %v1056
      %v1058 = vpop.f32.mrf.mxu0
      %1059 = vmatprep.mubr.f32.mxu0 0.0
      %1060 = vmatmul.mubr.f32.gmra.mxu0 %v828
      %v1061 = vpop.f32.mrf.mxu0
      %v1062 = vadd.f32 %v744, %v1061
      %v1063 = vpop.f32.mrf.mxu0
      %1064 = vmatprep.mubr.f32.mxu0 0.0
      %1065 = vmatmul.mubr.f32.gmra.mxu0 %v831
      %v1066 = vpop.f32.mrf.mxu0
      %v1067 = vadd.f32 %v744, %v1066
      %v1068 = vpop.f32.mrf.mxu0
      %1069 = vmatprep.mubr.f32.mxu0 0.0
      %1070 = vmatmul.mubr.f32.gmra.mxu0 %v834
      %v1071 = vpop.f32.mrf.mxu0
      %v1072 = vadd.f32 %v744, %v1071
      %v1073 = vpop.f32.mrf.mxu0
      %1074 = vmatprep.mubr.f32.mxu0 0.0
      %1075 = vmatmul.mubr.f32.gmra.mxu0 %v837
      %v1076 = vpop.f32.mrf.mxu0
      %v1077 = vadd.f32 %v744, %v1076
      %v1078 = vpop.f32.mrf.mxu0
      %1079 = vmatprep.mubr.f32.mxu0 0.0
      %1080 = vmatmul.mubr.f32.gmra.mxu0 %v840
      %v1081 = vpop.f32.mrf.mxu0
      %v1082 = vadd.f32 %v744, %v1081
      %v1083 = vpop.f32.mrf.mxu0
      %1084 = vmatprep.mubr.f32.mxu0 0.0
      %1085 = vmatmul.mubr.f32.gmra.mxu0 %v843
      %v1086 = vpop.f32.mrf.mxu0
      %v1087 = vadd.f32 %v744, %v1086
      %v1088 = vpop.f32.mrf.mxu0
      %1089 = vmatprep.mubr.f32.mxu0 0.0
      %1090 = vmatmul.mubr.f32.gmra.mxu0 %v846
      %v1091 = vpop.f32.mrf.mxu0
      %v1092 = vadd.f32 %v744, %v1091
      %v1093 = vpop.f32.mrf.mxu0
      %1094 = vmatprep.mubr.f32.mxu0 0.0
      %1095 = vmatmul.mubr.f32.gmra.mxu0 %v849
      %v1096 = vpop.f32.mrf.mxu0
      %v1097 = vadd.f32 %v744, %v1096
      %v1098 = vpop.f32.mrf.mxu0
      %1099 = vmatprep.mubr.f32.mxu0 0.0
      %1100 = vmatmul.mubr.f32.gmra.mxu0 %v852
      %v1101 = vpop.f32.mrf.mxu0
      %v1102 = vadd.f32 %v744, %v1101
      %v1103 = vpop.f32.mrf.mxu0
      %1104 = vmatprep.mubr.f32.mxu0 0.0
      %1105 = vmatmul.mubr.f32.gmra.mxu0 %v855
      %v1106 = vpop.f32.mrf.mxu0
      %v1107 = vadd.f32 %v744, %v1106
      %v1108 = vpop.f32.mrf.mxu0
      %1109 = vmatprep.mubr.f32.mxu0 0.0
      %1110 = vmatmul.mubr.f32.gmra.mxu0 %v858
      %v1111 = vpop.f32.mrf.mxu0
      %v1112 = vadd.f32 %v744, %v1111
      %v1113 = vpop.f32.mrf.mxu0
      %1114 = vdwg.mxu0
      %v1115 = vtanh.pop %v927
      %v1116 = vtanh.pop %v932
      %v1117 = vtanh.pop %v937
      %v1118 = vtanh.pop %v942
      %v1119 = vtanh.pop %v947
      %v1120 = vtanh.pop %v952
      %v1121 = vtanh.pop %v957
      %v1122 = vtanh.pop %v962
      %v1123 = vtanh.pop %v967
      %v1124 = vtanh.pop %v972
      %v1125 = vtanh.pop %v977
      %v1126 = vtanh.pop %v982
      %v1127 = vtanh.pop %v987
      %v1128 = vtanh.pop %v992
      %v1129 = vtanh.pop %v997
      %v1130 = vtanh.pop %v1002
      %v1131 = vtanh.pop %v1007
      %v1132 = vtanh.pop %v1012
      %v1133 = vtanh.pop %v1017
      %v1134 = vtanh.pop %v1022
      %v1135 = vtanh.pop %v1027
      %v1136 = vtanh.pop %v1032
      %v1137 = vtanh.pop %v1037
      %v1138 = vtanh.pop %v1042
      %v1139 = vtanh.pop %v1047
      %v1140 = vtanh.pop %v1052
      %v1141 = vtanh.pop %v1057
      %v1142 = vtanh.pop %v1062
      %v1143 = vtanh.pop %v1067
      %v1144 = vtanh.pop %v1072
      %v1145 = vtanh.pop %v1077
      %v1146 = vtanh.pop %v1082
      %v1147 = vtanh.pop %v1087
      %v1148 = vtanh.pop %v1092
      %v1149 = vtanh.pop %v1097
      %v1150 = vtanh.pop %v1102
      %v1151 = vtanh.pop %v1107
      %v1152 = vtanh.pop %v1112
      %v1153 = vld [vmem:[%s5] sm:$0xff]
      %v1154 = vld [vmem:[%s5 + $0x8] sm:$0xff]
      %v1155 = vld [vmem:[%s6] sm:$0x1]
      %v1157 = vlaneseq
      %v1158 = vshrl.u32 %v1157, 7
      %v1159 = vsub.s32 0, %v1158
      %v1160 = vrot.slane %v1155, %v1159
      %1162 = vmatprep.subr.mxu0 0.0
      %1163 = vmatpush1.msra.mxu0 0.0
      %1164 = vmatprep.subr.mxu0 0.0
      %1165 = vmatpush1.msra.mxu0 0.0
      %1166 = vmatprep.subr.mxu0 0.0
      %1167 = vmatpush1.msra.mxu0 0.0
      %1168 = vmatprep.subr.mxu0 0.0
      %1169 = vmatpush1.msra.mxu0 0.0
      %1170 = vmatprep.subr.mxu0 0.0
      %1171 = vmatpush1.msra.mxu0 0.0
      %1172 = vmatprep.subr.mxu0 0.0
      %1173 = vmatpush1.msra.mxu0 0.0
      %1174 = vmatprep.subr.mxu0 0.0
      %1175 = vmatpush1.msra.mxu0 0.0
      %1176 = vmatprep.subr.mxu0 0.0
      %1177 = vmatpush1.msra.mxu0 0.0
      %1178 = vmatprep.subr.mxu0 0.0
      %1179 = vmatpush1.msra.mxu0 0.0
      %1180 = vmatprep.subr.mxu0 0.0
      %1181 = vmatpush1.msra.mxu0 0.0
      %1182 = vmatprep.subr.mxu0 0.0
      %1183 = vmatpush1.msra.mxu0 0.0
      %1184 = vmatprep.subr.mxu0 0.0
      %1185 = vmatpush1.msra.mxu0 0.0
      %1186 = vmatprep.subr.mxu0 0.0
      %1187 = vmatpush1.msra.mxu0 0.0
      %1188 = vmatprep.subr.mxu0 0.0
      %1189 = vmatpush1.msra.mxu0 0.0
      %1190 = vmatprep.subr.mxu0 0.0
      %1191 = vmatpush1.msra.mxu0 %v1154
      %1192 = vmatprep.subr.mxu0 0.0
      %1193 = vmatpush1.msra.mxu0 %v1153
      %1194 = vmatprep.subr.mxu0 0.0
      %1195 = vmatpush2.msra.mxu0 0.0
      %1196 = vmatprep.subr.mxu0 0.0
      %1197 = vmatpush2.msra.mxu0 0.0
      %1198 = vmatprep.subr.mxu0 0.0
      %1199 = vmatpush2.msra.mxu0 0.0
      %1200 = vmatprep.subr.mxu0 0.0
      %1201 = vmatpush2.msra.mxu0 0.0
      %1202 = vmatprep.subr.mxu0 0.0
      %1203 = vmatpush2.msra.mxu0 0.0
      %1204 = vmatprep.subr.mxu0 0.0
      %1205 = vmatpush2.msra.mxu0 0.0
      %1206 = vmatprep.subr.mxu0 0.0
      %1207 = vmatpush2.msra.mxu0 0.0
      %1208 = vmatprep.subr.mxu0 0.0
      %1209 = vmatpush2.msra.mxu0 0.0
      %1210 = vmatprep.subr.mxu0 0.0
      %1211 = vmatpush2.msra.mxu0 0.0
      %1212 = vmatprep.subr.mxu0 0.0
      %1213 = vmatpush2.msra.mxu0 0.0
      %1214 = vmatprep.subr.mxu0 0.0
      %1215 = vmatpush2.msra.mxu0 0.0
      %1216 = vmatprep.subr.mxu0 0.0
      %1217 = vmatpush2.msra.mxu0 0.0
      %1218 = vmatprep.subr.mxu0 0.0
      %1219 = vmatpush2.msra.mxu0 0.0
      %1220 = vmatprep.subr.mxu0 0.0
      %1221 = vmatpush2.msra.mxu0 0.0
      %1222 = vmatprep.subr.mxu0 0.0
      %1223 = vmatpush2.msra.mxu0 0.0
      %1224 = vmatprep.subr.mxu0 0.0
      %1225 = vmatpush2.msra.mxu0 0.0
      %1226 = vmatprep.mubr.f32.mxu0 0.0
      %1227 = vmatmul.mubr.f32.gmra.mxu0 %v747
      %v1228 = vpop.f32.mrf.mxu0
      %v1229 = vadd.f32 %v1160, %v1228
      %v1230 = vpop.f32.mrf.mxu0
      %1231 = vmatprep.mubr.f32.mxu0 0.0
      %1232 = vmatmul.mubr.f32.gmra.mxu0 %v750
      %v1233 = vpop.f32.mrf.mxu0
      %v1234 = vadd.f32 %v1160, %v1233
      %v1235 = vpop.f32.mrf.mxu0
      %1236 = vmatprep.mubr.f32.mxu0 0.0
      %1237 = vmatmul.mubr.f32.gmra.mxu0 %v753
      %v1238 = vpop.f32.mrf.mxu0
      %v1239 = vadd.f32 %v1160, %v1238
      %v1240 = vpop.f32.mrf.mxu0
      %1241 = vmatprep.mubr.f32.mxu0 0.0
      %1242 = vmatmul.mubr.f32.gmra.mxu0 %v756
      %v1243 = vpop.f32.mrf.mxu0
      %v1244 = vadd.f32 %v1160, %v1243
      %v1245 = vpop.f32.mrf.mxu0
      %1246 = vmatprep.mubr.f32.mxu0 0.0
      %1247 = vmatmul.mubr.f32.gmra.mxu0 %v759
      %v1248 = vpop.f32.mrf.mxu0
      %v1249 = vadd.f32 %v1160, %v1248
      %v1250 = vpop.f32.mrf.mxu0
      %1251 = vmatprep.mubr.f32.mxu0 0.0
      %1252 = vmatmul.mubr.f32.gmra.mxu0 %v762
      %v1253 = vpop.f32.mrf.mxu0
      %v1254 = vadd.f32 %v1160, %v1253
      %v1255 = vpop.f32.mrf.mxu0
      %1256 = vmatprep.mubr.f32.mxu0 0.0
      %1257 = vmatmul.mubr.f32.gmra.mxu0 %v765
      %v1258 = vpop.f32.mrf.mxu0
      %v1259 = vadd.f32 %v1160, %v1258
      %v1260 = vpop.f32.mrf.mxu0
      %1261 = vmatprep.mubr.f32.mxu0 0.0
      %1262 = vmatmul.mubr.f32.gmra.mxu0 %v768
      %v1263 = vpop.f32.mrf.mxu0
      %v1264 = vadd.f32 %v1160, %v1263
      %v1265 = vpop.f32.mrf.mxu0
      %1266 = vmatprep.mubr.f32.mxu0 0.0
      %1267 = vmatmul.mubr.f32.gmra.mxu0 %v771
      %v1268 = vpop.f32.mrf.mxu0
      %v1269 = vadd.f32 %v1160, %v1268
      %v1270 = vpop.f32.mrf.mxu0
      %1271 = vmatprep.mubr.f32.mxu0 0.0
      %1272 = vmatmul.mubr.f32.gmra.mxu0 %v774
      %v1273 = vpop.f32.mrf.mxu0
      %v1274 = vadd.f32 %v1160, %v1273
      %v1275 = vpop.f32.mrf.mxu0
      %1276 = vmatprep.mubr.f32.mxu0 0.0
      %1277 = vmatmul.mubr.f32.gmra.mxu0 %v777
      %v1278 = vpop.f32.mrf.mxu0
      %v1279 = vadd.f32 %v1160, %v1278
      %v1280 = vpop.f32.mrf.mxu0
      %1281 = vmatprep.mubr.f32.mxu0 0.0
      %1282 = vmatmul.mubr.f32.gmra.mxu0 %v780
      %v1283 = vpop.f32.mrf.mxu0
      %v1284 = vadd.f32 %v1160, %v1283
      %v1285 = vpop.f32.mrf.mxu0
      %1286 = vmatprep.mubr.f32.mxu0 0.0
      %1287 = vmatmul.mubr.f32.gmra.mxu0 %v783
      %v1288 = vpop.f32.mrf.mxu0
      %v1289 = vadd.f32 %v1160, %v1288
      %v1290 = vpop.f32.mrf.mxu0
      %1291 = vmatprep.mubr.f32.mxu0 0.0
      %1292 = vmatmul.mubr.f32.gmra.mxu0 %v786
      %v1293 = vpop.f32.mrf.mxu0
      %v1294 = vadd.f32 %v1160, %v1293
      %v1295 = vpop.f32.mrf.mxu0
      %1296 = vmatprep.mubr.f32.mxu0 0.0
      %1297 = vmatmul.mubr.f32.gmra.mxu0 %v789
      %v1298 = vpop.f32.mrf.mxu0
      %v1299 = vadd.f32 %v1160, %v1298
      %v1300 = vpop.f32.mrf.mxu0
      %1301 = vmatprep.mubr.f32.mxu0 0.0
      %1302 = vmatmul.mubr.f32.gmra.mxu0 %v792
      %v1303 = vpop.f32.mrf.mxu0
      %v1304 = vadd.f32 %v1160, %v1303
      %v1305 = vpop.f32.mrf.mxu0
      %1306 = vmatprep.mubr.f32.mxu0 0.0
      %1307 = vmatmul.mubr.f32.gmra.mxu0 %v795
      %v1308 = vpop.f32.mrf.mxu0
      %v1309 = vadd.f32 %v1160, %v1308
      %v1310 = vpop.f32.mrf.mxu0
      %1311 = vmatprep.mubr.f32.mxu0 0.0
      %1312 = vmatmul.mubr.f32.gmra.mxu0 %v798
      %v1313 = vpop.f32.mrf.mxu0
      %v1314 = vadd.f32 %v1160, %v1313
      %v1315 = vpop.f32.mrf.mxu0
      %1316 = vmatprep.mubr.f32.mxu0 0.0
      %1317 = vmatmul.mubr.f32.gmra.mxu0 %v801
      %v1318 = vpop.f32.mrf.mxu0
      %v1319 = vadd.f32 %v1160, %v1318
      %v1320 = vpop.f32.mrf.mxu0
      %1321 = vmatprep.mubr.f32.mxu0 0.0
      %1322 = vmatmul.mubr.f32.gmra.mxu0 %v804
      %v1323 = vpop.f32.mrf.mxu0
      %v1324 = vadd.f32 %v1160, %v1323
      %v1325 = vpop.f32.mrf.mxu0
      %1326 = vmatprep.mubr.f32.mxu0 0.0
      %1327 = vmatmul.mubr.f32.gmra.mxu0 %v807
      %v1328 = vpop.f32.mrf.mxu0
      %v1329 = vadd.f32 %v1160, %v1328
      %v1330 = vpop.f32.mrf.mxu0
      %1331 = vmatprep.mubr.f32.mxu0 0.0
      %1332 = vmatmul.mubr.f32.gmra.mxu0 %v810
      %v1333 = vpop.f32.mrf.mxu0
      %v1334 = vadd.f32 %v1160, %v1333
      %v1335 = vpop.f32.mrf.mxu0
      %1336 = vmatprep.mubr.f32.mxu0 0.0
      %1337 = vmatmul.mubr.f32.gmra.mxu0 %v813
      %v1338 = vpop.f32.mrf.mxu0
      %v1339 = vadd.f32 %v1160, %v1338
      %v1340 = vpop.f32.mrf.mxu0
      %1341 = vmatprep.mubr.f32.mxu0 0.0
      %1342 = vmatmul.mubr.f32.gmra.mxu0 %v816
      %v1343 = vpop.f32.mrf.mxu0
      %v1344 = vadd.f32 %v1160, %v1343
      %v1345 = vpop.f32.mrf.mxu0
      %1346 = vmatprep.mubr.f32.mxu0 0.0
      %1347 = vmatmul.mubr.f32.gmra.mxu0 %v819
      %v1348 = vpop.f32.mrf.mxu0
      %v1349 = vadd.f32 %v1160, %v1348
      %v1350 = vpop.f32.mrf.mxu0
      %1351 = vmatprep.mubr.f32.mxu0 0.0
      %1352 = vmatmul.mubr.f32.gmra.mxu0 %v822
      %v1353 = vpop.f32.mrf.mxu0
      %v1354 = vadd.f32 %v1160, %v1353
      %v1355 = vpop.f32.mrf.mxu0
      %1356 = vmatprep.mubr.f32.mxu0 0.0
      %1357 = vmatmul.mubr.f32.gmra.mxu0 %v825
      %v1358 = vpop.f32.mrf.mxu0
      %v1359 = vadd.f32 %v1160, %v1358
      %v1360 = vpop.f32.mrf.mxu0
      %1361 = vmatprep.mubr.f32.mxu0 0.0
      %1362 = vmatmul.mubr.f32.gmra.mxu0 %v828
      %v1363 = vpop.f32.mrf.mxu0
      %v1364 = vadd.f32 %v1160, %v1363
      %v1365 = vpop.f32.mrf.mxu0
      %1366 = vmatprep.mubr.f32.mxu0 0.0
      %1367 = vmatmul.mubr.f32.gmra.mxu0 %v831
      %v1368 = vpop.f32.mrf.mxu0
      %v1369 = vadd.f32 %v1160, %v1368
      %v1370 = vpop.f32.mrf.mxu0
      %1371 = vmatprep.mubr.f32.mxu0 0.0
      %1372 = vmatmul.mubr.f32.gmra.mxu0 %v834
      %v1373 = vpop.f32.mrf.mxu0
      %v1374 = vadd.f32 %v1160, %v1373
      %v1375 = vpop.f32.mrf.mxu0
      %1376 = vmatprep.mubr.f32.mxu0 0.0
      %1377 = vmatmul.mubr.f32.gmra.mxu0 %v837
      %v1378 = vpop.f32.mrf.mxu0
      %v1379 = vadd.f32 %v1160, %v1378
      %v1380 = vpop.f32.mrf.mxu0
      %1381 = vmatprep.mubr.f32.mxu0 0.0
      %1382 = vmatmul.mubr.f32.gmra.mxu0 %v840
      %v1383 = vpop.f32.mrf.mxu0
      %v1384 = vadd.f32 %v1160, %v1383
      %v1385 = vpop.f32.mrf.mxu0
      %1386 = vmatprep.mubr.f32.mxu0 0.0
      %1387 = vmatmul.mubr.f32.gmra.mxu0 %v843
      %v1388 = vpop.f32.mrf.mxu0
      %v1389 = vadd.f32 %v1160, %v1388
      %v1390 = vpop.f32.mrf.mxu0
      %1391 = vmatprep.mubr.f32.mxu0 0.0
      %1392 = vmatmul.mubr.f32.gmra.mxu0 %v846
      %v1393 = vpop.f32.mrf.mxu0
      %v1394 = vadd.f32 %v1160, %v1393
      %v1395 = vpop.f32.mrf.mxu0
      %1396 = vmatprep.mubr.f32.mxu0 0.0
      %1397 = vmatmul.mubr.f32.gmra.mxu0 %v849
      %v1398 = vpop.f32.mrf.mxu0
      %v1399 = vadd.f32 %v1160, %v1398
      %v1400 = vpop.f32.mrf.mxu0
      %1401 = vmatprep.mubr.f32.mxu0 0.0
      %1402 = vmatmul.mubr.f32.gmra.mxu0 %v852
      %v1403 = vpop.f32.mrf.mxu0
      %v1404 = vadd.f32 %v1160, %v1403
      %v1405 = vpop.f32.mrf.mxu0
      %1406 = vmatprep.mubr.f32.mxu0 0.0
      %1407 = vmatmul.mubr.f32.gmra.mxu0 %v855
      %v1408 = vpop.f32.mrf.mxu0
      %v1409 = vadd.f32 %v1160, %v1408
      %v1410 = vpop.f32.mrf.mxu0
      %1411 = vmatprep.mubr.f32.mxu0 0.0
      %1412 = vmatmul.mubr.f32.gmra.mxu0 %v858
      %v1413 = vpop.f32.mrf.mxu0
      %v1414 = vadd.f32 %v1160, %v1413
      %v1415 = vpop.f32.mrf.mxu0
      %1416 = vdwg.mxu0
      %v1417 = vxor.u32 %v1229, 2147483648
      %v1418 = vxor.u32 %v1234, 2147483648
      %v1419 = vxor.u32 %v1239, 2147483648
      %v1420 = vxor.u32 %v1244, 2147483648
      %v1421 = vxor.u32 %v1249, 2147483648
      %v1422 = vxor.u32 %v1254, 2147483648
      %v1423 = vxor.u32 %v1259, 2147483648
      %v1424 = vxor.u32 %v1264, 2147483648
      %v1425 = vxor.u32 %v1269, 2147483648
      %v1426 = vxor.u32 %v1274, 2147483648
      %v1427 = vxor.u32 %v1279, 2147483648
      %v1428 = vxor.u32 %v1284, 2147483648
      %v1429 = vxor.u32 %v1289, 2147483648
      %v1430 = vxor.u32 %v1294, 2147483648
      %v1431 = vxor.u32 %v1299, 2147483648
      %v1432 = vxor.u32 %v1304, 2147483648
      %v1433 = vxor.u32 %v1309, 2147483648
      %v1434 = vxor.u32 %v1314, 2147483648
      %v1435 = vxor.u32 %v1319, 2147483648
      %v1436 = vxor.u32 %v1324, 2147483648
      %v1437 = vxor.u32 %v1329, 2147483648
      %v1438 = vxor.u32 %v1334, 2147483648
      %v1439 = vxor.u32 %v1339, 2147483648
      %v1440 = vxor.u32 %v1344, 2147483648
      %v1441 = vxor.u32 %v1349, 2147483648
      %v1442 = vxor.u32 %v1354, 2147483648
      %v1443 = vxor.u32 %v1359, 2147483648
      %v1444 = vxor.u32 %v1364, 2147483648
      %v1445 = vxor.u32 %v1369, 2147483648
      %v1446 = vxor.u32 %v1374, 2147483648
      %v1447 = vxor.u32 %v1379, 2147483648
      %v1448 = vxor.u32 %v1384, 2147483648
      %v1449 = vxor.u32 %v1389, 2147483648
      %v1450 = vxor.u32 %v1394, 2147483648
      %v1451 = vxor.u32 %v1399, 2147483648
      %v1452 = vxor.u32 %v1404, 2147483648
      %v1453 = vxor.u32 %v1409, 2147483648
      %v1454 = vxor.u32 %v1414, 2147483648
      %v1455 = vmul.f32 %v1417, 1.442695
      %v1456 = vpow.pop %v1455
      %v1457 = vmul.f32 %v1418, 1.442695
      %v1458 = vpow.pop %v1457
      %v1459 = vmul.f32 %v1419, 1.442695
      %v1460 = vpow.pop %v1459
      %v1461 = vmul.f32 %v1420, 1.442695
      %v1462 = vpow.pop %v1461
      %v1463 = vmul.f32 %v1421, 1.442695
      %v1464 = vpow.pop %v1463
      %v1465 = vmul.f32 %v1422, 1.442695
      %v1466 = vpow.pop %v1465
      %v1467 = vmul.f32 %v1423, 1.442695
      %v1468 = vpow.pop %v1467
      %v1469 = vmul.f32 %v1424, 1.442695
      %v1470 = vpow.pop %v1469
      %v1471 = vmul.f32 %v1425, 1.442695
      %v1472 = vpow.pop %v1471
      %v1473 = vmul.f32 %v1426, 1.442695
      %v1474 = vpow.pop %v1473
      %v1475 = vmul.f32 %v1427, 1.442695
      %v1476 = vpow.pop %v1475
      %v1477 = vmul.f32 %v1428, 1.442695
      %v1478 = vpow.pop %v1477
      %v1479 = vmul.f32 %v1429, 1.442695
      %v1480 = vpow.pop %v1479
      %v1481 = vmul.f32 %v1430, 1.442695
      %v1482 = vpow.pop %v1481
      %v1483 = vmul.f32 %v1431, 1.442695
      %v1484 = vpow.pop %v1483
      %v1485 = vmul.f32 %v1432, 1.442695
      %v1486 = vpow.pop %v1485
      %v1487 = vmul.f32 %v1433, 1.442695
      %v1488 = vpow.pop %v1487
      %v1489 = vmul.f32 %v1434, 1.442695
      %v1490 = vpow.pop %v1489
      %v1491 = vmul.f32 %v1435, 1.442695
      %v1492 = vpow.pop %v1491
      %v1493 = vmul.f32 %v1436, 1.442695
      %v1494 = vpow.pop %v1493
      %v1495 = vmul.f32 %v1437, 1.442695
      %v1496 = vpow.pop %v1495
      %v1497 = vmul.f32 %v1438, 1.442695
      %v1498 = vpow.pop %v1497
      %v1499 = vmul.f32 %v1439, 1.442695
      %v1500 = vpow.pop %v1499
      %v1501 = vmul.f32 %v1440, 1.442695
      %v1502 = vpow.pop %v1501
      %v1503 = vmul.f32 %v1441, 1.442695
      %v1504 = vpow.pop %v1503
      %v1505 = vmul.f32 %v1442, 1.442695
      %v1506 = vpow.pop %v1505
      %v1507 = vmul.f32 %v1443, 1.442695
      %v1508 = vpow.pop %v1507
      %v1509 = vmul.f32 %v1444, 1.442695
      %v1510 = vpow.pop %v1509
      %v1511 = vmul.f32 %v1445, 1.442695
      %v1512 = vpow.pop %v1511
      %v1513 = vmul.f32 %v1446, 1.442695
      %v1514 = vpow.pop %v1513
      %v1515 = vmul.f32 %v1447, 1.442695
      %v1516 = vpow.pop %v1515
      %v1517 = vmul.f32 %v1448, 1.442695
      %v1518 = vpow.pop %v1517
      %v1519 = vmul.f32 %v1449, 1.442695
      %v1520 = vpow.pop %v1519
      %v1521 = vmul.f32 %v1450, 1.442695
      %v1522 = vpow.pop %v1521
      %v1523 = vmul.f32 %v1451, 1.442695
      %v1524 = vpow.pop %v1523
      %v1525 = vmul.f32 %v1452, 1.442695
      %v1526 = vpow.pop %v1525
      %v1527 = vmul.f32 %v1453, 1.442695
      %v1528 = vpow.pop %v1527
      %v1529 = vmul.f32 %v1454, 1.442695
      %v1530 = vpow.pop %v1529
      %v1531 = vadd.f32 %v1456, 1.0
      %v1532 = vadd.f32 %v1458, 1.0
      %v1533 = vadd.f32 %v1460, 1.0
      %v1534 = vadd.f32 %v1462, 1.0
      %v1535 = vadd.f32 %v1464, 1.0
      %v1536 = vadd.f32 %v1466, 1.0
      %v1537 = vadd.f32 %v1468, 1.0
      %v1538 = vadd.f32 %v1470, 1.0
      %v1539 = vadd.f32 %v1472, 1.0
      %v1540 = vadd.f32 %v1474, 1.0
      %v1541 = vadd.f32 %v1476, 1.0
      %v1542 = vadd.f32 %v1478, 1.0
      %v1543 = vadd.f32 %v1480, 1.0
      %v1544 = vadd.f32 %v1482, 1.0
      %v1545 = vadd.f32 %v1484, 1.0
      %v1546 = vadd.f32 %v1486, 1.0
      %v1547 = vadd.f32 %v1488, 1.0
      %v1548 = vadd.f32 %v1490, 1.0
      %v1549 = vadd.f32 %v1492, 1.0
      %v1550 = vadd.f32 %v1494, 1.0
      %v1551 = vadd.f32 %v1496, 1.0
      %v1552 = vadd.f32 %v1498, 1.0
      %v1553 = vadd.f32 %v1500, 1.0
      %v1554 = vadd.f32 %v1502, 1.0
      %v1555 = vadd.f32 %v1504, 1.0
      %v1556 = vadd.f32 %v1506, 1.0
      %v1557 = vadd.f32 %v1508, 1.0
      %v1558 = vadd.f32 %v1510, 1.0
      %v1559 = vadd.f32 %v1512, 1.0
      %v1560 = vadd.f32 %v1514, 1.0
      %v1561 = vadd.f32 %v1516, 1.0
      %v1562 = vadd.f32 %v1518, 1.0
      %v1563 = vadd.f32 %v1520, 1.0
      %v1564 = vadd.f32 %v1522, 1.0
      %v1565 = vadd.f32 %v1524, 1.0
      %v1566 = vadd.f32 %v1526, 1.0
      %v1567 = vadd.f32 %v1528, 1.0
      %v1568 = vadd.f32 %v1530, 1.0
      %v1569 = vrcp.pop %v1531
      %v1570 = vmul.f32 1.0, %v1569
      %v1571 = vrcp.pop %v1532
      %v1572 = vmul.f32 1.0, %v1571
      %v1573 = vrcp.pop %v1533
      %v1574 = vmul.f32 1.0, %v1573
      %v1575 = vrcp.pop %v1534
      %v1576 = vmul.f32 1.0, %v1575
      %v1577 = vrcp.pop %v1535
      %v1578 = vmul.f32 1.0, %v1577
      %v1579 = vrcp.pop %v1536
      %v1580 = vmul.f32 1.0, %v1579
      %v1581 = vrcp.pop %v1537
      %v1582 = vmul.f32 1.0, %v1581
      %v1583 = vrcp.pop %v1538
      %v1584 = vmul.f32 1.0, %v1583
      %v1585 = vrcp.pop %v1539
      %v1586 = vmul.f32 1.0, %v1585
      %v1587 = vrcp.pop %v1540
      %v1588 = vmul.f32 1.0, %v1587
      %v1589 = vrcp.pop %v1541
      %v1590 = vmul.f32 1.0, %v1589
      %v1591 = vrcp.pop %v1542
      %v1592 = vmul.f32 1.0, %v1591
      %v1593 = vrcp.pop %v1543
      %v1594 = vmul.f32 1.0, %v1593
      %v1595 = vrcp.pop %v1544
      %v1596 = vmul.f32 1.0, %v1595
      %v1597 = vrcp.pop %v1545
      %v1598 = vmul.f32 1.0, %v1597
      %v1599 = vrcp.pop %v1546
      %v1600 = vmul.f32 1.0, %v1599
      %v1601 = vrcp.pop %v1547
      %v1602 = vmul.f32 1.0, %v1601
      %v1603 = vrcp.pop %v1548
      %v1604 = vmul.f32 1.0, %v1603
      %v1605 = vrcp.pop %v1549
      %v1606 = vmul.f32 1.0, %v1605
      %v1607 = vrcp.pop %v1550
      %v1608 = vmul.f32 1.0, %v1607
      %v1609 = vrcp.pop %v1551
      %v1610 = vmul.f32 1.0, %v1609
      %v1611 = vrcp.pop %v1552
      %v1612 = vmul.f32 1.0, %v1611
      %v1613 = vrcp.pop %v1553
      %v1614 = vmul.f32 1.0, %v1613
      %v1615 = vrcp.pop %v1554
      %v1616 = vmul.f32 1.0, %v1615
      %v1617 = vrcp.pop %v1555
      %v1618 = vmul.f32 1.0, %v1617
      %v1619 = vrcp.pop %v1556
      %v1620 = vmul.f32 1.0, %v1619
      %v1621 = vrcp.pop %v1557
      %v1622 = vmul.f32 1.0, %v1621
      %v1623 = vrcp.pop %v1558
      %v1624 = vmul.f32 1.0, %v1623
      %v1625 = vrcp.pop %v1559
      %v1626 = vmul.f32 1.0, %v1625
      %v1627 = vrcp.pop %v1560
      %v1628 = vmul.f32 1.0, %v1627
      %v1629 = vrcp.pop %v1561
      %v1630 = vmul.f32 1.0, %v1629
      %v1631 = vrcp.pop %v1562
      %v1632 = vmul.f32 1.0, %v1631
      %v1633 = vrcp.pop %v1563
      %v1634 = vmul.f32 1.0, %v1633
      %v1635 = vrcp.pop %v1564
      %v1636 = vmul.f32 1.0, %v1635
      %v1637 = vrcp.pop %v1565
      %v1638 = vmul.f32 1.0, %v1637
      %v1639 = vrcp.pop %v1566
      %v1640 = vmul.f32 1.0, %v1639
      %v1641 = vrcp.pop %v1567
      %v1642 = vmul.f32 1.0, %v1641
      %v1643 = vrcp.pop %v1568
      %v1644 = vmul.f32 1.0, %v1643
      %v1645 = vmul.f32 %v1115, %v1570
      %v1646 = vmul.f32 %v1116, %v1572
      %v1647 = vmul.f32 %v1117, %v1574
      %v1648 = vmul.f32 %v1118, %v1576
      %v1649 = vmul.f32 %v1119, %v1578
      %v1650 = vmul.f32 %v1120, %v1580
      %v1651 = vmul.f32 %v1121, %v1582
      %v1652 = vmul.f32 %v1122, %v1584
      %v1653 = vmul.f32 %v1123, %v1586
      %v1654 = vmul.f32 %v1124, %v1588
      %v1655 = vmul.f32 %v1125, %v1590
      %v1656 = vmul.f32 %v1126, %v1592
      %v1657 = vmul.f32 %v1127, %v1594
      %v1658 = vmul.f32 %v1128, %v1596
      %v1659 = vmul.f32 %v1129, %v1598
      %v1660 = vmul.f32 %v1130, %v1600
      %v1661 = vmul.f32 %v1131, %v1602
      %v1662 = vmul.f32 %v1132, %v1604
      %v1663 = vmul.f32 %v1133, %v1606
      %v1664 = vmul.f32 %v1134, %v1608
      %v1665 = vmul.f32 %v1135, %v1610
      %v1666 = vmul.f32 %v1136, %v1612
      %v1667 = vmul.f32 %v1137, %v1614
      %v1668 = vmul.f32 %v1138, %v1616
      %v1669 = vmul.f32 %v1139, %v1618
      %v1670 = vmul.f32 %v1140, %v1620
      %v1671 = vmul.f32 %v1141, %v1622
      %v1672 = vmul.f32 %v1142, %v1624
      %v1673 = vmul.f32 %v1143, %v1626
      %v1674 = vmul.f32 %v1144, %v1628
      %v1675 = vmul.f32 %v1145, %v1630
      %v1676 = vmul.f32 %v1146, %v1632
      %v1677 = vmul.f32 %v1147, %v1634
      %v1678 = vmul.f32 %v1148, %v1636
      %v1679 = vmul.f32 %v1149, %v1638
      %v1680 = vmul.f32 %v1150, %v1640
      %v1681 = vmul.f32 %v1151, %v1642
      %v1682 = vmul.f32 %v1152, %v1644
      %v1683 = vld [vmem:[%s7] sm:$0xff]
      %v1684 = vld [vmem:[%s7 + $0x8] sm:$0xff]
      %v1686 = vsel %vm367, %v1645, 0
      %v1689 = vsel %vm367, %v1646, 0
      %v1692 = vsel %vm367, %v1647, 0
      %v1695 = vsel %vm367, %v1648, 0
      %v1698 = vsel %vm367, %v1649, 0
      %v1701 = vsel %vm367, %v1650, 0
      %v1704 = vsel %vm367, %v1651, 0
      %v1707 = vsel %vm367, %v1652, 0
      %v1710 = vsel %vm367, %v1653, 0
      %v1713 = vsel %vm367, %v1654, 0
      %v1716 = vsel %vm367, %v1655, 0
      %v1719 = vsel %vm367, %v1656, 0
      %v1722 = vsel %vm367, %v1657, 0
      %v1725 = vsel %vm367, %v1658, 0
      %v1728 = vsel %vm367, %v1659, 0
      %v1731 = vsel %vm367, %v1660, 0
      %v1734 = vsel %vm367, %v1661, 0
      %v1737 = vsel %vm367, %v1662, 0
      %v1740 = vsel %vm367, %v1663, 0
      %v1743 = vsel %vm367, %v1664, 0
      %v1746 = vsel %vm367, %v1665, 0
      %v1749 = vsel %vm367, %v1666, 0
      %v1752 = vsel %vm367, %v1667, 0
      %v1755 = vsel %vm367, %v1668, 0
      %v1758 = vsel %vm367, %v1669, 0
      %v1761 = vsel %vm367, %v1670, 0
      %v1764 = vsel %vm367, %v1671, 0
      %v1767 = vsel %vm367, %v1672, 0
      %v1770 = vsel %vm367, %v1673, 0
      %v1773 = vsel %vm367, %v1674, 0
      %v1776 = vsel %vm367, %v1675, 0
      %v1779 = vsel %vm367, %v1676, 0
      %v1782 = vsel %vm367, %v1677, 0
      %v1785 = vsel %vm367, %v1678, 0
      %v1788 = vsel %vm367, %v1679, 0
      %v1791 = vsel %vm367, %v1680, 0
      %v1794 = vsel %vm367, %v1681, 0
      %v1797 = vsel %vm367, %v1682, 0
      %1799 = vmatprep.subr.mxu0 0.0
      %1800 = vmatpush1.msra.mxu0 0.0
      %1801 = vmatprep.subr.mxu0 0.0
      %1802 = vmatpush1.msra.mxu0 0.0
      %1803 = vmatprep.subr.mxu0 0.0
      %1804 = vmatpush1.msra.mxu0 0.0
      %1805 = vmatprep.subr.mxu0 0.0
      %1806 = vmatpush1.msra.mxu0 0.0
      %1807 = vmatprep.subr.mxu0 0.0
      %1808 = vmatpush1.msra.mxu0 0.0
      %1809 = vmatprep.subr.mxu0 0.0
      %1810 = vmatpush1.msra.mxu0 0.0
      %1811 = vmatprep.subr.mxu0 0.0
      %1812 = vmatpush1.msra.mxu0 0.0
      %1813 = vmatprep.subr.mxu0 0.0
      %1814 = vmatpush1.msra.mxu0 0.0
      %1815 = vmatprep.subr.mxu0 0.0
      %1816 = vmatpush1.msra.mxu0 0.0
      %1817 = vmatprep.subr.mxu0 0.0
      %1818 = vmatpush1.msra.mxu0 0.0
      %1819 = vmatprep.subr.mxu0 0.0
      %1820 = vmatpush1.msra.mxu0 0.0
      %1821 = vmatprep.subr.mxu0 0.0
      %1822 = vmatpush1.msra.mxu0 0.0
      %1823 = vmatprep.subr.mxu0 0.0
      %1824 = vmatpush1.msra.mxu0 0.0
      %1825 = vmatprep.subr.mxu0 0.0
      %1826 = vmatpush1.msra.mxu0 0.0
      %1827 = vmatprep.subr.mxu0 0.0
      %1828 = vmatpush1.msra.mxu0 %v1684
      %1829 = vmatprep.subr.mxu0 0.0
      %1830 = vmatpush1.msra.mxu0 %v1683
      %1831 = vmatprep.subr.mxu0 0.0
      %1832 = vmatpush2.msra.mxu0 0.0
      %1833 = vmatprep.subr.mxu0 0.0
      %1834 = vmatpush2.msra.mxu0 0.0
      %1835 = vmatprep.subr.mxu0 0.0
      %1836 = vmatpush2.msra.mxu0 0.0
      %1837 = vmatprep.subr.mxu0 0.0
      %1838 = vmatpush2.msra.mxu0 0.0
      %1839 = vmatprep.subr.mxu0 0.0
      %1840 = vmatpush2.msra.mxu0 0.0
      %1841 = vmatprep.subr.mxu0 0.0
      %1842 = vmatpush2.msra.mxu0 0.0
      %1843 = vmatprep.subr.mxu0 0.0
      %1844 = vmatpush2.msra.mxu0 0.0
      %1845 = vmatprep.subr.mxu0 0.0
      %1846 = vmatpush2.msra.mxu0 0.0
      %1847 = vmatprep.subr.mxu0 0.0
      %1848 = vmatpush2.msra.mxu0 0.0
      %1849 = vmatprep.subr.mxu0 0.0
      %1850 = vmatpush2.msra.mxu0 0.0
      %1851 = vmatprep.subr.mxu0 0.0
      %1852 = vmatpush2.msra.mxu0 0.0
      %1853 = vmatprep.subr.mxu0 0.0
      %1854 = vmatpush2.msra.mxu0 0.0
      %1855 = vmatprep.subr.mxu0 0.0
      %1856 = vmatpush2.msra.mxu0 0.0
      %1857 = vmatprep.subr.mxu0 0.0
      %1858 = vmatpush2.msra.mxu0 0.0
      %1859 = vmatprep.subr.mxu0 0.0
      %1860 = vmatpush2.msra.mxu0 0.0
      %1861 = vmatprep.subr.mxu0 0.0
      %1862 = vmatpush2.msra.mxu0 0.0
      %1863 = vmatprep.mubr.f32.mxu0 0.0
      %1864 = vmatmul.mubr.f32.gmra.mxu0 %v1686
      %v1865 = vpop.f32.mrf.mxu0
      %v1866 = vadd.f32 0.0, %v1865
      %v1867 = vpop.f32.mrf.mxu0
      %1868 = vmatprep.mubr.f32.mxu0 0.0
      %1869 = vmatmul.mubr.f32.gmra.mxu0 %v1689
      %v1870 = vpop.f32.mrf.mxu0
      %v1871 = vadd.f32 0.0, %v1870
      %v1872 = vpop.f32.mrf.mxu0
      %1873 = vmatprep.mubr.f32.mxu0 0.0
      %1874 = vmatmul.mubr.f32.gmra.mxu0 %v1692
      %v1875 = vpop.f32.mrf.mxu0
      %v1876 = vadd.f32 0.0, %v1875
      %v1877 = vpop.f32.mrf.mxu0
      %1878 = vmatprep.mubr.f32.mxu0 0.0
      %1879 = vmatmul.mubr.f32.gmra.mxu0 %v1695
      %v1880 = vpop.f32.mrf.mxu0
      %v1881 = vadd.f32 0.0, %v1880
      %v1882 = vpop.f32.mrf.mxu0
      %1883 = vmatprep.mubr.f32.mxu0 0.0
      %1884 = vmatmul.mubr.f32.gmra.mxu0 %v1698
      %v1885 = vpop.f32.mrf.mxu0
      %v1886 = vadd.f32 0.0, %v1885
      %v1887 = vpop.f32.mrf.mxu0
      %1888 = vmatprep.mubr.f32.mxu0 0.0
      %1889 = vmatmul.mubr.f32.gmra.mxu0 %v1701
      %v1890 = vpop.f32.mrf.mxu0
      %v1891 = vadd.f32 0.0, %v1890
      %v1892 = vpop.f32.mrf.mxu0
      %1893 = vmatprep.mubr.f32.mxu0 0.0
      %1894 = vmatmul.mubr.f32.gmra.mxu0 %v1704
      %v1895 = vpop.f32.mrf.mxu0
      %v1896 = vadd.f32 0.0, %v1895
      %v1897 = vpop.f32.mrf.mxu0
      %1898 = vmatprep.mubr.f32.mxu0 0.0
      %1899 = vmatmul.mubr.f32.gmra.mxu0 %v1707
      %v1900 = vpop.f32.mrf.mxu0
      %v1901 = vadd.f32 0.0, %v1900
      %v1902 = vpop.f32.mrf.mxu0
      %1903 = vmatprep.mubr.f32.mxu0 0.0
      %1904 = vmatmul.mubr.f32.gmra.mxu0 %v1710
      %v1905 = vpop.f32.mrf.mxu0
      %v1906 = vadd.f32 0.0, %v1905
      %v1907 = vpop.f32.mrf.mxu0
      %1908 = vmatprep.mubr.f32.mxu0 0.0
      %1909 = vmatmul.mubr.f32.gmra.mxu0 %v1713
      %v1910 = vpop.f32.mrf.mxu0
      %v1911 = vadd.f32 0.0, %v1910
      %v1912 = vpop.f32.mrf.mxu0
      %1913 = vmatprep.mubr.f32.mxu0 0.0
      %1914 = vmatmul.mubr.f32.gmra.mxu0 %v1716
      %v1915 = vpop.f32.mrf.mxu0
      %v1916 = vadd.f32 0.0, %v1915
      %v1917 = vpop.f32.mrf.mxu0
      %1918 = vmatprep.mubr.f32.mxu0 0.0
      %1919 = vmatmul.mubr.f32.gmra.mxu0 %v1719
      %v1920 = vpop.f32.mrf.mxu0
      %v1921 = vadd.f32 0.0, %v1920
      %v1922 = vpop.f32.mrf.mxu0
      %1923 = vmatprep.mubr.f32.mxu0 0.0
      %1924 = vmatmul.mubr.f32.gmra.mxu0 %v1722
      %v1925 = vpop.f32.mrf.mxu0
      %v1926 = vadd.f32 0.0, %v1925
      %v1927 = vpop.f32.mrf.mxu0
      %1928 = vmatprep.mubr.f32.mxu0 0.0
      %1929 = vmatmul.mubr.f32.gmra.mxu0 %v1725
      %v1930 = vpop.f32.mrf.mxu0
      %v1931 = vadd.f32 0.0, %v1930
      %v1932 = vpop.f32.mrf.mxu0
      %1933 = vmatprep.mubr.f32.mxu0 0.0
      %1934 = vmatmul.mubr.f32.gmra.mxu0 %v1728
      %v1935 = vpop.f32.mrf.mxu0
      %v1936 = vadd.f32 0.0, %v1935
      %v1937 = vpop.f32.mrf.mxu0
      %1938 = vmatprep.mubr.f32.mxu0 0.0
      %1939 = vmatmul.mubr.f32.gmra.mxu0 %v1731
      %v1940 = vpop.f32.mrf.mxu0
      %v1941 = vadd.f32 0.0, %v1940
      %v1942 = vpop.f32.mrf.mxu0
      %1943 = vmatprep.mubr.f32.mxu0 0.0
      %1944 = vmatmul.mubr.f32.gmra.mxu0 %v1734
      %v1945 = vpop.f32.mrf.mxu0
      %v1946 = vadd.f32 0.0, %v1945
      %v1947 = vpop.f32.mrf.mxu0
      %1948 = vmatprep.mubr.f32.mxu0 0.0
      %1949 = vmatmul.mubr.f32.gmra.mxu0 %v1737
      %v1950 = vpop.f32.mrf.mxu0
      %v1951 = vadd.f32 0.0, %v1950
      %v1952 = vpop.f32.mrf.mxu0
      %1953 = vmatprep.mubr.f32.mxu0 0.0
      %1954 = vmatmul.mubr.f32.gmra.mxu0 %v1740
      %v1955 = vpop.f32.mrf.mxu0
      %v1956 = vadd.f32 0.0, %v1955
      %v1957 = vpop.f32.mrf.mxu0
      %1958 = vmatprep.mubr.f32.mxu0 0.0
      %1959 = vmatmul.mubr.f32.gmra.mxu0 %v1743
      %v1960 = vpop.f32.mrf.mxu0
      %v1961 = vadd.f32 0.0, %v1960
      %v1962 = vpop.f32.mrf.mxu0
      %1963 = vmatprep.mubr.f32.mxu0 0.0
      %1964 = vmatmul.mubr.f32.gmra.mxu0 %v1746
      %v1965 = vpop.f32.mrf.mxu0
      %v1966 = vadd.f32 0.0, %v1965
      %v1967 = vpop.f32.mrf.mxu0
      %1968 = vmatprep.mubr.f32.mxu0 0.0
      %1969 = vmatmul.mubr.f32.gmra.mxu0 %v1749
      %v1970 = vpop.f32.mrf.mxu0
      %v1971 = vadd.f32 0.0, %v1970
      %v1972 = vpop.f32.mrf.mxu0
      %1973 = vmatprep.mubr.f32.mxu0 0.0
      %1974 = vmatmul.mubr.f32.gmra.mxu0 %v1752
      %v1975 = vpop.f32.mrf.mxu0
      %v1976 = vadd.f32 0.0, %v1975
      %v1977 = vpop.f32.mrf.mxu0
      %1978 = vmatprep.mubr.f32.mxu0 0.0
      %1979 = vmatmul.mubr.f32.gmra.mxu0 %v1755
      %v1980 = vpop.f32.mrf.mxu0
      %v1981 = vadd.f32 0.0, %v1980
      %v1982 = vpop.f32.mrf.mxu0
      %1983 = vmatprep.mubr.f32.mxu0 0.0
      %1984 = vmatmul.mubr.f32.gmra.mxu0 %v1758
      %v1985 = vpop.f32.mrf.mxu0
      %v1986 = vadd.f32 0.0, %v1985
      %v1987 = vpop.f32.mrf.mxu0
      %1988 = vmatprep.mubr.f32.mxu0 0.0
      %1989 = vmatmul.mubr.f32.gmra.mxu0 %v1761
      %v1990 = vpop.f32.mrf.mxu0
      %v1991 = vadd.f32 0.0, %v1990
      %v1992 = vpop.f32.mrf.mxu0
      %1993 = vmatprep.mubr.f32.mxu0 0.0
      %1994 = vmatmul.mubr.f32.gmra.mxu0 %v1764
      %v1995 = vpop.f32.mrf.mxu0
      %v1996 = vadd.f32 0.0, %v1995
      %v1997 = vpop.f32.mrf.mxu0
      %1998 = vmatprep.mubr.f32.mxu0 0.0
      %1999 = vmatmul.mubr.f32.gmra.mxu0 %v1767
      %v2000 = vpop.f32.mrf.mxu0
      %v2001 = vadd.f32 0.0, %v2000
      %v2002 = vpop.f32.mrf.mxu0
      %2003 = vmatprep.mubr.f32.mxu0 0.0
      %2004 = vmatmul.mubr.f32.gmra.mxu0 %v1770
      %v2005 = vpop.f32.mrf.mxu0
      %v2006 = vadd.f32 0.0, %v2005
      %v2007 = vpop.f32.mrf.mxu0
      %2008 = vmatprep.mubr.f32.mxu0 0.0
      %2009 = vmatmul.mubr.f32.gmra.mxu0 %v1773
      %v2010 = vpop.f32.mrf.mxu0
      %v2011 = vadd.f32 0.0, %v2010
      %v2012 = vpop.f32.mrf.mxu0
      %2013 = vmatprep.mubr.f32.mxu0 0.0
      %2014 = vmatmul.mubr.f32.gmra.mxu0 %v1776
      %v2015 = vpop.f32.mrf.mxu0
      %v2016 = vadd.f32 0.0, %v2015
      %v2017 = vpop.f32.mrf.mxu0
      %2018 = vmatprep.mubr.f32.mxu0 0.0
      %2019 = vmatmul.mubr.f32.gmra.mxu0 %v1779
      %v2020 = vpop.f32.mrf.mxu0
      %v2021 = vadd.f32 0.0, %v2020
      %v2022 = vpop.f32.mrf.mxu0
      %2023 = vmatprep.mubr.f32.mxu0 0.0
      %2024 = vmatmul.mubr.f32.gmra.mxu0 %v1782
      %v2025 = vpop.f32.mrf.mxu0
      %v2026 = vadd.f32 0.0, %v2025
      %v2027 = vpop.f32.mrf.mxu0
      %2028 = vmatprep.mubr.f32.mxu0 0.0
      %2029 = vmatmul.mubr.f32.gmra.mxu0 %v1785
      %v2030 = vpop.f32.mrf.mxu0
      %v2031 = vadd.f32 0.0, %v2030
      %v2032 = vpop.f32.mrf.mxu0
      %2033 = vmatprep.mubr.f32.mxu0 0.0
      %2034 = vmatmul.mubr.f32.gmra.mxu0 %v1788
      %v2035 = vpop.f32.mrf.mxu0
      %v2036 = vadd.f32 0.0, %v2035
      %v2037 = vpop.f32.mrf.mxu0
      %2038 = vmatprep.mubr.f32.mxu0 0.0
      %2039 = vmatmul.mubr.f32.gmra.mxu0 %v1791
      %v2040 = vpop.f32.mrf.mxu0
      %v2041 = vadd.f32 0.0, %v2040
      %v2042 = vpop.f32.mrf.mxu0
      %2043 = vmatprep.mubr.f32.mxu0 0.0
      %2044 = vmatmul.mubr.f32.gmra.mxu0 %v1794
      %v2045 = vpop.f32.mrf.mxu0
      %v2046 = vadd.f32 0.0, %v2045
      %v2047 = vpop.f32.mrf.mxu0
      %2048 = vmatprep.mubr.f32.mxu0 0.0
      %2049 = vmatmul.mubr.f32.gmra.mxu0 %v1797
      %v2050 = vpop.f32.mrf.mxu0
      %v2051 = vadd.f32 0.0, %v2050
      %v2052 = vpop.f32.mrf.mxu0
      %2053 = vdwg.mxu0
      %v2054 = vmax.f32 %v1866, 0.0
      %v2055 = vmax.f32 %v1871, 0.0
      %v2056 = vmax.f32 %v1876, 0.0
      %v2057 = vmax.f32 %v1881, 0.0
      %v2058 = vmax.f32 %v1886, 0.0
      %v2059 = vmax.f32 %v1891, 0.0
      %v2060 = vmax.f32 %v1896, 0.0
      %v2061 = vmax.f32 %v1901, 0.0
      %v2062 = vmax.f32 %v1906, 0.0
      %v2063 = vmax.f32 %v1911, 0.0
      %v2064 = vmax.f32 %v1916, 0.0
      %v2065 = vmax.f32 %v1921, 0.0
      %v2066 = vmax.f32 %v1926, 0.0
      %v2067 = vmax.f32 %v1931, 0.0
      %v2068 = vmax.f32 %v1936, 0.0
      %v2069 = vmax.f32 %v1941, 0.0
      %v2070 = vmax.f32 %v1946, 0.0
      %v2071 = vmax.f32 %v1951, 0.0
      %v2072 = vmax.f32 %v1956, 0.0
      %v2073 = vmax.f32 %v1961, 0.0
      %v2074 = vmax.f32 %v1966, 0.0
      %v2075 = vmax.f32 %v1971, 0.0
      %v2076 = vmax.f32 %v1976, 0.0
      %v2077 = vmax.f32 %v1981, 0.0
      %v2078 = vmax.f32 %v1986, 0.0
      %v2079 = vmax.f32 %v1991, 0.0
      %v2080 = vmax.f32 %v1996, 0.0
      %v2081 = vmax.f32 %v2001, 0.0
      %v2082 = vmax.f32 %v2006, 0.0
      %v2083 = vmax.f32 %v2011, 0.0
      %v2084 = vmax.f32 %v2016, 0.0
      %v2085 = vmax.f32 %v2021, 0.0
      %v2086 = vmax.f32 %v2026, 0.0
      %v2087 = vmax.f32 %v2031, 0.0
      %v2088 = vmax.f32 %v2036, 0.0
      %v2089 = vmax.f32 %v2041, 0.0
      %v2090 = vmax.f32 %v2046, 0.0
      %v2091 = vmax.f32 %v2051, 0.0
      %vm2092 = vcmask 64512
      %2093 = vst.msk [vmem:[%s319] sm:$0xff] %vm2092, %v2054
      %2094 = vst.msk [vmem:[%s319 + $0x8] sm:$0xff] %vm2092, %v2055
      %2095 = vst.msk [vmem:[%s319 + $0x10] sm:$0xff] %vm2092, %v2056
      %2096 = vst.msk [vmem:[%s319 + $0x18] sm:$0xff] %vm2092, %v2057
      %2097 = vst.msk [vmem:[%s319 + $0x20] sm:$0xff] %vm2092, %v2058
      %2098 = vst.msk [vmem:[%s319 + $0x28] sm:$0xff] %vm2092, %v2059
      %2099 = vst.msk [vmem:[%s319 + $0x30] sm:$0xff] %vm2092, %v2060
      %2100 = vst.msk [vmem:[%s319 + $0x38] sm:$0xff] %vm2092, %v2061
      %2101 = vst.msk [vmem:[%s319 + $0x40] sm:$0xff] %vm2092, %v2062
      %2102 = vst.msk [vmem:[%s319 + $0x48] sm:$0xff] %vm2092, %v2063
      %2103 = vst.msk [vmem:[%s319 + $0x50] sm:$0xff] %vm2092, %v2064
      %2104 = vst.msk [vmem:[%s319 + $0x58] sm:$0xff] %vm2092, %v2065
      %2105 = vst.msk [vmem:[%s319 + $0x60] sm:$0xff] %vm2092, %v2066
      %2106 = vst.msk [vmem:[%s319 + $0x68] sm:$0xff] %vm2092, %v2067
      %2107 = vst.msk [vmem:[%s319 + $0x70] sm:$0xff] %vm2092, %v2068
      %2108 = vst.msk [vmem:[%s319 + $0x78] sm:$0xff] %vm2092, %v2069
      %2109 = vst.msk [vmem:[%s319 + $0x80] sm:$0xff] %vm2092, %v2070
      %2110 = vst.msk [vmem:[%s319 + $0x88] sm:$0xff] %vm2092, %v2071
      %2111 = vst.msk [vmem:[%s319 + $0x90] sm:$0xff] %vm2092, %v2072
      %2112 = vst.msk [vmem:[%s319 + $0x98] sm:$0xff] %vm2092, %v2073
      %2113 = vst.msk [vmem:[%s319 + $0xa0] sm:$0xff] %vm2092, %v2074
      %2114 = vst.msk [vmem:[%s319 + $0xa8] sm:$0xff] %vm2092, %v2075
      %2115 = vst.msk [vmem:[%s319 + $0xb0] sm:$0xff] %vm2092, %v2076
      %2116 = vst.msk [vmem:[%s319 + $0xb8] sm:$0xff] %vm2092, %v2077
      %2117 = vst.msk [vmem:[%s319 + $0xc0] sm:$0xff] %vm2092, %v2078
      %2118 = vst.msk [vmem:[%s319 + $0xc8] sm:$0xff] %vm2092, %v2079
      %2119 = vst.msk [vmem:[%s319 + $0xd0] sm:$0xff] %vm2092, %v2080
      %2120 = vst.msk [vmem:[%s319 + $0xd8] sm:$0xff] %vm2092, %v2081
      %2121 = vst.msk [vmem:[%s319 + $0xe0] sm:$0xff] %vm2092, %v2082
      %2122 = vst.msk [vmem:[%s319 + $0xe8] sm:$0xff] %vm2092, %v2083
      %2123 = vst.msk [vmem:[%s319 + $0xf0] sm:$0xff] %vm2092, %v2084
      %2124 = vst.msk [vmem:[%s319 + $0xf8] sm:$0xff] %vm2092, %v2085
      %2125 = vst.msk [vmem:[%s319 + $0x100] sm:$0xff] %vm2092, %v2086
      %2126 = vst.msk [vmem:[%s319 + $0x108] sm:$0xff] %vm2092, %v2087
      %2127 = vst.msk [vmem:[%s319 + $0x110] sm:$0xff] %vm2092, %v2088
      %2128 = vst.msk [vmem:[%s319 + $0x118] sm:$0xff] %vm2092, %v2089
      %2129 = vst.msk [vmem:[%s319 + $0x120] sm:$0xff] %vm2092, %v2090
      %vm2130 = vcmask 60416
      %2131 = vst.msk [vmem:[%s319 + $0x128] sm:$0xf] %vm2130, %v2091
      %p2132 = scmp.lt.s32.totalorder %s19, 1
      %s2133 = scalar_select %p2132, %s19, 1
      %s2134 = smul.addr %s2133, 38
      %s2135 = smul.addr %s2134, 8
      %s2136 = scalar_lea.vmem %s8, %s2135
      // Predicated region
      $region53: #{forward.5} parent=51 // pred_check
        %p2137 = pneg %p215
      $region54: #{forward.5} parent=51 // pred_check_branch
        %2139 = sbr.rel (%p2137) target = $region56
      $region55: #{forward.5} parent=51 // pred_region
        _
      $region56: #{forward.5} parent=51 // pred_fallthru
        _
    $region52: #{forward.5} parent=5 // pred_fallthru
      _
    %p2140 = scmp.le.s32.totalorder 2, %s14
    // Predicated region
    $region57: #{forward.5} parent=5 // pred_check
      %p2141 = pneg %p2140
    $region58: #{forward.5} parent=5 // pred_check_branch
      %2143 = sbr.rel (%p2141) target = $region60
    $region59: #{forward.5} parent=5 // pred_region
      %s2144 = ssub.s32 %s14, 2
      // Predicated region
      $region61: #{forward.5} parent=59 // pred_check
        %p2145 = pneg %p221
      $region62: #{forward.5} parent=59 // pred_check_branch
        %2147 = sbr.rel (%p2145) target = $region64
      $region63: #{forward.5} parent=59 // pred_region
        %p2148 = scmp.lt.s32.totalorder %s20, 1
        %s2149 = scalar_select %p2148, %s20, 1
        %s2150 = smul.addr %s2149, 38
        %s2151 = smul.addr %s2150, 8
        %s2152 = scalar_lea.vmem %s8, %s2151
      $region64: #{forward.5} parent=59 // pred_fallthru
        _
    $region60: #{forward.5} parent=5 // pred_fallthru
      _
  $region6: #{forward.5} parent=0 // loop_footer
    %s18 = sadd.s32 1, %s14
  $region7: #{forward.5} parent=0 // loop_footer_branch
    %13 = sbr.rel target = $region3
  $region8: #{forward.5} parent=0 // loop_exit
    _

</llo_original>
